<compile_context>
chip_gen: v5e
topology: v5e:2x2
jax: 0.10.0
libtpu: 0.0.40
codegen_flags: <defaults>
</compile_context>

<pallas_src>
import functools

import jax
import jax.numpy as jnp
from jax.experimental import pallas as pl
from jax.experimental.pallas import tpu as pltpu

LN_EPS = 1e-5  # PyTorch nn.LayerNorm default


def _gelu_tanh(x):
    # TODO(synk): PyTorch nn.GELU() default is the exact erf form; the tanh
    # approximation (max abs dev ~3e-4) is used because tanh lowers to the EUP
    # on all TPU generations.  The reference below uses the same form, and the
    # comparison tolerances account for it.
    c = 0.7978845608028654  # sqrt(2/pi)
    return 0.5 * x * (1.0 + jnp.tanh(c * (x + 0.044715 * x * x * x)))


def _sa_block_kernel(x_ref, mask_ref,
                     ln1_g_ref, ln1_b_ref,
                     wqkv_ref, bqkv_ref,
                     wo_ref, bo_ref,
                     ln2_g_ref, ln2_b_ref,
                     w1_ref, b1_ref, w2_ref, b2_ref,
                     o_ref, *, num_heads):
    f32 = jnp.float32
    mxdt = wqkv_ref.dtype                       # MXU feed dtype (bf16 by default)
    exact = jnp.dtype(mxdt) == jnp.dtype(f32)

    blk_b, S, D = x_ref.shape
    x = x_ref[...].astype(f32).reshape(blk_b * S, D)   # (R, D) rows, lane-dense

    def layer_norm(v, g_ref, b_ref):
        mean = jnp.mean(v, axis=-1, keepdims=True)
        c = v - mean
        var = jnp.mean(c * c, axis=-1, keepdims=True)
        inv = jax.lax.rsqrt(var + LN_EPS)
        return c * inv * g_ref[...].astype(f32) + b_ref[...].astype(f32)

    # ---- pre-LN + fused QKV projection: one (R, D) @ (D, 3D) MXU op ----
    xn = layer_norm(x, ln1_g_ref, ln1_b_ref).astype(mxdt)
    qkv = jnp.dot(xn, wqkv_ref[...], preferred_element_type=f32)
    qkv = qkv + bqkv_ref[...].astype(f32)
    # 1/sqrt(dh) is already folded into the q columns of Wqkv / bqkv (host side).
    q = qkv[:, 0 * D:1 * D].astype(mxdt)        # lane-aligned 128-wide slices
    k = qkv[:, 1 * D:2 * D].astype(mxdt)
    v = qkv[:, 2 * D:3 * D].astype(mxdt)

    head_mask = mask_ref[...]                   # (H*S, D) 0/1 in mxdt
    head_mask_f32 = head_mask.astype(f32)

    # ---- 8-head attention, head-packed: two full-width MXU ops per batch
    # element instead of 8+8 dh=16 matmuls + 16-lane operand slices. ----
    nt = (((1,), (1,)), ((), ()))               # contract last dims (A @ B^T)
    attn_rows = []
    for b in range(blk_b):                      # static unroll over batch block
        rows = slice(b * S, (b + 1) * S)
        qb, kb, vb = q[rows], k[rows], v[rows]
        # Row h*S+i of qq is q_i masked to head h's feature lanes, so a single
        # (H*S, D) @ (S, D)^T matmul produces every head's S x S score block.
        qq = jnp.concatenate([qb] * num_heads, axis=0) * head_mask   # (H*S, D)
        s = jax.lax.dot_general(qq, kb, nt, preferred_element_type=f32)  # (H*S, S)
        s = s - jnp.max(s, axis=-1, keepdims=True)      # plain row softmax
        p = jnp.exp(s)
        l = jnp.sum(p, axis=-1, keepdims=True)
        if exact:
            p = p / l
        else:
            p = p * pl.reciprocal(l, approx=True)       # EUP slot: nearly free
        o_full = jnp.dot(p.astype(mxdt), vb, preferred_element_type=f32)  # (H*S, D)
        # Keep head h's own feature lanes out of its S rows and fold the H head
        # blocks back onto one (S, D) slab: aligned sublane slices + VPU adds.
        o_masked = o_full * head_mask_f32
        o_cat = o_masked[0:S, :]
        for h in range(1, num_heads):
            o_cat = o_cat + o_masked[h * S:(h + 1) * S, :]
        attn_rows.append(o_cat)
    o_cat = attn_rows[0] if blk_b == 1 else jnp.concatenate(attn_rows, axis=0)

    # Output projection over all block_b*S rows at once, then residual 1.
    attn = jnp.dot(o_cat.astype(mxdt), wo_ref[...], preferred_element_type=f32)
    a = attn + bo_ref[...].astype(f32) + x

    # ---- ff_self: LN -> Linear -> GELU -> Linear, + residual 2 ----
    an = layer_norm(a, ln2_g_ref, ln2_b_ref).astype(mxdt)
    h1 = _gelu_tanh(jnp.dot(an, w1_ref[...], preferred_element_type=f32)
                    + b1_ref[...].astype(f32))
    h2 = jnp.dot(h1.astype(mxdt), w2_ref[...], preferred_element_type=f32)
    h2 = h2 + b2_ref[...].astype(f32)

    o_ref[...] = (h2 + a).reshape(blk_b, S, D).astype(o_ref.dtype)


def sa_wrapper_forward(x, params, *, num_heads=8, matmul_dtype=jnp.bfloat16,
                       block_b=None):
    """SAWrapper.forward.  x: (B, h_size, S)  ->  (B, h_size, S)."""
    B, D, S = x.shape
    assert D % num_heads == 0
    dh = D // num_heads

    # Batch folding (perf review): pick the largest divisor of B that still
    # leaves >= 2 grid steps (so v7x's two TensorCores each get work) with a
    # bounded number of rows per step.
    if block_b is None:
        block_b = 1
        for d in range(1, B + 1):
            if B % d == 0 and B // d >= min(2, B) and d * S <= 1024:
                block_b = d
    assert B % block_b == 0

    # Lane-dense layout for the kernel: feature dim last (lane axis).
    xt = jnp.swapaxes(x, 1, 2)                       # (B, S, D)

    mx = jnp.dtype(matmul_dtype)
    f32 = jnp.float32
    scale = 1.0 / (dh ** 0.5)
    row = lambda vv: vv.reshape(1, -1).astype(f32)

    # Fused QKV weight (one matmul, one DMA); softmax scale folded into q columns.
    # Weights stored in the MXU feed dtype (bf16 halves HBM traffic / VMEM).
    wqkv = jnp.concatenate(
        [params["wq"] * scale, params["wk"], params["wv"]], axis=1).astype(mx)
    bqkv = jnp.concatenate(
        [params["bq"] * scale, params["bk"], params["bv"]], axis=0
    ).reshape(1, 3 * D).astype(f32)
    wo = params["wo"].astype(mx)
    w1 = params["w1"].astype(mx)
    w2 = params["w2"].astype(mx)

    # head_mask[h*S + j, d] == 1  iff feature column d belongs to head h.
    head_mask = (
        (jnp.arange(num_heads * S) // S)[:, None] == (jnp.arange(D) // dh)[None, :]
    ).astype(mx)                                     # (H*S, D)

    # Loop-invariant operands use constant index_maps: DMA'd once, revisited.
    vec = lambda n: pl.BlockSpec((1, n), lambda i: (0, 0))
    mat = lambda m, n: pl.BlockSpec((m, n), lambda i: (0, 0))
    xblk = pl.BlockSpec((block_b, S, D), lambda i: (i, 0, 0))

    flops = int(B * (12 * S * D * D + 4 * num_heads * S * S * D))
    transcendentals = int(B * (num_heads * S * S + 2 * S * D))
    bytes_accessed = int(4 * 2 * B * S * D
                         + mx.itemsize * (6 * D * D + num_heads * S * D)
                         + 4 * 10 * D)

    kernel = functools.partial(_sa_block_kernel, num_heads=num_heads)

    out = pl.pallas_call(
        kernel,
        out_shape=jax.ShapeDtypeStruct((B, S, D), x.dtype),
        grid_spec=pltpu.PrefetchScalarGridSpec(
            num_scalar_prefetch=0,
            grid=(B // block_b,),
            in_specs=[
                xblk,                                   # x
                mat(num_heads * S, D),                  # head mask
                vec(D), vec(D),                         # ln1 g/b
                mat(D, 3 * D), vec(3 * D),              # Wqkv, bqkv
                mat(D, D), vec(D),                      # Wo, bo
                vec(D), vec(D),                         # ln2 g/b
                mat(D, D), vec(D),                      # W1, b1
                mat(D, D), vec(D),                      # W2, b2
            ],
            out_specs=xblk,
        ),
        compiler_params=pltpu.CompilerParams(
            # Grid steps shard across TensorCores; vmem_limit_bytes left at the
            # default (real footprint < 1 MiB; v7x physical VMEM is only 64 MiB).
            dimension_semantics=("parallel",),
        ),
        cost_estimate=pl.CostEstimate(
            flops=flops, transcendentals=transcendentals,
            bytes_accessed=bytes_accessed),
    )(xt, head_mask,
      row(params["ln1_g"]), row(params["ln1_b"]),
      wqkv, bqkv,
      wo, row(params["bo"]),
      row(params["ln2_g"]), row(params["ln2_b"]),
      w1, row(params["b1"]),
      w2, row(params["b2"]))

    return jnp.swapaxes(out, 1, 2)                   # back to (B, h_size, S)


def sa_wrapper_ref(x, params, *, num_heads=8, matmul_dtype=None):
    """Pure-JAX reference of SAWrapper.forward.  If matmul_dtype is given, the
    matmul operands are cast to it (mirrors the kernel's MXU feed) with f32
    accumulation."""
    f32 = jnp.float32
    cast = (lambda v: v) if matmul_dtype is None else (lambda v: v.astype(matmul_dtype))
    mm = lambda a, b: jnp.matmul(cast(a), cast(b), precision="highest",
                                 preferred_element_type=f32)

    B, D, S = x.shape
    dh = D // num_heads
    xt = jnp.swapaxes(x, 1, 2).astype(f32)           # (B, S, D)

    def ln(v, g, b):
        m = jnp.mean(v, -1, keepdims=True)
        var = jnp.mean((v - m) ** 2, -1, keepdims=True)
        return (v - m) * jax.lax.rsqrt(var + LN_EPS) * g + b

    xn = ln(xt, params["ln1_g"], params["ln1_b"])
    q = mm(xn, params["wq"]) + params["bq"]
    k = mm(xn, params["wk"]) + params["bk"]
    v = mm(xn, params["wv"]) + params["bv"]

    def heads(t):                                    # (B,S,D) -> (B,H,S,dh)
        return t.reshape(B, S, num_heads, dh).transpose(0, 2, 1, 3)

    qh, kh, vh = heads(q) * (1.0 / dh ** 0.5), heads(k), heads(v)
    s = jnp.einsum("bhqd,bhkd->bhqk", cast(qh), cast(kh), precision="highest",
                   preferred_element_type=f32)
    p = jax.nn.softmax(s, axis=-1)
    o = jnp.einsum("bhqk,bhkd->bhqd", cast(p), cast(vh), precision="highest",
                   preferred_element_type=f32)
    o = o.transpose(0, 2, 1, 3).reshape(B, S, D)
    attn = mm(o, params["wo"]) + params["bo"]
    a = attn + xt

    an = ln(a, params["ln2_g"], params["ln2_b"])
    h1 = _gelu_tanh(mm(an, params["w1"]) + params["b1"])
    h2 = mm(h1, params["w2"]) + params["b2"]
    out = h2 + a
    return jnp.swapaxes(out, 1, 2).astype(x.dtype)


if __name__ == "__main__":
    key = jax.random.PRNGKey(0)
    keys = jax.random.split(key, 16)

    # SAWrapper(h_size) applied to x: (batch, channels=h_size, seq).
    # h_size=128 keeps the lane dim dense; B=8 lets the kernel fold 4 batch
    # elements per grid step while still giving each v7x TensorCore a step.
    B, h_size, seq = 8, 128, 16
    num_heads = 8
    D = h_size

    x = jax.random.normal(keys[0], (B, h_size, seq), dtype=jnp.float32)

    bound = 1.0 / (D ** 0.5)
    U = lambda k, shape: jax.random.uniform(k, shape, jnp.float32, -bound, bound)
    params = dict(
        ln1_g=jnp.ones((D,), jnp.float32), ln1_b=jnp.zeros((D,), jnp.float32),
        wq=U(keys[1], (D, D)), wk=U(keys[2], (D, D)), wv=U(keys[3], (D, D)),
        bq=U(keys[4], (D,)), bk=U(keys[5], (D,)), bv=U(keys[6], (D,)),
        wo=U(keys[7], (D, D)), bo=U(keys[8], (D,)),
        ln2_g=jnp.ones((D,), jnp.float32), ln2_b=jnp.zeros((D,), jnp.float32),
        w1=U(keys[9], (D, D)), b1=U(keys[10], (D,)),
        w2=U(keys[11], (D, D)), b2=U(keys[12], (D,)),
    )

    # 1) f32 MXU path: check against the pure-JAX (precision="highest") reference.
    out_f32 = jax.block_until_ready(
        sa_wrapper_forward(x, params, num_heads=num_heads,
                           matmul_dtype=jnp.float32))
    ref_f32 = sa_wrapper_ref(x, params, num_heads=num_heads)
    assert out_f32.shape == (B, h_size, seq)
    err_f32 = float(jnp.max(jnp.abs(out_f32 - ref_f32)))
    assert jnp.allclose(out_f32, ref_f32, atol=5e-3, rtol=5e-3), err_f32

    # 2) default bf16 MXU path (perf config): check against a bf16-feeding ref.
    out_bf16 = jax.block_until_ready(
        sa_wrapper_forward(x, params, num_heads=num_heads))
    ref_bf16 = sa_wrapper_ref(x, params, num_heads=num_heads,
                              matmul_dtype=jnp.bfloat16)
    err_bf16 = float(jnp.max(jnp.abs(out_bf16 - ref_bf16)))
    assert jnp.allclose(out_bf16, ref_bf16, atol=2e-2, rtol=2e-2), err_bf16

    print("KERNEL_OK")
</pallas_src>

<mosaic_0001>
module attributes {stable_mosaic.version = 11 : i64} {
  func.func @_sa_block_kernel(%arg0: i32, %arg1: memref<4x16x128xf32, #tpu.memory_space<vmem>>, %arg2: memref<128x128xf32, #tpu.memory_space<vmem>>, %arg3: memref<1x128xf32, #tpu.memory_space<vmem>>, %arg4: memref<1x128xf32, #tpu.memory_space<vmem>>, %arg5: memref<128x384xf32, #tpu.memory_space<vmem>>, %arg6: memref<1x384xf32, #tpu.memory_space<vmem>>, %arg7: memref<128x128xf32, #tpu.memory_space<vmem>>, %arg8: memref<1x128xf32, #tpu.memory_space<vmem>>, %arg9: memref<1x128xf32, #tpu.memory_space<vmem>>, %arg10: memref<1x128xf32, #tpu.memory_space<vmem>>, %arg11: memref<128x128xf32, #tpu.memory_space<vmem>>, %arg12: memref<1x128xf32, #tpu.memory_space<vmem>>, %arg13: memref<128x128xf32, #tpu.memory_space<vmem>>, %arg14: memref<1x128xf32, #tpu.memory_space<vmem>>, %arg15: memref<4x16x128xf32, #tpu.memory_space<vmem>>) attributes {dimension_semantics = [#tpu.dimension_semantics<parallel>], iteration_bounds = array<i64: 2>, scalar_prefetch = 0 : i64, scratch_operands = 0 : i64, tpu.core_type = #tpu.core_type<tc>, window_params = [{transform_indices = @transform_0, window_bounds = array<i64: 4, 16, 128>}, {pipeline_mode = #tpu.pipeline_mode<synchronous>, transform_indices = @transform_1, window_bounds = array<i64: 128, 128>}, {pipeline_mode = #tpu.pipeline_mode<synchronous>, transform_indices = @transform_2, window_bounds = array<i64: 1, 128>}, {pipeline_mode = #tpu.pipeline_mode<synchronous>, transform_indices = @transform_3, window_bounds = array<i64: 1, 128>}, {pipeline_mode = #tpu.pipeline_mode<synchronous>, transform_indices = @transform_4, window_bounds = array<i64: 128, 384>}, {pipeline_mode = #tpu.pipeline_mode<synchronous>, transform_indices = @transform_5, window_bounds = array<i64: 1, 384>}, {pipeline_mode = #tpu.pipeline_mode<synchronous>, transform_indices = @transform_6, window_bounds = array<i64: 128, 128>}, {pipeline_mode = #tpu.pipeline_mode<synchronous>, transform_indices = @transform_7, window_bounds = array<i64: 1, 128>}, {pipeline_mode = #tpu.pipeline_mode<synchronous>, transform_indices = @transform_8, window_bounds = array<i64: 1, 128>}, {pipeline_mode = #tpu.pipeline_mode<synchronous>, transform_indices = @transform_9, window_bounds = array<i64: 1, 128>}, {pipeline_mode = #tpu.pipeline_mode<synchronous>, transform_indices = @transform_10, window_bounds = array<i64: 128, 128>}, {pipeline_mode = #tpu.pipeline_mode<synchronous>, transform_indices = @transform_11, window_bounds = array<i64: 1, 128>}, {pipeline_mode = #tpu.pipeline_mode<synchronous>, transform_indices = @transform_12, window_bounds = array<i64: 128, 128>}, {pipeline_mode = #tpu.pipeline_mode<synchronous>, transform_indices = @transform_13, window_bounds = array<i64: 1, 128>}, {transform_indices = @transform_14, window_bounds = array<i64: 4, 16, 128>}]} {
    %c0 = arith.constant 0 : index
    %c0_0 = arith.constant 0 : index
    %c0_1 = arith.constant 0 : index
    %0 = vector.load %arg1[%c0, %c0_0, %c0_1] : memref<4x16x128xf32, #tpu.memory_space<vmem>>, vector<4x16x128xf32>
    %1 = vector.shape_cast %0 : vector<4x16x128xf32> to vector<64x128xf32>
    %cst = arith.constant dense<0.000000e+00> : vector<64xf32>
    %2 = vector.multi_reduction <add>, %1, %cst [1] : vector<64x128xf32> to vector<64xf32>
    %3 = vector.shape_cast %2 : vector<64xf32> to vector<64x1xf32>
    %cst_2 = arith.constant 1.280000e+02 : f32
    %4 = vector.broadcast %cst_2 : f32 to vector<64x1xf32>
    %5 = arith.divf %3, %4 : vector<64x1xf32>
    %6 = vector.broadcast %5 : vector<64x1xf32> to vector<64x128xf32>
    %7 = arith.subf %1, %6 : vector<64x128xf32>
    %8 = arith.mulf %7, %7 : vector<64x128xf32>
    %cst_3 = arith.constant dense<0.000000e+00> : vector<64xf32>
    %9 = vector.multi_reduction <add>, %8, %cst_3 [1] : vector<64x128xf32> to vector<64xf32>
    %10 = vector.shape_cast %9 : vector<64xf32> to vector<64x1xf32>
    %cst_4 = arith.constant 1.280000e+02 : f32
    %11 = vector.broadcast %cst_4 : f32 to vector<64x1xf32>
    %12 = arith.divf %10, %11 : vector<64x1xf32>
    %cst_5 = arith.constant 9.99999974E-6 : f32
    %13 = vector.broadcast %cst_5 : f32 to vector<64x1xf32>
    %14 = arith.addf %12, %13 : vector<64x1xf32>
    %15 = math.rsqrt %14 : vector<64x1xf32>
    %16 = vector.broadcast %15 : vector<64x1xf32> to vector<64x128xf32>
    %17 = arith.mulf %7, %16 : vector<64x128xf32>
    %c0_6 = arith.constant 0 : index
    %c0_7 = arith.constant 0 : index
    %18 = vector.load %arg3[%c0_6, %c0_7] : memref<1x128xf32, #tpu.memory_space<vmem>>, vector<1x128xf32>
    %19 = vector.broadcast %18 : vector<1x128xf32> to vector<64x128xf32>
    %20 = arith.mulf %17, %19 : vector<64x128xf32>
    %c0_8 = arith.constant 0 : index
    %c0_9 = arith.constant 0 : index
    %21 = vector.load %arg4[%c0_8, %c0_9] : memref<1x128xf32, #tpu.memory_space<vmem>>, vector<1x128xf32>
    %22 = vector.broadcast %21 : vector<1x128xf32> to vector<64x128xf32>
    %23 = arith.addf %20, %22 : vector<64x128xf32>
    %c0_10 = arith.constant 0 : index
    %c0_11 = arith.constant 0 : index
    %24 = vector.load %arg5[%c0_10, %c0_11] : memref<128x384xf32, #tpu.memory_space<vmem>>, vector<128x384xf32>
    %cst_12 = arith.constant dense<0.000000e+00> : vector<64x384xf32>
    %25 = tpu.matmul %23, %24, %cst_12 {dimension_numbers = #tpu.dot_dimension_numbers<[1], [0], [0], [1], [0, 0, 1, 1], [], []>} : vector<64x128xf32>, vector<128x384xf32>, vector<64x384xf32> -> vector<64x384xf32>
    %c0_13 = arith.constant 0 : index
    %c0_14 = arith.constant 0 : index
    %26 = vector.load %arg6[%c0_13, %c0_14] : memref<1x384xf32, #tpu.memory_space<vmem>>, vector<1x384xf32>
    %27 = vector.broadcast %26 : vector<1x384xf32> to vector<64x384xf32>
    %28 = arith.addf %25, %27 : vector<64x384xf32>
    %29 = vector.extract_strided_slice %28 {offsets = [0, 0], sizes = [64, 128], strides = [1, 1]} : vector<64x384xf32> to vector<64x128xf32>
    %30 = vector.extract_strided_slice %28 {offsets = [0, 128], sizes = [64, 128], strides = [1, 1]} : vector<64x384xf32> to vector<64x128xf32>
    %31 = vector.extract_strided_slice %28 {offsets = [0, 256], sizes = [64, 128], strides = [1, 1]} : vector<64x384xf32> to vector<64x128xf32>
    %c0_15 = arith.constant 0 : index
    %c0_16 = arith.constant 0 : index
    %32 = vector.load %arg2[%c0_15, %c0_16] : memref<128x128xf32, #tpu.memory_space<vmem>>, vector<128x128xf32>
    %33 = vector.extract_strided_slice %29 {offsets = [0, 0], sizes = [16, 128], strides = [1, 1]} : vector<64x128xf32> to vector<16x128xf32>
    %34 = vector.extract_strided_slice %30 {offsets = [0, 0], sizes = [16, 128], strides = [1, 1]} : vector<64x128xf32> to vector<16x128xf32>
    %35 = vector.extract_strided_slice %31 {offsets = [0, 0], sizes = [16, 128], strides = [1, 1]} : vector<64x128xf32> to vector<16x128xf32>
    %36 = tpu.concatenate %33, %33, %33, %33, %33, %33, %33, %33 in 0 : vector<16x128xf32>, vector<16x128xf32>, vector<16x128xf32>, vector<16x128xf32>, vector<16x128xf32>, vector<16x128xf32>, vector<16x128xf32>, vector<16x128xf32> -> vector<128x128xf32>
    %37 = arith.mulf %36, %32 : vector<128x128xf32>
    %cst_17 = arith.constant dense<0.000000e+00> : vector<128x16xf32>
    %38 = tpu.matmul %37, %34, %cst_17 {dimension_numbers = #tpu.dot_dimension_numbers<[1], [1], [0], [0], [0, 0, 1, 0], [], []>} : vector<128x128xf32>, vector<16x128xf32>, vector<128x16xf32> -> vector<128x16xf32>
    %cst_18 = arith.constant dense<0xFF800000> : vector<128xf32>
    %39 = vector.multi_reduction <maximumf>, %38, %cst_18 [1] : vector<128x16xf32> to vector<128xf32>
    %40 = vector.shape_cast %39 : vector<128xf32> to vector<128x1xf32>
    %41 = vector.broadcast %40 : vector<128x1xf32> to vector<128x16xf32>
    %42 = arith.subf %38, %41 : vector<128x16xf32>
    %43 = math.exp %42 : vector<128x16xf32>
    %cst_19 = arith.constant dense<0.000000e+00> : vector<128xf32>
    %44 = vector.multi_reduction <add>, %43, %cst_19 [1] : vector<128x16xf32> to vector<128xf32>
    %45 = vector.shape_cast %44 : vector<128xf32> to vector<128x1xf32>
    %46 = vector.broadcast %45 : vector<128x1xf32> to vector<128x16xf32>
    %47 = arith.divf %43, %46 : vector<128x16xf32>
    %cst_20 = arith.constant dense<0.000000e+00> : vector<128x128xf32>
    %48 = tpu.matmul %47, %35, %cst_20 {dimension_numbers = #tpu.dot_dimension_numbers<[1], [0], [0], [1], [0, 0, 1, 1], [], []>} : vector<128x16xf32>, vector<16x128xf32>, vector<128x128xf32> -> vector<128x128xf32>
    %49 = arith.mulf %48, %32 : vector<128x128xf32>
    %50 = vector.extract_strided_slice %49 {offsets = [0, 0], sizes = [16, 128], strides = [1, 1]} : vector<128x128xf32> to vector<16x128xf32>
    %51 = vector.extract_strided_slice %49 {offsets = [16, 0], sizes = [16, 128], strides = [1, 1]} : vector<128x128xf32> to vector<16x128xf32>
    %52 = arith.addf %50, %51 : vector<16x128xf32>
    %53 = vector.extract_strided_slice %49 {offsets = [32, 0], sizes = [16, 128], strides = [1, 1]} : vector<128x128xf32> to vector<16x128xf32>
    %54 = arith.addf %52, %53 : vector<16x128xf32>
    %55 = vector.extract_strided_slice %49 {offsets = [48, 0], sizes = [16, 128], strides = [1, 1]} : vector<128x128xf32> to vector<16x128xf32>
    %56 = arith.addf %54, %55 : vector<16x128xf32>
    %57 = vector.extract_strided_slice %49 {offsets = [64, 0], sizes = [16, 128], strides = [1, 1]} : vector<128x128xf32> to vector<16x128xf32>
    %58 = arith.addf %56, %57 : vector<16x128xf32>
    %59 = vector.extract_strided_slice %49 {offsets = [80, 0], sizes = [16, 128], strides = [1, 1]} : vector<128x128xf32> to vector<16x128xf32>
    %60 = arith.addf %58, %59 : vector<16x128xf32>
    %61 = vector.extract_strided_slice %49 {offsets = [96, 0], sizes = [16, 128], strides = [1, 1]} : vector<128x128xf32> to vector<16x128xf32>
    %62 = arith.addf %60, %61 : vector<16x128xf32>
    %63 = vector.extract_strided_slice %49 {offsets = [112, 0], sizes = [16, 128], strides = [1, 1]} : vector<128x128xf32> to vector<16x128xf32>
    %64 = arith.addf %62, %63 : vector<16x128xf32>
    %65 = vector.extract_strided_slice %29 {offsets = [16, 0], sizes = [16, 128], strides = [1, 1]} : vector<64x128xf32> to vector<16x128xf32>
    %66 = vector.extract_strided_slice %30 {offsets = [16, 0], sizes = [16, 128], strides = [1, 1]} : vector<64x128xf32> to vector<16x128xf32>
    %67 = vector.extract_strided_slice %31 {offsets = [16, 0], sizes = [16, 128], strides = [1, 1]} : vector<64x128xf32> to vector<16x128xf32>
    %68 = tpu.concatenate %65, %65, %65, %65, %65, %65, %65, %65 in 0 : vector<16x128xf32>, vector<16x128xf32>, vector<16x128xf32>, vector<16x128xf32>, vector<16x128xf32>, vector<16x128xf32>, vector<16x128xf32>, vector<16x128xf32> -> vector<128x128xf32>
    %69 = arith.mulf %68, %32 : vector<128x128xf32>
    %cst_21 = arith.constant dense<0.000000e+00> : vector<128x16xf32>
    %70 = tpu.matmul %69, %66, %cst_21 {dimension_numbers = #tpu.dot_dimension_numbers<[1], [1], [0], [0], [0, 0, 1, 0], [], []>} : vector<128x128xf32>, vector<16x128xf32>, vector<128x16xf32> -> vector<128x16xf32>
    %cst_22 = arith.constant dense<0xFF800000> : vector<128xf32>
    %71 = vector.multi_reduction <maximumf>, %70, %cst_22 [1] : vector<128x16xf32> to vector<128xf32>
    %72 = vector.shape_cast %71 : vector<128xf32> to vector<128x1xf32>
    %73 = vector.broadcast %72 : vector<128x1xf32> to vector<128x16xf32>
    %74 = arith.subf %70, %73 : vector<128x16xf32>
    %75 = math.exp %74 : vector<128x16xf32>
    %cst_23 = arith.constant dense<0.000000e+00> : vector<128xf32>
    %76 = vector.multi_reduction <add>, %75, %cst_23 [1] : vector<128x16xf32> to vector<128xf32>
    %77 = vector.shape_cast %76 : vector<128xf32> to vector<128x1xf32>
    %78 = vector.broadcast %77 : vector<128x1xf32> to vector<128x16xf32>
    %79 = arith.divf %75, %78 : vector<128x16xf32>
    %cst_24 = arith.constant dense<0.000000e+00> : vector<128x128xf32>
    %80 = tpu.matmul %79, %67, %cst_24 {dimension_numbers = #tpu.dot_dimension_numbers<[1], [0], [0], [1], [0, 0, 1, 1], [], []>} : vector<128x16xf32>, vector<16x128xf32>, vector<128x128xf32> -> vector<128x128xf32>
    %81 = arith.mulf %80, %32 : vector<128x128xf32>
    %82 = vector.extract_strided_slice %81 {offsets = [0, 0], sizes = [16, 128], strides = [1, 1]} : vector<128x128xf32> to vector<16x128xf32>
    %83 = vector.extract_strided_slice %81 {offsets = [16, 0], sizes = [16, 128], strides = [1, 1]} : vector<128x128xf32> to vector<16x128xf32>
    %84 = arith.addf %82, %83 : vector<16x128xf32>
    %85 = vector.extract_strided_slice %81 {offsets = [32, 0], sizes = [16, 128], strides = [1, 1]} : vector<128x128xf32> to vector<16x128xf32>
    %86 = arith.addf %84, %85 : vector<16x128xf32>
    %87 = vector.extract_strided_slice %81 {offsets = [48, 0], sizes = [16, 128], strides = [1, 1]} : vector<128x128xf32> to vector<16x128xf32>
    %88 = arith.addf %86, %87 : vector<16x128xf32>
    %89 = vector.extract_strided_slice %81 {offsets = [64, 0], sizes = [16, 128], strides = [1, 1]} : vector<128x128xf32> to vector<16x128xf32>
    %90 = arith.addf %88, %89 : vector<16x128xf32>
    %91 = vector.extract_strided_slice %81 {offsets = [80, 0], sizes = [16, 128], strides = [1, 1]} : vector<128x128xf32> to vector<16x128xf32>
    %92 = arith.addf %90, %91 : vector<16x128xf32>
    %93 = vector.extract_strided_slice %81 {offsets = [96, 0], sizes = [16, 128], strides = [1, 1]} : vector<128x128xf32> to vector<16x128xf32>
    %94 = arith.addf %92, %93 : vector<16x128xf32>
    %95 = vector.extract_strided_slice %81 {offsets = [112, 0], sizes = [16, 128], strides = [1, 1]} : vector<128x128xf32> to vector<16x128xf32>
    %96 = arith.addf %94, %95 : vector<16x128xf32>
    %97 = vector.extract_strided_slice %29 {offsets = [32, 0], sizes = [16, 128], strides = [1, 1]} : vector<64x128xf32> to vector<16x128xf32>
    %98 = vector.extract_strided_slice %30 {offsets = [32, 0], sizes = [16, 128], strides = [1, 1]} : vector<64x128xf32> to vector<16x128xf32>
    %99 = vector.extract_strided_slice %31 {offsets = [32, 0], sizes = [16, 128], strides = [1, 1]} : vector<64x128xf32> to vector<16x128xf32>
    %100 = tpu.concatenate %97, %97, %97, %97, %97, %97, %97, %97 in 0 : vector<16x128xf32>, vector<16x128xf32>, vector<16x128xf32>, vector<16x128xf32>, vector<16x128xf32>, vector<16x128xf32>, vector<16x128xf32>, vector<16x128xf32> -> vector<128x128xf32>
    %101 = arith.mulf %100, %32 : vector<128x128xf32>
    %cst_25 = arith.constant dense<0.000000e+00> : vector<128x16xf32>
    %102 = tpu.matmul %101, %98, %cst_25 {dimension_numbers = #tpu.dot_dimension_numbers<[1], [1], [0], [0], [0, 0, 1, 0], [], []>} : vector<128x128xf32>, vector<16x128xf32>, vector<128x16xf32> -> vector<128x16xf32>
    %cst_26 = arith.constant dense<0xFF800000> : vector<128xf32>
    %103 = vector.multi_reduction <maximumf>, %102, %cst_26 [1] : vector<128x16xf32> to vector<128xf32>
    %104 = vector.shape_cast %103 : vector<128xf32> to vector<128x1xf32>
    %105 = vector.broadcast %104 : vector<128x1xf32> to vector<128x16xf32>
    %106 = arith.subf %102, %105 : vector<128x16xf32>
    %107 = math.exp %106 : vector<128x16xf32>
    %cst_27 = arith.constant dense<0.000000e+00> : vector<128xf32>
    %108 = vector.multi_reduction <add>, %107, %cst_27 [1] : vector<128x16xf32> to vector<128xf32>
    %109 = vector.shape_cast %108 : vector<128xf32> to vector<128x1xf32>
    %110 = vector.broadcast %109 : vector<128x1xf32> to vector<128x16xf32>
    %111 = arith.divf %107, %110 : vector<128x16xf32>
    %cst_28 = arith.constant dense<0.000000e+00> : vector<128x128xf32>
    %112 = tpu.matmul %111, %99, %cst_28 {dimension_numbers = #tpu.dot_dimension_numbers<[1], [0], [0], [1], [0, 0, 1, 1], [], []>} : vector<128x16xf32>, vector<16x128xf32>, vector<128x128xf32> -> vector<128x128xf32>
    %113 = arith.mulf %112, %32 : vector<128x128xf32>
    %114 = vector.extract_strided_slice %113 {offsets = [0, 0], sizes = [16, 128], strides = [1, 1]} : vector<128x128xf32> to vector<16x128xf32>
    %115 = vector.extract_strided_slice %113 {offsets = [16, 0], sizes = [16, 128], strides = [1, 1]} : vector<128x128xf32> to vector<16x128xf32>
    %116 = arith.addf %114, %115 : vector<16x128xf32>
    %117 = vector.extract_strided_slice %113 {offsets = [32, 0], sizes = [16, 128], strides = [1, 1]} : vector<128x128xf32> to vector<16x128xf32>
    %118 = arith.addf %116, %117 : vector<16x128xf32>
    %119 = vector.extract_strided_slice %113 {offsets = [48, 0], sizes = [16, 128], strides = [1, 1]} : vector<128x128xf32> to vector<16x128xf32>
    %120 = arith.addf %118, %119 : vector<16x128xf32>
    %121 = vector.extract_strided_slice %113 {offsets = [64, 0], sizes = [16, 128], strides = [1, 1]} : vector<128x128xf32> to vector<16x128xf32>
    %122 = arith.addf %120, %121 : vector<16x128xf32>
    %123 = vector.extract_strided_slice %113 {offsets = [80, 0], sizes = [16, 128], strides = [1, 1]} : vector<128x128xf32> to vector<16x128xf32>
    %124 = arith.addf %122, %123 : vector<16x128xf32>
    %125 = vector.extract_strided_slice %113 {offsets = [96, 0], sizes = [16, 128], strides = [1, 1]} : vector<128x128xf32> to vector<16x128xf32>
    %126 = arith.addf %124, %125 : vector<16x128xf32>
    %127 = vector.extract_strided_slice %113 {offsets = [112, 0], sizes = [16, 128], strides = [1, 1]} : vector<128x128xf32> to vector<16x128xf32>
    %128 = arith.addf %126, %127 : vector<16x128xf32>
    %129 = vector.extract_strided_slice %29 {offsets = [48, 0], sizes = [16, 128], strides = [1, 1]} : vector<64x128xf32> to vector<16x128xf32>
    %130 = vector.extract_strided_slice %30 {offsets = [48, 0], sizes = [16, 128], strides = [1, 1]} : vector<64x128xf32> to vector<16x128xf32>
    %131 = vector.extract_strided_slice %31 {offsets = [48, 0], sizes = [16, 128], strides = [1, 1]} : vector<64x128xf32> to vector<16x128xf32>
    %132 = tpu.concatenate %129, %129, %129, %129, %129, %129, %129, %129 in 0 : vector<16x128xf32>, vector<16x128xf32>, vector<16x128xf32>, vector<16x128xf32>, vector<16x128xf32>, vector<16x128xf32>, vector<16x128xf32>, vector<16x128xf32> -> vector<128x128xf32>
    %133 = arith.mulf %132, %32 : vector<128x128xf32>
    %cst_29 = arith.constant dense<0.000000e+00> : vector<128x16xf32>
    %134 = tpu.matmul %133, %130, %cst_29 {dimension_numbers = #tpu.dot_dimension_numbers<[1], [1], [0], [0], [0, 0, 1, 0], [], []>} : vector<128x128xf32>, vector<16x128xf32>, vector<128x16xf32> -> vector<128x16xf32>
    %cst_30 = arith.constant dense<0xFF800000> : vector<128xf32>
    %135 = vector.multi_reduction <maximumf>, %134, %cst_30 [1] : vector<128x16xf32> to vector<128xf32>
    %136 = vector.shape_cast %135 : vector<128xf32> to vector<128x1xf32>
    %137 = vector.broadcast %136 : vector<128x1xf32> to vector<128x16xf32>
    %138 = arith.subf %134, %137 : vector<128x16xf32>
    %139 = math.exp %138 : vector<128x16xf32>
    %cst_31 = arith.constant dense<0.000000e+00> : vector<128xf32>
    %140 = vector.multi_reduction <add>, %139, %cst_31 [1] : vector<128x16xf32> to vector<128xf32>
    %141 = vector.shape_cast %140 : vector<128xf32> to vector<128x1xf32>
    %142 = vector.broadcast %141 : vector<128x1xf32> to vector<128x16xf32>
    %143 = arith.divf %139, %142 : vector<128x16xf32>
    %cst_32 = arith.constant dense<0.000000e+00> : vector<128x128xf32>
    %144 = tpu.matmul %143, %131, %cst_32 {dimension_numbers = #tpu.dot_dimension_numbers<[1], [0], [0], [1], [0, 0, 1, 1], [], []>} : vector<128x16xf32>, vector<16x128xf32>, vector<128x128xf32> -> vector<128x128xf32>
    %145 = arith.mulf %144, %32 : vector<128x128xf32>
    %146 = vector.extract_strided_slice %145 {offsets = [0, 0], sizes = [16, 128], strides = [1, 1]} : vector<128x128xf32> to vector<16x128xf32>
    %147 = vector.extract_strided_slice %145 {offsets = [16, 0], sizes = [16, 128], strides = [1, 1]} : vector<128x128xf32> to vector<16x128xf32>
    %148 = arith.addf %146, %147 : vector<16x128xf32>
    %149 = vector.extract_strided_slice %145 {offsets = [32, 0], sizes = [16, 128], strides = [1, 1]} : vector<128x128xf32> to vector<16x128xf32>
    %150 = arith.addf %148, %149 : vector<16x128xf32>
    %151 = vector.extract_strided_slice %145 {offsets = [48, 0], sizes = [16, 128], strides = [1, 1]} : vector<128x128xf32> to vector<16x128xf32>
    %152 = arith.addf %150, %151 : vector<16x128xf32>
    %153 = vector.extract_strided_slice %145 {offsets = [64, 0], sizes = [16, 128], strides = [1, 1]} : vector<128x128xf32> to vector<16x128xf32>
    %154 = arith.addf %152, %153 : vector<16x128xf32>
    %155 = vector.extract_strided_slice %145 {offsets = [80, 0], sizes = [16, 128], strides = [1, 1]} : vector<128x128xf32> to vector<16x128xf32>
    %156 = arith.addf %154, %155 : vector<16x128xf32>
    %157 = vector.extract_strided_slice %145 {offsets = [96, 0], sizes = [16, 128], strides = [1, 1]} : vector<128x128xf32> to vector<16x128xf32>
    %158 = arith.addf %156, %157 : vector<16x128xf32>
    %159 = vector.extract_strided_slice %145 {offsets = [112, 0], sizes = [16, 128], strides = [1, 1]} : vector<128x128xf32> to vector<16x128xf32>
    %160 = arith.addf %158, %159 : vector<16x128xf32>
    %161 = tpu.concatenate %64, %96, %128, %160 in 0 : vector<16x128xf32>, vector<16x128xf32>, vector<16x128xf32>, vector<16x128xf32> -> vector<64x128xf32>
    %c0_33 = arith.constant 0 : index
    %c0_34 = arith.constant 0 : index
    %162 = vector.load %arg7[%c0_33, %c0_34] : memref<128x128xf32, #tpu.memory_space<vmem>>, vector<128x128xf32>
    %cst_35 = arith.constant dense<0.000000e+00> : vector<64x128xf32>
    %163 = tpu.matmul %161, %162, %cst_35 {dimension_numbers = #tpu.dot_dimension_numbers<[1], [0], [0], [1], [0, 0, 1, 1], [], []>} : vector<64x128xf32>, vector<128x128xf32>, vector<64x128xf32> -> vector<64x128xf32>
    %c0_36 = arith.constant 0 : index
    %c0_37 = arith.constant 0 : index
    %164 = vector.load %arg8[%c0_36, %c0_37] : memref<1x128xf32, #tpu.memory_space<vmem>>, vector<1x128xf32>
    %165 = vector.broadcast %164 : vector<1x128xf32> to vector<64x128xf32>
    %166 = arith.addf %163, %165 : vector<64x128xf32>
    %167 = arith.addf %166, %1 : vector<64x128xf32>
    %cst_38 = arith.constant dense<0.000000e+00> : vector<64xf32>
    %168 = vector.multi_reduction <add>, %167, %cst_38 [1] : vector<64x128xf32> to vector<64xf32>
    %169 = vector.shape_cast %168 : vector<64xf32> to vector<64x1xf32>
    %cst_39 = arith.constant 1.280000e+02 : f32
    %170 = vector.broadcast %cst_39 : f32 to vector<64x1xf32>
    %171 = arith.divf %169, %170 : vector<64x1xf32>
    %172 = vector.broadcast %171 : vector<64x1xf32> to vector<64x128xf32>
    %173 = arith.subf %167, %172 : vector<64x128xf32>
    %174 = arith.mulf %173, %173 : vector<64x128xf32>
    %cst_40 = arith.constant dense<0.000000e+00> : vector<64xf32>
    %175 = vector.multi_reduction <add>, %174, %cst_40 [1] : vector<64x128xf32> to vector<64xf32>
    %176 = vector.shape_cast %175 : vector<64xf32> to vector<64x1xf32>
    %cst_41 = arith.constant 1.280000e+02 : f32
    %177 = vector.broadcast %cst_41 : f32 to vector<64x1xf32>
    %178 = arith.divf %176, %177 : vector<64x1xf32>
    %cst_42 = arith.constant 9.99999974E-6 : f32
    %179 = vector.broadcast %cst_42 : f32 to vector<64x1xf32>
    %180 = arith.addf %178, %179 : vector<64x1xf32>
    %181 = math.rsqrt %180 : vector<64x1xf32>
    %182 = vector.broadcast %181 : vector<64x1xf32> to vector<64x128xf32>
    %183 = arith.mulf %173, %182 : vector<64x128xf32>
    %c0_43 = arith.constant 0 : index
    %c0_44 = arith.constant 0 : index
    %184 = vector.load %arg9[%c0_43, %c0_44] : memref<1x128xf32, #tpu.memory_space<vmem>>, vector<1x128xf32>
    %185 = vector.broadcast %184 : vector<1x128xf32> to vector<64x128xf32>
    %186 = arith.mulf %183, %185 : vector<64x128xf32>
    %c0_45 = arith.constant 0 : index
    %c0_46 = arith.constant 0 : index
    %187 = vector.load %arg10[%c0_45, %c0_46] : memref<1x128xf32, #tpu.memory_space<vmem>>, vector<1x128xf32>
    %188 = vector.broadcast %187 : vector<1x128xf32> to vector<64x128xf32>
    %189 = arith.addf %186, %188 : vector<64x128xf32>
    %c0_47 = arith.constant 0 : index
    %c0_48 = arith.constant 0 : index
    %190 = vector.load %arg11[%c0_47, %c0_48] : memref<128x128xf32, #tpu.memory_space<vmem>>, vector<128x128xf32>
    %cst_49 = arith.constant dense<0.000000e+00> : vector<64x128xf32>
    %191 = tpu.matmul %189, %190, %cst_49 {dimension_numbers = #tpu.dot_dimension_numbers<[1], [0], [0], [1], [0, 0, 1, 1], [], []>} : vector<64x128xf32>, vector<128x128xf32>, vector<64x128xf32> -> vector<64x128xf32>
    %c0_50 = arith.constant 0 : index
    %c0_51 = arith.constant 0 : index
    %192 = vector.load %arg12[%c0_50, %c0_51] : memref<1x128xf32, #tpu.memory_space<vmem>>, vector<1x128xf32>
    %193 = vector.broadcast %192 : vector<1x128xf32> to vector<64x128xf32>
    %194 = arith.addf %191, %193 : vector<64x128xf32>
    %cst_52 = arith.constant 5.000000e-01 : f32
    %195 = vector.broadcast %cst_52 : f32 to vector<64x128xf32>
    %196 = arith.mulf %195, %194 : vector<64x128xf32>
    %cst_53 = arith.constant 4.471500e-02 : f32
    %197 = vector.broadcast %cst_53 : f32 to vector<64x128xf32>
    %198 = arith.mulf %197, %194 : vector<64x128xf32>
    %199 = arith.mulf %198, %194 : vector<64x128xf32>
    %200 = arith.mulf %199, %194 : vector<64x128xf32>
    %201 = arith.addf %194, %200 : vector<64x128xf32>
    %cst_54 = arith.constant 0.797884583 : f32
    %202 = vector.broadcast %cst_54 : f32 to vector<64x128xf32>
    %203 = arith.mulf %202, %201 : vector<64x128xf32>
    %204 = math.tanh %203 : vector<64x128xf32>
    %cst_55 = arith.constant 1.000000e+00 : f32
    %205 = vector.broadcast %cst_55 : f32 to vector<64x128xf32>
    %206 = arith.addf %205, %204 : vector<64x128xf32>
    %207 = arith.mulf %196, %206 : vector<64x128xf32>
    %c0_56 = arith.constant 0 : index
    %c0_57 = arith.constant 0 : index
    %208 = vector.load %arg13[%c0_56, %c0_57] : memref<128x128xf32, #tpu.memory_space<vmem>>, vector<128x128xf32>
    %cst_58 = arith.constant dense<0.000000e+00> : vector<64x128xf32>
    %209 = tpu.matmul %207, %208, %cst_58 {dimension_numbers = #tpu.dot_dimension_numbers<[1], [0], [0], [1], [0, 0, 1, 1], [], []>} : vector<64x128xf32>, vector<128x128xf32>, vector<64x128xf32> -> vector<64x128xf32>
    %c0_59 = arith.constant 0 : index
    %c0_60 = arith.constant 0 : index
    %210 = vector.load %arg14[%c0_59, %c0_60] : memref<1x128xf32, #tpu.memory_space<vmem>>, vector<1x128xf32>
    %211 = vector.broadcast %210 : vector<1x128xf32> to vector<64x128xf32>
    %212 = arith.addf %209, %211 : vector<64x128xf32>
    %213 = arith.addf %212, %167 : vector<64x128xf32>
    %214 = vector.shape_cast %213 : vector<64x128xf32> to vector<4x16x128xf32>
    %c0_61 = arith.constant 0 : index
    %c0_62 = arith.constant 0 : index
    %c0_63 = arith.constant 0 : index
    %215 = vector.load %arg15[%c0_61, %c0_62, %c0_63] : memref<4x16x128xf32, #tpu.memory_space<vmem>>, vector<4x16x128xf32>
    tpu.vector_store %arg15[%c0_61, %c0_62, %c0_63], %214 {strides = array<i32>} : memref<4x16x128xf32, #tpu.memory_space<vmem>>, vector<4x16x128xf32>,
    return
  }
  func.func @transform_0(%arg0: i32) -> (i32, i32, i32) {
    %c0_i32 = arith.constant 0 : i32
    %c0_i32_0 = arith.constant 0 : i32
    %c0_i32_1 = arith.constant 0 : i32
    return %arg0, %c0_i32, %c0_i32_0 : i32, i32, i32
  }
  func.func @transform_1(%arg0: i32) -> (i32, i32) {
    %c0_i32 = arith.constant 0 : i32
    %c0_i32_0 = arith.constant 0 : i32
    %c0_i32_1 = arith.constant 0 : i32
    return %c0_i32, %c0_i32_0 : i32, i32
  }
  func.func @transform_2(%arg0: i32) -> (i32, i32) {
    %c0_i32 = arith.constant 0 : i32
    %c0_i32_0 = arith.constant 0 : i32
    %c0_i32_1 = arith.constant 0 : i32
    return %c0_i32, %c0_i32_0 : i32, i32
  }
  func.func @transform_3(%arg0: i32) -> (i32, i32) {
    %c0_i32 = arith.constant 0 : i32
    %c0_i32_0 = arith.constant 0 : i32
    %c0_i32_1 = arith.constant 0 : i32
    return %c0_i32, %c0_i32_0 : i32, i32
  }
  func.func @transform_4(%arg0: i32) -> (i32, i32) {
    %c0_i32 = arith.constant 0 : i32
    %c0_i32_0 = arith.constant 0 : i32
    %c0_i32_1 = arith.constant 0 : i32
    return %c0_i32, %c0_i32_0 : i32, i32
  }
  func.func @transform_5(%arg0: i32) -> (i32, i32) {
    %c0_i32 = arith.constant 0 : i32
    %c0_i32_0 = arith.constant 0 : i32
    %c0_i32_1 = arith.constant 0 : i32
    return %c0_i32, %c0_i32_0 : i32, i32
  }
  func.func @transform_6(%arg0: i32) -> (i32, i32) {
    %c0_i32 = arith.constant 0 : i32
    %c0_i32_0 = arith.constant 0 : i32
    %c0_i32_1 = arith.constant 0 : i32
    return %c0_i32, %c0_i32_0 : i32, i32
  }
  func.func @transform_7(%arg0: i32) -> (i32, i32) {
    %c0_i32 = arith.constant 0 : i32
    %c0_i32_0 = arith.constant 0 : i32
    %c0_i32_1 = arith.constant 0 : i32
    return %c0_i32, %c0_i32_0 : i32, i32
  }
  func.func @transform_8(%arg0: i32) -> (i32, i32) {
    %c0_i32 = arith.constant 0 : i32
    %c0_i32_0 = arith.constant 0 : i32
    %c0_i32_1 = arith.constant 0 : i32
    return %c0_i32, %c0_i32_0 : i32, i32
  }
  func.func @transform_9(%arg0: i32) -> (i32, i32) {
    %c0_i32 = arith.constant 0 : i32
    %c0_i32_0 = arith.constant 0 : i32
    %c0_i32_1 = arith.constant 0 : i32
    return %c0_i32, %c0_i32_0 : i32, i32
  }
  func.func @transform_10(%arg0: i32) -> (i32, i32) {
    %c0_i32 = arith.constant 0 : i32
    %c0_i32_0 = arith.constant 0 : i32
    %c0_i32_1 = arith.constant 0 : i32
    return %c0_i32, %c0_i32_0 : i32, i32
  }
  func.func @transform_11(%arg0: i32) -> (i32, i32) {
    %c0_i32 = arith.constant 0 : i32
    %c0_i32_0 = arith.constant 0 : i32
    %c0_i32_1 = arith.constant 0 : i32
    return %c0_i32, %c0_i32_0 : i32, i32
  }
  func.func @transform_12(%arg0: i32) -> (i32, i32) {
    %c0_i32 = arith.constant 0 : i32
    %c0_i32_0 = arith.constant 0 : i32
    %c0_i32_1 = arith.constant 0 : i32
    return %c0_i32, %c0_i32_0 : i32, i32
  }
  func.func @transform_13(%arg0: i32) -> (i32, i32) {
    %c0_i32 = arith.constant 0 : i32
    %c0_i32_0 = arith.constant 0 : i32
    %c0_i32_1 = arith.constant 0 : i32
    return %c0_i32, %c0_i32_0 : i32, i32
  }
  func.func @transform_14(%arg0: i32) -> (i32, i32, i32) {
    %c0_i32 = arith.constant 0 : i32
    %c0_i32_0 = arith.constant 0 : i32
    %c0_i32_1 = arith.constant 0 : i32
    return %arg0, %c0_i32, %c0_i32_0 : i32, i32, i32
  }
}

</mosaic_0001>

<llo_original>
// kernel: tpu_custom_call.1
$region0: #{tpu_custom_call.1}
  #allocation0 [shape = 'u32[]', space=smem, size = 0x4, offset = 0x4, fixed_abs, tag = 'smem constant byte address 0x4 - core index']
  #allocation1 [shape = 'u32[72,128]{1,0:T(1,128)}', space=vmem, size = 0x9000, scoped, tag = 'internal scratch']
  %s0 = inlined_call_operand.hbm [shape: f32[8,16,128], index: 0, kind: input, shape index: {}]
  %s1 = inlined_call_operand.hbm [shape: f32[128,128], index: 1, kind: input, shape index: {}]
  %s2 = inlined_call_operand.vmem [shape: f32[1,128], index: 2, kind: input, shape index: {}]
  %s3 = inlined_call_operand.hbm [shape: f32[1,128], index: 3, kind: input, shape index: {}]
  %s4 = inlined_call_operand.hbm [shape: f32[128,384], index: 4, kind: input, shape index: {}]
  %s5 = inlined_call_operand.vmem [shape: f32[1,384], index: 5, kind: input, shape index: {}]
  %s6 = inlined_call_operand.hbm [shape: f32[128,128], index: 6, kind: input, shape index: {}]
  %s7 = inlined_call_operand.vmem [shape: f32[1,128], index: 7, kind: input, shape index: {}]
  %s8 = inlined_call_operand.vmem [shape: f32[1,128], index: 8, kind: input, shape index: {}]
  %s9 = inlined_call_operand.vmem [shape: f32[1,128], index: 9, kind: input, shape index: {}]
  %s10 = inlined_call_operand.hbm [shape: f32[128,128], index: 10, kind: input, shape index: {}]
  %s11 = inlined_call_operand.vmem [shape: f32[1,128], index: 11, kind: input, shape index: {}]
  %s12 = inlined_call_operand.hbm [shape: f32[128,128], index: 12, kind: input, shape index: {}]
  %s13 = inlined_call_operand.vmem [shape: f32[1,128], index: 13, kind: input, shape index: {}]
  %s14 = inlined_call_operand.hbm [shape: f32[8,16,128], index: 14, kind: output, shape index: {}]
  %s15 = sld [smem:[#allocation0]]
  $region117: #{tpu_custom_call.1} parent=0
    _
  %s17 = ssub.s32 1, %s15
  %s18 = scalar_select 0, %s17, %s15
  $region1: #{tpu_custom_call.1} parent=0
    #allocation2 [shape = 'u8[65536]{0}', space=vmem, size = 0x10000, scoped, tag = 'input window, operand 0']
    #allocation3 [shape = 's32[2]{0}', space=sflag, size = 0x8, scoped, tag = 'scoped memory for tpu_custom_call.1']
    #allocation4 [shape = 's32[2]{0}', space=sflag, size = 0x8, scoped, tag = 'scoped memory for tpu_custom_call.1']
    #allocation5 [shape = 'u8[65536]{0}', space=vmem, size = 0x10000, scoped, tag = 'input window, operand 1, single buffered']
    #allocation6 [shape = 's32[1]{0}', space=sflag, size = 0x4, scoped, tag = 'scoped memory for tpu_custom_call.1']
    #allocation7 [shape = 'u8[512]{0}', space=vmem, size = 0x400, scoped, tag = 'input window, operand 3, single buffered']
    #allocation8 [shape = 'u8[196608]{0}', space=vmem, size = 0x30000, scoped, tag = 'input window, operand 4, single buffered']
    #allocation9 [shape = 's32[1]{0}', space=sflag, size = 0x4, scoped, tag = 'scoped memory for tpu_custom_call.1']
    #allocation10 [shape = 'u8[65536]{0}', space=vmem, size = 0x10000, scoped, tag = 'input window, operand 6, single buffered']
    #allocation11 [shape = 'u8[65536]{0}', space=vmem, size = 0x10000, scoped, tag = 'input window, operand 10, single buffered']
    #allocation12 [shape = 's32[1]{0}', space=sflag, size = 0x4, scoped, tag = 'scoped memory for tpu_custom_call.1']
    #allocation13 [shape = 'u8[65536]{0}', space=vmem, size = 0x10000, scoped, tag = 'input window, operand 12, single buffered']
    #allocation14 [shape = 'u8[65536]{0}', space=vmem, size = 0x10000, scoped, tag = 'output window, operand 0']
    %19 = vsyncpa [#allocation3], 0
    %s20 = scalar_lea.sflag [#allocation3], 1
    %21 = vsyncpa %s20, 0
    %22 = vsyncpa [#allocation6], 0
    %23 = vsyncpa [#allocation9], 0
    %24 = vsyncpa [#allocation12], 0
    %25 = vsyncpa [#allocation4], 0
    %s26 = scalar_lea.sflag [#allocation4], 1
    %27 = vsyncpa %s26, 0
    loop: start=0, step=1, limit=4
    $region2: #{tpu_custom_call.1} parent=1 // loop_pre_header
      _
    $region3: #{tpu_custom_call.1} parent=1 // loop_header
      %s29 = sphi 0, %s33
      %p30 = scmp.ge.s32.totalorder %s29, 4
      %s39 = sphi 0, %s41
      %s42 = sphi 0, %s39
      %s43 = sphi 0, %s42
      %s59 = sphi 0, %s43
      %s63 = sphi 0, %s63
      %s65 = sphi 0, %s63
      %s66 = sphi 0, %s65
      %s80 = sphi 0, %s66
      %s84 = sphi 0, %s84
      %s86 = sphi 0, %s84
      %s87 = sphi 0, %s86
      %s101 = sphi 0, %s87
      %s105 = sphi 0, %s105
      %s107 = sphi 0, %s105
      %s108 = sphi 0, %s107
      %s122 = sphi 0, %s108
      %s126 = sphi 0, %s126
      %s128 = sphi 0, %s126
      %s129 = sphi 0, %s128
      %s143 = sphi 0, %s129
      %s147 = sphi 0, %s147
      %s149 = sphi 0, %s147
      %s150 = sphi 0, %s149
      %s164 = sphi 0, %s150
      %s168 = sphi 0, %s168
      %s170 = sphi 0, %s168
      %s171 = sphi 0, %s170
      %s185 = sphi 0, %s171
      %s189 = sphi 0, %s189
      %s191 = sphi 0, %s189
      %s192 = sphi 0, %s191
      %s206 = sphi 0, %s192
      %s210 = sphi 0, %s210
      %s212 = sphi 0, %s210
      %s213 = sphi 0, %s212
      %s227 = sphi 0, %s213
      %s231 = sphi 0, %s231
      %s233 = sphi 0, %s231
      %s234 = sphi 0, %s233
      %s248 = sphi 0, %s234
      %s252 = sphi 0, %s252
      %s254 = sphi 0, %s252
      %s255 = sphi 0, %s254
      %s269 = sphi 0, %s255
      %s273 = sphi 0, %s273
      %s275 = sphi 0, %s273
      %s276 = sphi 0, %s275
      %s290 = sphi 0, %s276
      %s294 = sphi 0, %s294
      %s296 = sphi 0, %s294
      %s297 = sphi 0, %s296
      %s311 = sphi 0, %s297
      %s315 = sphi 0, %s315
      %s317 = sphi 0, %s315
      %s318 = sphi 0, %s317
      %s332 = sphi 0, %s318
      %s338 = sphi 0, %s340
      %s341 = sphi 0, %s338
      %s342 = sphi 0, %s341
      %s358 = sphi 0, %s342
    $region4: #{tpu_custom_call.1} parent=1 // loop_header_branch
      %32 = sbr.rel (%p30) target = $region8
    $region5: #{tpu_custom_call.1} parent=1 // loop_body
      %s34 = ssub.s32 %s29, 1
      %s35 = ssub.s32 %s29, 2
      %s36 = sadd.s32 %s29, 1
      %s37 = ssub.s32 %s29, %s36
      %p38 = scmp.eq.s32.totalorder %s37, 0
      %s40 = sadd.s32 %s39, 1
      %s41 = scalar_select %p38, %s39, %s40
      %p44 = pneg %p38
      %p45 = scmp.eq.s32.totalorder %s29, 1
      %p46 = por %p44, %p45
      %p47 = scmp.ne.s32.totalorder %s39, %s42
      %p48 = scmp.eq.s32.totalorder %s29, 0
      %p49 = por %p47, %p48
      %p50 = scmp.ne.s32.totalorder %s39, %s42
      %p51 = scmp.eq.s32.totalorder %s34, 1
      %p52 = por %p50, %p51
      %p53 = scmp.ne.s32.totalorder %s42, %s43
      %p54 = scmp.eq.s32.totalorder %s34, 0
      %p55 = por %p53, %p54
      %p56 = scmp.ne.s32.totalorder %s42, %s43
      %p57 = scmp.eq.s32.totalorder %s35, 1
      %p58 = por %p56, %p57
      %p60 = scmp.ne.s32.totalorder %s43, %s59
      %p61 = scmp.eq.s32.totalorder %s35, 0
      %p62 = por %p60, %p61
      %s64 = sadd.s32 %s63, 1
      %p67 = scmp.eq.s32.totalorder %s29, 1
      %p68 = scmp.ne.s32.totalorder %s63, %s65
      %p69 = scmp.eq.s32.totalorder %s29, 0
      %p70 = por %p68, %p69
      %p71 = scmp.ne.s32.totalorder %s63, %s65
      %p72 = scmp.eq.s32.totalorder %s34, 1
      %p73 = por %p71, %p72
      %p74 = scmp.ne.s32.totalorder %s65, %s66
      %p75 = scmp.eq.s32.totalorder %s34, 0
      %p76 = por %p74, %p75
      %p77 = scmp.ne.s32.totalorder %s65, %s66
      %p78 = scmp.eq.s32.totalorder %s35, 1
      %p79 = por %p77, %p78
      %p81 = scmp.ne.s32.totalorder %s66, %s80
      %p82 = scmp.eq.s32.totalorder %s35, 0
      %p83 = por %p81, %p82
      %s85 = sadd.s32 %s84, 1
      %p88 = scmp.eq.s32.totalorder %s29, 1
      %p89 = scmp.ne.s32.totalorder %s84, %s86
      %p90 = scmp.eq.s32.totalorder %s29, 0
      %p91 = por %p89, %p90
      %p92 = scmp.ne.s32.totalorder %s84, %s86
      %p93 = scmp.eq.s32.totalorder %s34, 1
      %p94 = por %p92, %p93
      %p95 = scmp.ne.s32.totalorder %s86, %s87
      %p96 = scmp.eq.s32.totalorder %s34, 0
      %p97 = por %p95, %p96
      %p98 = scmp.ne.s32.totalorder %s86, %s87
      %p99 = scmp.eq.s32.totalorder %s35, 1
      %p100 = por %p98, %p99
      %p102 = scmp.ne.s32.totalorder %s87, %s101
      %p103 = scmp.eq.s32.totalorder %s35, 0
      %p104 = por %p102, %p103
      %s106 = sadd.s32 %s105, 1
      %p109 = scmp.eq.s32.totalorder %s29, 1
      %p110 = scmp.ne.s32.totalorder %s105, %s107
      %p111 = scmp.eq.s32.totalorder %s29, 0
      %p112 = por %p110, %p111
      %p113 = scmp.ne.s32.totalorder %s105, %s107
      %p114 = scmp.eq.s32.totalorder %s34, 1
      %p115 = por %p113, %p114
      %p116 = scmp.ne.s32.totalorder %s107, %s108
      %p117 = scmp.eq.s32.totalorder %s34, 0
      %p118 = por %p116, %p117
      %p119 = scmp.ne.s32.totalorder %s107, %s108
      %p120 = scmp.eq.s32.totalorder %s35, 1
      %p121 = por %p119, %p120
      %p123 = scmp.ne.s32.totalorder %s108, %s122
      %p124 = scmp.eq.s32.totalorder %s35, 0
      %p125 = por %p123, %p124
      %s127 = sadd.s32 %s126, 1
      %p130 = scmp.eq.s32.totalorder %s29, 1
      %p131 = scmp.ne.s32.totalorder %s126, %s128
      %p132 = scmp.eq.s32.totalorder %s29, 0
      %p133 = por %p131, %p132
      %p134 = scmp.ne.s32.totalorder %s126, %s128
      %p135 = scmp.eq.s32.totalorder %s34, 1
      %p136 = por %p134, %p135
      %p137 = scmp.ne.s32.totalorder %s128, %s129
      %p138 = scmp.eq.s32.totalorder %s34, 0
      %p139 = por %p137, %p138
      %p140 = scmp.ne.s32.totalorder %s128, %s129
      %p141 = scmp.eq.s32.totalorder %s35, 1
      %p142 = por %p140, %p141
      %p144 = scmp.ne.s32.totalorder %s129, %s143
      %p145 = scmp.eq.s32.totalorder %s35, 0
      %p146 = por %p144, %p145
      %s148 = sadd.s32 %s147, 1
      %p151 = scmp.eq.s32.totalorder %s29, 1
      %p152 = scmp.ne.s32.totalorder %s147, %s149
      %p153 = scmp.eq.s32.totalorder %s29, 0
      %p154 = por %p152, %p153
      %p155 = scmp.ne.s32.totalorder %s147, %s149
      %p156 = scmp.eq.s32.totalorder %s34, 1
      %p157 = por %p155, %p156
      %p158 = scmp.ne.s32.totalorder %s149, %s150
      %p159 = scmp.eq.s32.totalorder %s34, 0
      %p160 = por %p158, %p159
      %p161 = scmp.ne.s32.totalorder %s149, %s150
      %p162 = scmp.eq.s32.totalorder %s35, 1
      %p163 = por %p161, %p162
      %p165 = scmp.ne.s32.totalorder %s150, %s164
      %p166 = scmp.eq.s32.totalorder %s35, 0
      %p167 = por %p165, %p166
      %s169 = sadd.s32 %s168, 1
      %p172 = scmp.eq.s32.totalorder %s29, 1
      %p173 = scmp.ne.s32.totalorder %s168, %s170
      %p174 = scmp.eq.s32.totalorder %s29, 0
      %p175 = por %p173, %p174
      %p176 = scmp.ne.s32.totalorder %s168, %s170
      %p177 = scmp.eq.s32.totalorder %s34, 1
      %p178 = por %p176, %p177
      %p179 = scmp.ne.s32.totalorder %s170, %s171
      %p180 = scmp.eq.s32.totalorder %s34, 0
      %p181 = por %p179, %p180
      %p182 = scmp.ne.s32.totalorder %s170, %s171
      %p183 = scmp.eq.s32.totalorder %s35, 1
      %p184 = por %p182, %p183
      %p186 = scmp.ne.s32.totalorder %s171, %s185
      %p187 = scmp.eq.s32.totalorder %s35, 0
      %p188 = por %p186, %p187
      %s190 = sadd.s32 %s189, 1
      %p193 = scmp.eq.s32.totalorder %s29, 1
      %p194 = scmp.ne.s32.totalorder %s189, %s191
      %p195 = scmp.eq.s32.totalorder %s29, 0
      %p196 = por %p194, %p195
      %p197 = scmp.ne.s32.totalorder %s189, %s191
      %p198 = scmp.eq.s32.totalorder %s34, 1
      %p199 = por %p197, %p198
      %p200 = scmp.ne.s32.totalorder %s191, %s192
      %p201 = scmp.eq.s32.totalorder %s34, 0
      %p202 = por %p200, %p201
      %p203 = scmp.ne.s32.totalorder %s191, %s192
      %p204 = scmp.eq.s32.totalorder %s35, 1
      %p205 = por %p203, %p204
      %p207 = scmp.ne.s32.totalorder %s192, %s206
      %p208 = scmp.eq.s32.totalorder %s35, 0
      %p209 = por %p207, %p208
      %s211 = sadd.s32 %s210, 1
      %p214 = scmp.eq.s32.totalorder %s29, 1
      %p215 = scmp.ne.s32.totalorder %s210, %s212
      %p216 = scmp.eq.s32.totalorder %s29, 0
      %p217 = por %p215, %p216
      %p218 = scmp.ne.s32.totalorder %s210, %s212
      %p219 = scmp.eq.s32.totalorder %s34, 1
      %p220 = por %p218, %p219
      %p221 = scmp.ne.s32.totalorder %s212, %s213
      %p222 = scmp.eq.s32.totalorder %s34, 0
      %p223 = por %p221, %p222
      %p224 = scmp.ne.s32.totalorder %s212, %s213
      %p225 = scmp.eq.s32.totalorder %s35, 1
      %p226 = por %p224, %p225
      %p228 = scmp.ne.s32.totalorder %s213, %s227
      %p229 = scmp.eq.s32.totalorder %s35, 0
      %p230 = por %p228, %p229
      %s232 = sadd.s32 %s231, 1
      %p235 = scmp.eq.s32.totalorder %s29, 1
      %p236 = scmp.ne.s32.totalorder %s231, %s233
      %p237 = scmp.eq.s32.totalorder %s29, 0
      %p238 = por %p236, %p237
      %p239 = scmp.ne.s32.totalorder %s231, %s233
      %p240 = scmp.eq.s32.totalorder %s34, 1
      %p241 = por %p239, %p240
      %p242 = scmp.ne.s32.totalorder %s233, %s234
      %p243 = scmp.eq.s32.totalorder %s34, 0
      %p244 = por %p242, %p243
      %p245 = scmp.ne.s32.totalorder %s233, %s234
      %p246 = scmp.eq.s32.totalorder %s35, 1
      %p247 = por %p245, %p246
      %p249 = scmp.ne.s32.totalorder %s234, %s248
      %p250 = scmp.eq.s32.totalorder %s35, 0
      %p251 = por %p249, %p250
      %s253 = sadd.s32 %s252, 1
      %p256 = scmp.eq.s32.totalorder %s29, 1
      %p257 = scmp.ne.s32.totalorder %s252, %s254
      %p258 = scmp.eq.s32.totalorder %s29, 0
      %p259 = por %p257, %p258
      %p260 = scmp.ne.s32.totalorder %s252, %s254
      %p261 = scmp.eq.s32.totalorder %s34, 1
      %p262 = por %p260, %p261
      %p263 = scmp.ne.s32.totalorder %s254, %s255
      %p264 = scmp.eq.s32.totalorder %s34, 0
      %p265 = por %p263, %p264
      %p266 = scmp.ne.s32.totalorder %s254, %s255
      %p267 = scmp.eq.s32.totalorder %s35, 1
      %p268 = por %p266, %p267
      %p270 = scmp.ne.s32.totalorder %s255, %s269
      %p271 = scmp.eq.s32.totalorder %s35, 0
      %p272 = por %p270, %p271
      %s274 = sadd.s32 %s273, 1
      %p277 = scmp.eq.s32.totalorder %s29, 1
      %p278 = scmp.ne.s32.totalorder %s273, %s275
      %p279 = scmp.eq.s32.totalorder %s29, 0
      %p280 = por %p278, %p279
      %p281 = scmp.ne.s32.totalorder %s273, %s275
      %p282 = scmp.eq.s32.totalorder %s34, 1
      %p283 = por %p281, %p282
      %p284 = scmp.ne.s32.totalorder %s275, %s276
      %p285 = scmp.eq.s32.totalorder %s34, 0
      %p286 = por %p284, %p285
      %p287 = scmp.ne.s32.totalorder %s275, %s276
      %p288 = scmp.eq.s32.totalorder %s35, 1
      %p289 = por %p287, %p288
      %p291 = scmp.ne.s32.totalorder %s276, %s290
      %p292 = scmp.eq.s32.totalorder %s35, 0
      %p293 = por %p291, %p292
      %s295 = sadd.s32 %s294, 1
      %p298 = scmp.eq.s32.totalorder %s29, 1
      %p299 = scmp.ne.s32.totalorder %s294, %s296
      %p300 = scmp.eq.s32.totalorder %s29, 0
      %p301 = por %p299, %p300
      %p302 = scmp.ne.s32.totalorder %s294, %s296
      %p303 = scmp.eq.s32.totalorder %s34, 1
      %p304 = por %p302, %p303
      %p305 = scmp.ne.s32.totalorder %s296, %s297
      %p306 = scmp.eq.s32.totalorder %s34, 0
      %p307 = por %p305, %p306
      %p308 = scmp.ne.s32.totalorder %s296, %s297
      %p309 = scmp.eq.s32.totalorder %s35, 1
      %p310 = por %p308, %p309
      %p312 = scmp.ne.s32.totalorder %s297, %s311
      %p313 = scmp.eq.s32.totalorder %s35, 0
      %p314 = por %p312, %p313
      %s316 = sadd.s32 %s315, 1
      %p319 = scmp.eq.s32.totalorder %s29, 1
      %p320 = scmp.ne.s32.totalorder %s315, %s317
      %p321 = scmp.eq.s32.totalorder %s29, 0
      %p322 = por %p320, %p321
      %p323 = scmp.ne.s32.totalorder %s315, %s317
      %p324 = scmp.eq.s32.totalorder %s34, 1
      %p325 = por %p323, %p324
      %p326 = scmp.ne.s32.totalorder %s317, %s318
      %p327 = scmp.eq.s32.totalorder %s34, 0
      %p328 = por %p326, %p327
      %p329 = scmp.ne.s32.totalorder %s317, %s318
      %p330 = scmp.eq.s32.totalorder %s35, 1
      %p331 = por %p329, %p330
      %p333 = scmp.ne.s32.totalorder %s318, %s332
      %p334 = scmp.eq.s32.totalorder %s35, 0
      %p335 = por %p333, %p334
      %s336 = ssub.s32 %s29, %s36
      %p337 = scmp.eq.s32.totalorder %s336, 0
      %s339 = sadd.s32 %s338, 1
      %s340 = scalar_select %p337, %s338, %s339
      %p343 = pneg %p337
      %p344 = scmp.eq.s32.totalorder %s29, 1
      %p345 = por %p343, %p344
      %p346 = scmp.ne.s32.totalorder %s338, %s341
      %p347 = scmp.eq.s32.totalorder %s29, 0
      %p348 = por %p346, %p347
      %p349 = scmp.ne.s32.totalorder %s338, %s341
      %p350 = scmp.eq.s32.totalorder %s34, 1
      %p351 = por %p349, %p350
      %p352 = scmp.ne.s32.totalorder %s341, %s342
      %p353 = scmp.eq.s32.totalorder %s34, 0
      %p354 = por %p352, %p353
      %p355 = scmp.ne.s32.totalorder %s341, %s342
      %p356 = scmp.eq.s32.totalorder %s35, 1
      %p357 = por %p355, %p356
      %p359 = scmp.ne.s32.totalorder %s342, %s358
      %p360 = scmp.eq.s32.totalorder %s35, 0
      %p361 = por %p359, %p360
      %p362 = scmp.le.s32.totalorder 1, %s29
      %p363 = scmp.lt.s32.totalorder %s29, 3
      %p364 = pnand %p362, %p363
      %p365 = pneg %p364
      // Predicated region
      $region9: #{tpu_custom_call.1} parent=5 // pred_check
        _
      $region10: #{tpu_custom_call.1} parent=5 // pred_check_branch
        %367 = sbr.rel (%p364) target = $region12
      $region11: #{tpu_custom_call.1} parent=5 // pred_region
        %s368 = ssub.s32 %s29, 1
        // Predicated region
        $region13: #{tpu_custom_call.1} parent=11 // pred_check
          %p369 = pneg %p76
        $region14: #{tpu_custom_call.1} parent=11 // pred_check_branch
          %371 = sbr.rel (%p369) target = $region16
        $region15: #{tpu_custom_call.1} parent=11 // pred_region
          %373 = vsyncadd [#allocation6], 0
          %s374 = sshll.u32 %s1, 4
          %s375 = int_to_ptr.hbm [resolvable:$true] %s374
          %s376 = sshll.u32 [#allocation5], 4
          %s377 = int_to_ptr.vmem [resolvable:$true] %s376
          %382 = dma.hbm_to_vmem [thread:$0]  %s375, 2048, %s377, [#allocation6], 128, 128, 8
        $region16: #{tpu_custom_call.1} parent=11 // pred_fallthru
          _
        // Predicated region
        $region17: #{tpu_custom_call.1} parent=11 // pred_check
          %p383 = pneg %p97
        $region18: #{tpu_custom_call.1} parent=11 // pred_check_branch
          %385 = sbr.rel (%p383) target = $region20
        $region19: #{tpu_custom_call.1} parent=11 // pred_region
          _
        $region20: #{tpu_custom_call.1} parent=11 // pred_fallthru
          _
        // Predicated region
        $region21: #{tpu_custom_call.1} parent=11 // pred_check
          %p386 = pneg %p118
        $region22: #{tpu_custom_call.1} parent=11 // pred_check_branch
          %388 = sbr.rel (%p386) target = $region24
        $region23: #{tpu_custom_call.1} parent=11 // pred_region
          %390 = vsyncadd [#allocation6], 0
          %s392 = sshll.u32 %s3, 4
          %s393 = int_to_ptr.hbm [resolvable:$true] %s392
          %s394 = sshll.u32 [#allocation7], 4
          %s395 = int_to_ptr.vmem [resolvable:$true] %s394
          %397 = dma.hbm_to_vmem [thread:$0]  %s393, 16, %s395, [#allocation6]
        $region24: #{tpu_custom_call.1} parent=11 // pred_fallthru
          _
        // Predicated region
        $region25: #{tpu_custom_call.1} parent=11 // pred_check
          %p398 = pneg %p139
        $region26: #{tpu_custom_call.1} parent=11 // pred_check_branch
          %400 = sbr.rel (%p398) target = $region28
        $region27: #{tpu_custom_call.1} parent=11 // pred_region
          %402 = vsyncadd [#allocation9], 0
          %s403 = sshll.u32 %s4, 4
          %s404 = int_to_ptr.hbm [resolvable:$true] %s403
          %s405 = sshll.u32 [#allocation8], 4
          %s406 = int_to_ptr.vmem [resolvable:$true] %s405
          %411 = dma.hbm_to_vmem [thread:$0]  %s404, 6144, %s406, [#allocation9], 384, 384, 24
        $region28: #{tpu_custom_call.1} parent=11 // pred_fallthru
          _
        // Predicated region
        $region29: #{tpu_custom_call.1} parent=11 // pred_check
          %p412 = pneg %p160
        $region30: #{tpu_custom_call.1} parent=11 // pred_check_branch
          %414 = sbr.rel (%p412) target = $region32
        $region31: #{tpu_custom_call.1} parent=11 // pred_region
          _
        $region32: #{tpu_custom_call.1} parent=11 // pred_fallthru
          _
        // Predicated region
        $region33: #{tpu_custom_call.1} parent=11 // pred_check
          %p415 = pneg %p181
        $region34: #{tpu_custom_call.1} parent=11 // pred_check_branch
          %417 = sbr.rel (%p415) target = $region36
        $region35: #{tpu_custom_call.1} parent=11 // pred_region
          %419 = vsyncadd [#allocation9], 0
          %s420 = sshll.u32 %s6, 4
          %s421 = int_to_ptr.hbm [resolvable:$true] %s420
          %s422 = sshll.u32 [#allocation10], 4
          %s423 = int_to_ptr.vmem [resolvable:$true] %s422
          %428 = dma.hbm_to_vmem [thread:$0]  %s421, 2048, %s423, [#allocation9], 128, 128, 8
        $region36: #{tpu_custom_call.1} parent=11 // pred_fallthru
          _
        // Predicated region
        $region37: #{tpu_custom_call.1} parent=11 // pred_check
          %p429 = pneg %p202
        $region38: #{tpu_custom_call.1} parent=11 // pred_check_branch
          %431 = sbr.rel (%p429) target = $region40
        $region39: #{tpu_custom_call.1} parent=11 // pred_region
          _
        $region40: #{tpu_custom_call.1} parent=11 // pred_fallthru
          _
        // Predicated region
        $region41: #{tpu_custom_call.1} parent=11 // pred_check
          %p432 = pneg %p223
        $region42: #{tpu_custom_call.1} parent=11 // pred_check_branch
          %434 = sbr.rel (%p432) target = $region44
        $region43: #{tpu_custom_call.1} parent=11 // pred_region
          _
        $region44: #{tpu_custom_call.1} parent=11 // pred_fallthru
          _
        // Predicated region
        $region45: #{tpu_custom_call.1} parent=11 // pred_check
          %p435 = pneg %p244
        $region46: #{tpu_custom_call.1} parent=11 // pred_check_branch
          %437 = sbr.rel (%p435) target = $region48
        $region47: #{tpu_custom_call.1} parent=11 // pred_region
          _
        $region48: #{tpu_custom_call.1} parent=11 // pred_fallthru
          _
        // Predicated region
        $region49: #{tpu_custom_call.1} parent=11 // pred_check
          %p438 = pneg %p265
        $region50: #{tpu_custom_call.1} parent=11 // pred_check_branch
          %440 = sbr.rel (%p438) target = $region52
        $region51: #{tpu_custom_call.1} parent=11 // pred_region
          %442 = vsyncadd [#allocation12], 0
          %s443 = sshll.u32 %s10, 4
          %s444 = int_to_ptr.hbm [resolvable:$true] %s443
          %s445 = sshll.u32 [#allocation11], 4
          %s446 = int_to_ptr.vmem [resolvable:$true] %s445
          %451 = dma.hbm_to_vmem [thread:$0]  %s444, 2048, %s446, [#allocation12], 128, 128, 8
        $region52: #{tpu_custom_call.1} parent=11 // pred_fallthru
          _
        // Predicated region
        $region53: #{tpu_custom_call.1} parent=11 // pred_check
          %p452 = pneg %p286
        $region54: #{tpu_custom_call.1} parent=11 // pred_check_branch
          %454 = sbr.rel (%p452) target = $region56
        $region55: #{tpu_custom_call.1} parent=11 // pred_region
          _
        $region56: #{tpu_custom_call.1} parent=11 // pred_fallthru
          _
        // Predicated region
        $region57: #{tpu_custom_call.1} parent=11 // pred_check
          %p455 = pneg %p307
        $region58: #{tpu_custom_call.1} parent=11 // pred_check_branch
          %457 = sbr.rel (%p455) target = $region60
        $region59: #{tpu_custom_call.1} parent=11 // pred_region
          %459 = vsyncadd [#allocation12], 0
          %s460 = sshll.u32 %s12, 4
          %s461 = int_to_ptr.hbm [resolvable:$true] %s460
          %s462 = sshll.u32 [#allocation13], 4
          %s463 = int_to_ptr.vmem [resolvable:$true] %s462
          %468 = dma.hbm_to_vmem [thread:$0]  %s461, 2048, %s463, [#allocation12], 128, 128, 8
        $region60: #{tpu_custom_call.1} parent=11 // pred_fallthru
          _
        // Predicated region
        $region61: #{tpu_custom_call.1} parent=11 // pred_check
          %p469 = pneg %p328
        $region62: #{tpu_custom_call.1} parent=11 // pred_check_branch
          %471 = sbr.rel (%p469) target = $region64
        $region63: #{tpu_custom_call.1} parent=11 // pred_region
          _
        $region64: #{tpu_custom_call.1} parent=11 // pred_fallthru
          _
      $region12: #{tpu_custom_call.1} parent=5 // pred_fallthru
        _
      %p472 = scmp.lt.s32.totalorder %s29, 2
      // Predicated region
      $region65: #{tpu_custom_call.1} parent=5 // pred_check
        %p473 = pneg %p472
      $region66: #{tpu_custom_call.1} parent=5 // pred_check_branch
        %475 = sbr.rel (%p473) target = $region68
      $region67: #{tpu_custom_call.1} parent=5 // pred_region
        // Predicated region
        $region69: #{tpu_custom_call.1} parent=67 // pred_check
          %p476 = pneg %p49
        $region70: #{tpu_custom_call.1} parent=67 // pred_check_branch
          %478 = sbr.rel (%p476) target = $region72
        $region71: #{tpu_custom_call.1} parent=67 // pred_region
          %s479 = sand.u32 %s39, 1
          %s480 = scalar_lea.sflag [#allocation3], %s479
          %s481 = sand.u32 %s39, 1
          %s482 = smul.addr %s481, 64
          %s483 = scalar_lea.vmem [#allocation2], %s482
          %s484 = smul.u32 4, %s29
          %486 = vsyncadd %s480, 0
          %s487 = smul.addr %s484, 2
          %s488 = smul.addr %s487, 8
          %s489 = scalar_lea.hbm %s0, %s488
          %s490 = sshll.u32 %s489, 4
          %s491 = int_to_ptr.hbm [resolvable:$true] %s490
          %s492 = sshll.u32 %s483, 4
          %s493 = int_to_ptr.vmem [resolvable:$true] %s492
          %498 = dma.hbm_to_vmem [thread:$0]  %s491, 1024, %s493, %s480, 128, 128, 8
        $region72: #{tpu_custom_call.1} parent=67 // pred_fallthru
          _
      $region68: #{tpu_custom_call.1} parent=5 // pred_fallthru
        _
      %p499 = scmp.le.s32.totalorder 1, %s29
      %p500 = scmp.lt.s32.totalorder %s29, 3
      %p501 = pnand %p499, %p500
      %p502 = pneg %p501
      // Predicated region
      $region73: #{tpu_custom_call.1} parent=5 // pred_check
        _
      $region74: #{tpu_custom_call.1} parent=5 // pred_check_branch
        %504 = sbr.rel (%p501) target = $region76
      $region75: #{tpu_custom_call.1} parent=5 // pred_region
        %s505 = ssub.s32 %s29, 1
        %s506 = sand.u32 %s42, 1
        %s507 = scalar_lea.sflag [#allocation3], %s506
        %s508 = sand.u32 %s42, 1
        %s509 = smul.addr %s508, 64
        %s510 = scalar_lea.vmem [#allocation2], %s509
        // Predicated region
        $region77: #{tpu_custom_call.1} parent=75 // pred_check
          %p511 = pneg %p55
        $region78: #{tpu_custom_call.1} parent=75 // pred_check_branch
          %513 = sbr.rel (%p511) target = $region80
        $region79: #{tpu_custom_call.1} parent=75 // pred_region
          %515 = dma.done %s507, 1024
        $region80: #{tpu_custom_call.1} parent=75 // pred_fallthru
          _
        // Predicated region
        $region81: #{tpu_custom_call.1} parent=75 // pred_check
          %p516 = pneg %p76
        $region82: #{tpu_custom_call.1} parent=75 // pred_check_branch
          %518 = sbr.rel (%p516) target = $region84
        $region83: #{tpu_custom_call.1} parent=75 // pred_region
          %520 = dma.done [#allocation6], 2048
        $region84: #{tpu_custom_call.1} parent=75 // pred_fallthru
          _
        // Predicated region
        $region85: #{tpu_custom_call.1} parent=75 // pred_check
          %p521 = pneg %p118
        $region86: #{tpu_custom_call.1} parent=75 // pred_check_branch
          %523 = sbr.rel (%p521) target = $region88
        $region87: #{tpu_custom_call.1} parent=75 // pred_region
          %525 = dma.done [#allocation6], 16
        $region88: #{tpu_custom_call.1} parent=75 // pred_fallthru
          _
        // Predicated region
        $region89: #{tpu_custom_call.1} parent=75 // pred_check
          %p526 = pneg %p139
        $region90: #{tpu_custom_call.1} parent=75 // pred_check_branch
          %528 = sbr.rel (%p526) target = $region92
        $region91: #{tpu_custom_call.1} parent=75 // pred_region
          %530 = dma.done [#allocation9], 6144
        $region92: #{tpu_custom_call.1} parent=75 // pred_fallthru
          _
        // Predicated region
        $region93: #{tpu_custom_call.1} parent=75 // pred_check
          %p531 = pneg %p181
        $region94: #{tpu_custom_call.1} parent=75 // pred_check_branch
          %533 = sbr.rel (%p531) target = $region96
        $region95: #{tpu_custom_call.1} parent=75 // pred_region
          %535 = dma.done [#allocation9], 2048
        $region96: #{tpu_custom_call.1} parent=75 // pred_fallthru
          _
        // Predicated region
        $region97: #{tpu_custom_call.1} parent=75 // pred_check
          %p536 = pneg %p265
        $region98: #{tpu_custom_call.1} parent=75 // pred_check_branch
          %538 = sbr.rel (%p536) target = $region100
        $region99: #{tpu_custom_call.1} parent=75 // pred_region
          %540 = dma.done [#allocation12], 2048
        $region100: #{tpu_custom_call.1} parent=75 // pred_fallthru
          _
        // Predicated region
        $region101: #{tpu_custom_call.1} parent=75 // pred_check
          %p541 = pneg %p307
        $region102: #{tpu_custom_call.1} parent=75 // pred_check_branch
          %543 = sbr.rel (%p541) target = $region104
        $region103: #{tpu_custom_call.1} parent=75 // pred_region
          %545 = dma.done [#allocation12], 2048
        $region104: #{tpu_custom_call.1} parent=75 // pred_fallthru
          _
        %s546 = sand.u32 %s42, 1
        %s547 = scalar_lea.sflag [#allocation3], %s546
        %s548 = sand.u32 %s42, 1
        %s549 = smul.addr %s548, 64
        %s550 = scalar_lea.vmem [#allocation2], %s549
        %p551 = pneg %p55
        %p552 = pneg %p52
        %p553 = pneg %p76
        %p554 = pneg %p73
        %p555 = pneg %p97
        %p556 = pneg %p94
        %p557 = pneg %p118
        %p558 = pneg %p115
        %p559 = pneg %p139
        %p560 = pneg %p136
        %p561 = pneg %p160
        %p562 = pneg %p157
        %p563 = pneg %p181
        %p564 = pneg %p178
        %p565 = pneg %p202
        %p566 = pneg %p199
        %p567 = pneg %p223
        %p568 = pneg %p220
        %p569 = pneg %p244
        %p570 = pneg %p241
        %p571 = pneg %p265
        %p572 = pneg %p262
        %p573 = pneg %p286
        %p574 = pneg %p283
        %p575 = pneg %p307
        %p576 = pneg %p304
        %p577 = pneg %p328
        %p578 = pneg %p325
        %p579 = pneg %p354
        %p580 = pneg %p351
        %s581 = sand.u32 %s341, 1
        %s582 = scalar_lea.sflag [#allocation4], %s581
        %s583 = sand.u32 %s341, 1
        %s584 = smul.addr %s583, 64
        %s585 = scalar_lea.vmem [#allocation14], %s584
        %s586 = smul.u32 4, %s34
        %s587 = smul.u32 4, %s34
        %v588 = vld [vmem:[%s510] sm:$0xff]
        %v589 = vld [vmem:[%s510 + $0x8] sm:$0xff]
        %v590 = vld [vmem:[%s510 + $0x10] sm:$0xff]
        %v591 = vld [vmem:[%s510 + $0x18] sm:$0xff]
        %v592 = vld [vmem:[%s510 + $0x20] sm:$0xff]
        %v593 = vld [vmem:[%s510 + $0x28] sm:$0xff]
        %v594 = vld [vmem:[%s510 + $0x30] sm:$0xff]
        %v595 = vld [vmem:[%s510 + $0x38] sm:$0xff]
        %596 = vadd.xlane.f32.xlu0 %v588
        %v597 = vpop.xlane.xlu0 %596
        %598 = vadd.xlane.f32.xlu0 %v589
        %v599 = vpop.xlane.xlu0 %598
        %600 = vadd.xlane.f32.xlu0 %v590
        %v601 = vpop.xlane.xlu0 %600
        %602 = vadd.xlane.f32.xlu0 %v591
        %v603 = vpop.xlane.xlu0 %602
        %604 = vadd.xlane.f32.xlu0 %v592
        %v605 = vpop.xlane.xlu0 %604
        %606 = vadd.xlane.f32.xlu0 %v593
        %v607 = vpop.xlane.xlu0 %606
        %608 = vadd.xlane.f32.xlu0 %v594
        %v609 = vpop.xlane.xlu0 %608
        %610 = vadd.xlane.f32.xlu0 %v595
        %v611 = vpop.xlane.xlu0 %610
        %v612 = vrcp.pop 128.0
        %v613 = vmul.f32 128.0, %v612
        %v614 = vsub.f32 1.0, %v613
        %v615 = vmul.f32 %v612, %v614
        %v616 = vadd.f32 %v612, %v615
        %vm617 = vweird.f32 %v612
        %v618 = vsel %vm617, %v612, %v616
        %v619 = vmul.f32 %v597, %v618
        %v620 = vmul.f32 %v599, %v618
        %v621 = vmul.f32 %v601, %v618
        %v622 = vmul.f32 %v603, %v618
        %v623 = vmul.f32 %v605, %v618
        %v624 = vmul.f32 %v607, %v618
        %v625 = vmul.f32 %v609, %v618
        %v626 = vmul.f32 %v611, %v618
        %v627 = vsub.f32 %v588, %v619
        %v628 = vsub.f32 %v589, %v620
        %v629 = vsub.f32 %v590, %v621
        %v630 = vsub.f32 %v591, %v622
        %v631 = vsub.f32 %v592, %v623
        %v632 = vsub.f32 %v593, %v624
        %v633 = vsub.f32 %v594, %v625
        %v634 = vsub.f32 %v595, %v626
        %v635 = vmul.f32 %v627, %v627
        %v636 = vmul.f32 %v628, %v628
        %v637 = vmul.f32 %v629, %v629
        %v638 = vmul.f32 %v630, %v630
        %v639 = vmul.f32 %v631, %v631
        %v640 = vmul.f32 %v632, %v632
        %v641 = vmul.f32 %v633, %v633
        %v642 = vmul.f32 %v634, %v634
        %643 = vadd.xlane.f32.xlu0 %v635
        %v644 = vpop.xlane.xlu0 %643
        %645 = vadd.xlane.f32.xlu0 %v636
        %v646 = vpop.xlane.xlu0 %645
        %647 = vadd.xlane.f32.xlu0 %v637
        %v648 = vpop.xlane.xlu0 %647
        %649 = vadd.xlane.f32.xlu0 %v638
        %v650 = vpop.xlane.xlu0 %649
        %651 = vadd.xlane.f32.xlu0 %v639
        %v652 = vpop.xlane.xlu0 %651
        %653 = vadd.xlane.f32.xlu0 %v640
        %v654 = vpop.xlane.xlu0 %653
        %655 = vadd.xlane.f32.xlu0 %v641
        %v656 = vpop.xlane.xlu0 %655
        %657 = vadd.xlane.f32.xlu0 %v642
        %v658 = vpop.xlane.xlu0 %657
        %v659 = vmul.f32 %v644, %v618
        %v660 = vmul.f32 %v646, %v618
        %v661 = vmul.f32 %v648, %v618
        %v662 = vmul.f32 %v650, %v618
        %v663 = vmul.f32 %v652, %v618
        %v664 = vmul.f32 %v654, %v618
        %v665 = vmul.f32 %v656, %v618
        %v666 = vmul.f32 %v658, %v618
        %v667 = vadd.f32 %v659, 1e-05
        %v668 = vadd.f32 %v660, 1e-05
        %v669 = vadd.f32 %v661, 1e-05
        %v670 = vadd.f32 %v662, 1e-05
        %v671 = vadd.f32 %v663, 1e-05
        %v672 = vadd.f32 %v664, 1e-05
        %v673 = vadd.f32 %v665, 1e-05
        %v674 = vadd.f32 %v666, 1e-05
        %v675 = vrsqrt.pop %v667
        %v676 = vmul.f32 %v675, %v667
        %v677 = vmul.f32 %v676, %v675
        %v678 = vmul.f32 0.5, %v677
        %v679 = vsub.f32 1.5, %v678
        %v680 = vmul.f32 %v675, %v679
        %vm681 = vweird.f32 %v667
        %vm682 = vweird.f32 %v675
        %vm683 = vmor %vm681, %vm682
        %v684 = vsel %vm683, %v675, %v680
        %v685 = vrsqrt.pop %v668
        %v686 = vmul.f32 %v685, %v668
        %v687 = vmul.f32 %v686, %v685
        %v688 = vmul.f32 0.5, %v687
        %v689 = vsub.f32 1.5, %v688
        %v690 = vmul.f32 %v685, %v689
        %vm691 = vweird.f32 %v668
        %vm692 = vweird.f32 %v685
        %vm693 = vmor %vm691, %vm692
        %v694 = vsel %vm693, %v685, %v690
        %v695 = vrsqrt.pop %v669
        %v696 = vmul.f32 %v695, %v669
        %v697 = vmul.f32 %v696, %v695
        %v698 = vmul.f32 0.5, %v697
        %v699 = vsub.f32 1.5, %v698
        %v700 = vmul.f32 %v695, %v699
        %vm701 = vweird.f32 %v669
        %vm702 = vweird.f32 %v695
        %vm703 = vmor %vm701, %vm702
        %v704 = vsel %vm703, %v695, %v700
        %v705 = vrsqrt.pop %v670
        %v706 = vmul.f32 %v705, %v670
        %v707 = vmul.f32 %v706, %v705
        %v708 = vmul.f32 0.5, %v707
        %v709 = vsub.f32 1.5, %v708
        %v710 = vmul.f32 %v705, %v709
        %vm711 = vweird.f32 %v670
        %vm712 = vweird.f32 %v705
        %vm713 = vmor %vm711, %vm712
        %v714 = vsel %vm713, %v705, %v710
        %v715 = vrsqrt.pop %v671
        %v716 = vmul.f32 %v715, %v671
        %v717 = vmul.f32 %v716, %v715
        %v718 = vmul.f32 0.5, %v717
        %v719 = vsub.f32 1.5, %v718
        %v720 = vmul.f32 %v715, %v719
        %vm721 = vweird.f32 %v671
        %vm722 = vweird.f32 %v715
        %vm723 = vmor %vm721, %vm722
        %v724 = vsel %vm723, %v715, %v720
        %v725 = vrsqrt.pop %v672
        %v726 = vmul.f32 %v725, %v672
        %v727 = vmul.f32 %v726, %v725
        %v728 = vmul.f32 0.5, %v727
        %v729 = vsub.f32 1.5, %v728
        %v730 = vmul.f32 %v725, %v729
        %vm731 = vweird.f32 %v672
        %vm732 = vweird.f32 %v725
        %vm733 = vmor %vm731, %vm732
        %v734 = vsel %vm733, %v725, %v730
        %v735 = vrsqrt.pop %v673
        %v736 = vmul.f32 %v735, %v673
        %v737 = vmul.f32 %v736, %v735
        %v738 = vmul.f32 0.5, %v737
        %v739 = vsub.f32 1.5, %v738
        %v740 = vmul.f32 %v735, %v739
        %vm741 = vweird.f32 %v673
        %vm742 = vweird.f32 %v735
        %vm743 = vmor %vm741, %vm742
        %v744 = vsel %vm743, %v735, %v740
        %v745 = vrsqrt.pop %v674
        %v746 = vmul.f32 %v745, %v674
        %v747 = vmul.f32 %v746, %v745
        %v748 = vmul.f32 0.5, %v747
        %v749 = vsub.f32 1.5, %v748
        %v750 = vmul.f32 %v745, %v749
        %vm751 = vweird.f32 %v674
        %vm752 = vweird.f32 %v745
        %vm753 = vmor %vm751, %vm752
        %v754 = vsel %vm753, %v745, %v750
        %v755 = vmul.f32 %v627, %v684
        %v756 = vmul.f32 %v628, %v694
        %v757 = vmul.f32 %v629, %v704
        %v758 = vmul.f32 %v630, %v714
        %v759 = vmul.f32 %v631, %v724
        %v760 = vmul.f32 %v632, %v734
        %v761 = vmul.f32 %v633, %v744
        %v762 = vmul.f32 %v634, %v754
        %v763 = vld [vmem:[%s2] sm:$0x1]
        %v765 = vperm.slane %v763, 0
        %v767 = vmul.f32 %v755, %v765
        %v768 = vmul.f32 %v756, %v765
        %v769 = vmul.f32 %v757, %v765
        %v770 = vmul.f32 %v758, %v765
        %v771 = vmul.f32 %v759, %v765
        %v772 = vmul.f32 %v760, %v765
        %v773 = vmul.f32 %v761, %v765
        %v774 = vmul.f32 %v762, %v765
        %v775 = vld [vmem:[#allocation7] sm:$0x1]
        %v777 = vperm.slane %v775, 0
        %v779 = vadd.f32 %v767, %v777
        %v780 = vadd.f32 %v768, %v777
        %v781 = vadd.f32 %v769, %v777
        %v782 = vadd.f32 %v770, %v777
        %v783 = vadd.f32 %v771, %v777
        %v784 = vadd.f32 %v772, %v777
        %v785 = vadd.f32 %v773, %v777
        %v786 = vadd.f32 %v774, %v777
        %v787 = vld [vmem:[#allocation8] sm:$0xff]
        %v788 = vld [vmem:[#allocation8 + $0x8] sm:$0xff]
        %v789 = vld [vmem:[#allocation8 + $0x10] sm:$0xff]
        %v790 = vld [vmem:[#allocation8 + $0x18] sm:$0xff]
        %v791 = vld [vmem:[#allocation8 + $0x20] sm:$0xff]
        %v792 = vld [vmem:[#allocation8 + $0x28] sm:$0xff]
        %v793 = vld [vmem:[#allocation8 + $0x30] sm:$0xff]
        %v794 = vld [vmem:[#allocation8 + $0x38] sm:$0xff]
        %v795 = vld [vmem:[#allocation8 + $0x40] sm:$0xff]
        %v796 = vld [vmem:[#allocation8 + $0x48] sm:$0xff]
        %v797 = vld [vmem:[#allocation8 + $0x50] sm:$0xff]
        %v798 = vld [vmem:[#allocation8 + $0x58] sm:$0xff]
        %v799 = vld [vmem:[#allocation8 + $0x60] sm:$0xff]
        %v800 = vld [vmem:[#allocation8 + $0x68] sm:$0xff]
        %v801 = vld [vmem:[#allocation8 + $0x70] sm:$0xff]
        %v802 = vld [vmem:[#allocation8 + $0x78] sm:$0xff]
        %v803 = vld [vmem:[#allocation8 + $0x80] sm:$0xff]
        %v804 = vld [vmem:[#allocation8 + $0x88] sm:$0xff]
        %v805 = vld [vmem:[#allocation8 + $0x90] sm:$0xff]
        %v806 = vld [vmem:[#allocation8 + $0x98] sm:$0xff]
        %v807 = vld [vmem:[#allocation8 + $0xa0] sm:$0xff]
        %v808 = vld [vmem:[#allocation8 + $0xa8] sm:$0xff]
        %v809 = vld [vmem:[#allocation8 + $0xb0] sm:$0xff]
        %v810 = vld [vmem:[#allocation8 + $0xb8] sm:$0xff]
        %v811 = vld [vmem:[#allocation8 + $0xc0] sm:$0xff]
        %v812 = vld [vmem:[#allocation8 + $0xc8] sm:$0xff]
        %v813 = vld [vmem:[#allocation8 + $0xd0] sm:$0xff]
        %v814 = vld [vmem:[#allocation8 + $0xd8] sm:$0xff]
        %v815 = vld [vmem:[#allocation8 + $0xe0] sm:$0xff]
        %v816 = vld [vmem:[#allocation8 + $0xe8] sm:$0xff]
        %v817 = vld [vmem:[#allocation8 + $0xf0] sm:$0xff]
        %v818 = vld [vmem:[#allocation8 + $0xf8] sm:$0xff]
        %v819 = vld [vmem:[#allocation8 + $0x100] sm:$0xff]
        %v820 = vld [vmem:[#allocation8 + $0x108] sm:$0xff]
        %v821 = vld [vmem:[#allocation8 + $0x110] sm:$0xff]
        %v822 = vld [vmem:[#allocation8 + $0x118] sm:$0xff]
        %v823 = vld [vmem:[#allocation8 + $0x120] sm:$0xff]
        %v824 = vld [vmem:[#allocation8 + $0x128] sm:$0xff]
        %v825 = vld [vmem:[#allocation8 + $0x130] sm:$0xff]
        %v826 = vld [vmem:[#allocation8 + $0x138] sm:$0xff]
        %v827 = vld [vmem:[#allocation8 + $0x140] sm:$0xff]
        %v828 = vld [vmem:[#allocation8 + $0x148] sm:$0xff]
        %v829 = vld [vmem:[#allocation8 + $0x150] sm:$0xff]
        %v830 = vld [vmem:[#allocation8 + $0x158] sm:$0xff]
        %v831 = vld [vmem:[#allocation8 + $0x160] sm:$0xff]
        %v832 = vld [vmem:[#allocation8 + $0x168] sm:$0xff]
        %v833 = vld [vmem:[#allocation8 + $0x170] sm:$0xff]
        %v834 = vld [vmem:[#allocation8 + $0x178] sm:$0xff]
        %v835 = vld [vmem:[%s5] sm:$0x7]
        %v837 = vperm.slane %v835, 0
        %v838 = vperm.slane %v835, 1
        %v839 = vperm.slane %v835, 2
        %843 = vmatpush.msra.mxu0 %v832
        %844 = vmatpush.msra.mxu0 %v829
        %845 = vmatpush.msra.mxu0 %v826
        %846 = vmatpush.msra.mxu0 %v823
        %847 = vmatpush.msra.mxu0 %v820
        %848 = vmatpush.msra.mxu0 %v817
        %849 = vmatpush.msra.mxu0 %v814
        %850 = vmatpush.msra.mxu0 %v811
        %851 = vmatpush.msra.mxu0 %v808
        %852 = vmatpush.msra.mxu0 %v805
        %853 = vmatpush.msra.mxu0 %v802
        %854 = vmatpush.msra.mxu0 %v799
        %855 = vmatpush.msra.mxu0 %v796
        %856 = vmatpush.msra.mxu0 %v793
        %857 = vmatpush.msra.mxu0 %v790
        %858 = vmatpush.msra.mxu0 %v787
        %859 = vmatmul.f32.gmra.mxu0 %v779
        %v860 = vpop.f32.mrf.mxu0
        %v861 = vadd.f32 %v837, %v860
        %862 = vmatmul.f32.gmra.mxu0 %v780
        %v863 = vpop.f32.mrf.mxu0
        %v864 = vadd.f32 %v837, %v863
        %865 = vmatmul.f32.gmra.mxu0 %v781
        %v866 = vpop.f32.mrf.mxu0
        %v867 = vadd.f32 %v837, %v866
        %868 = vmatmul.f32.gmra.mxu0 %v782
        %v869 = vpop.f32.mrf.mxu0
        %v870 = vadd.f32 %v837, %v869
        %871 = vmatmul.f32.gmra.mxu0 %v783
        %v872 = vpop.f32.mrf.mxu0
        %v873 = vadd.f32 %v837, %v872
        %874 = vmatmul.f32.gmra.mxu0 %v784
        %v875 = vpop.f32.mrf.mxu0
        %v876 = vadd.f32 %v837, %v875
        %877 = vmatmul.f32.gmra.mxu0 %v785
        %v878 = vpop.f32.mrf.mxu0
        %v879 = vadd.f32 %v837, %v878
        %880 = vmatmul.f32.gmra.mxu0 %v786
        %v881 = vpop.f32.mrf.mxu0
        %v882 = vadd.f32 %v837, %v881
        %883 = vdwg.mxu0
        %884 = vmatpush.msra.mxu0 %v833
        %885 = vmatpush.msra.mxu0 %v830
        %886 = vmatpush.msra.mxu0 %v827
        %887 = vmatpush.msra.mxu0 %v824
        %888 = vmatpush.msra.mxu0 %v821
        %889 = vmatpush.msra.mxu0 %v818
        %890 = vmatpush.msra.mxu0 %v815
        %891 = vmatpush.msra.mxu0 %v812
        %892 = vmatpush.msra.mxu0 %v809
        %893 = vmatpush.msra.mxu0 %v806
        %894 = vmatpush.msra.mxu0 %v803
        %895 = vmatpush.msra.mxu0 %v800
        %896 = vmatpush.msra.mxu0 %v797
        %897 = vmatpush.msra.mxu0 %v794
        %898 = vmatpush.msra.mxu0 %v791
        %899 = vmatpush.msra.mxu0 %v788
        %900 = vmatmul.f32.gmra.mxu0 %v779
        %v901 = vpop.f32.mrf.mxu0
        %v902 = vadd.f32 %v838, %v901
        %903 = vmatmul.f32.gmra.mxu0 %v780
        %v904 = vpop.f32.mrf.mxu0
        %v905 = vadd.f32 %v838, %v904
        %906 = vmatmul.f32.gmra.mxu0 %v781
        %v907 = vpop.f32.mrf.mxu0
        %v908 = vadd.f32 %v838, %v907
        %909 = vmatmul.f32.gmra.mxu0 %v782
        %v910 = vpop.f32.mrf.mxu0
        %v911 = vadd.f32 %v838, %v910
        %912 = vmatmul.f32.gmra.mxu0 %v783
        %v913 = vpop.f32.mrf.mxu0
        %v914 = vadd.f32 %v838, %v913
        %915 = vmatmul.f32.gmra.mxu0 %v784
        %v916 = vpop.f32.mrf.mxu0
        %v917 = vadd.f32 %v838, %v916
        %918 = vmatmul.f32.gmra.mxu0 %v785
        %v919 = vpop.f32.mrf.mxu0
        %v920 = vadd.f32 %v838, %v919
        %921 = vmatmul.f32.gmra.mxu0 %v786
        %v922 = vpop.f32.mrf.mxu0
        %v923 = vadd.f32 %v838, %v922
        %924 = vdwg.mxu0
        %925 = vmatpush.msra.mxu0 %v834
        %926 = vmatpush.msra.mxu0 %v831
        %927 = vmatpush.msra.mxu0 %v828
        %928 = vmatpush.msra.mxu0 %v825
        %929 = vmatpush.msra.mxu0 %v822
        %930 = vmatpush.msra.mxu0 %v819
        %931 = vmatpush.msra.mxu0 %v816
        %932 = vmatpush.msra.mxu0 %v813
        %933 = vmatpush.msra.mxu0 %v810
        %934 = vmatpush.msra.mxu0 %v807
        %935 = vmatpush.msra.mxu0 %v804
        %936 = vmatpush.msra.mxu0 %v801
        %937 = vmatpush.msra.mxu0 %v798
        %938 = vmatpush.msra.mxu0 %v795
        %939 = vmatpush.msra.mxu0 %v792
        %940 = vmatpush.msra.mxu0 %v789
        %941 = vmatmul.f32.gmra.mxu0 %v779
        %v942 = vpop.f32.mrf.mxu0
        %v943 = vadd.f32 %v839, %v942
        %944 = vmatmul.f32.gmra.mxu0 %v780
        %v945 = vpop.f32.mrf.mxu0
        %v946 = vadd.f32 %v839, %v945
        %947 = vmatmul.f32.gmra.mxu0 %v781
        %v948 = vpop.f32.mrf.mxu0
        %v949 = vadd.f32 %v839, %v948
        %950 = vmatmul.f32.gmra.mxu0 %v782
        %v951 = vpop.f32.mrf.mxu0
        %v952 = vadd.f32 %v839, %v951
        %953 = vmatmul.f32.gmra.mxu0 %v783
        %v954 = vpop.f32.mrf.mxu0
        %v955 = vadd.f32 %v839, %v954
        %956 = vmatmul.f32.gmra.mxu0 %v784
        %v957 = vpop.f32.mrf.mxu0
        %v958 = vadd.f32 %v839, %v957
        %959 = vmatmul.f32.gmra.mxu0 %v785
        %v960 = vpop.f32.mrf.mxu0
        %v961 = vadd.f32 %v839, %v960
        %962 = vmatmul.f32.gmra.mxu0 %v786
        %v963 = vpop.f32.mrf.mxu0
        %v964 = vadd.f32 %v839, %v963
        %965 = vdwg.mxu0
        %v966 = vld [vmem:[#allocation5] sm:$0xff]
        %v967 = vld [vmem:[#allocation5 + $0x8] sm:$0xff]
        %v968 = vld [vmem:[#allocation5 + $0x10] sm:$0xff]
        %v969 = vld [vmem:[#allocation5 + $0x18] sm:$0xff]
        %v970 = vld [vmem:[#allocation5 + $0x20] sm:$0xff]
        %v971 = vld [vmem:[#allocation5 + $0x28] sm:$0xff]
        %v972 = vld [vmem:[#allocation5 + $0x30] sm:$0xff]
        %v973 = vld [vmem:[#allocation5 + $0x38] sm:$0xff]
        %v974 = vld [vmem:[#allocation5 + $0x40] sm:$0xff]
        %v975 = vld [vmem:[#allocation5 + $0x48] sm:$0xff]
        %v976 = vld [vmem:[#allocation5 + $0x50] sm:$0xff]
        %v977 = vld [vmem:[#allocation5 + $0x58] sm:$0xff]
        %v978 = vld [vmem:[#allocation5 + $0x60] sm:$0xff]
        %v979 = vld [vmem:[#allocation5 + $0x68] sm:$0xff]
        %v980 = vld [vmem:[#allocation5 + $0x70] sm:$0xff]
        %v981 = vld [vmem:[#allocation5 + $0x78] sm:$0xff]
        %v982 = vmul.f32 %v861, %v966
        %v983 = vmul.f32 %v864, %v967
        %v984 = vmul.f32 %v861, %v968
        %v985 = vmul.f32 %v864, %v969
        %v986 = vmul.f32 %v861, %v970
        %v987 = vmul.f32 %v864, %v971
        %v988 = vmul.f32 %v861, %v972
        %v989 = vmul.f32 %v864, %v973
        %v990 = vmul.f32 %v861, %v974
        %v991 = vmul.f32 %v864, %v975
        %v992 = vmul.f32 %v861, %v976
        %v993 = vmul.f32 %v864, %v977
        %v994 = vmul.f32 %v861, %v978
        %v995 = vmul.f32 %v864, %v979
        %v996 = vmul.f32 %v861, %v980
        %v997 = vmul.f32 %v864, %v981
        %998 = vmatpush.xpose.msra.mxu0 0.0
        %999 = vmatpush.xpose.msra.mxu0 0.0
        %1000 = vmatpush.xpose.msra.mxu0 0.0
        %1001 = vmatpush.xpose.msra.mxu0 0.0
        %1002 = vmatpush.xpose.msra.mxu0 0.0
        %1003 = vmatpush.xpose.msra.mxu0 0.0
        %1004 = vmatpush.xpose.msra.mxu0 0.0
        %1005 = vmatpush.xpose.msra.mxu0 0.0
        %1006 = vmatpush.xpose.msra.mxu0 0.0
        %1007 = vmatpush.xpose.msra.mxu0 0.0
        %1008 = vmatpush.xpose.msra.mxu0 0.0
        %1009 = vmatpush.xpose.msra.mxu0 0.0
        %1010 = vmatpush.xpose.msra.mxu0 0.0
        %1011 = vmatpush.xpose.msra.mxu0 0.0
        %1012 = vmatpush.xpose.msra.mxu0 %v905
        %1013 = vmatpush.xpose.msra.mxu0 %v902
        %1014 = vmatmul.f32.gmra.mxu0 %v982
        %v1015 = vpop.f32.mrf.mxu0
        %v1016 = vadd.f32 0.0, %v1015
        %1017 = vmatmul.f32.gmra.mxu0 %v983
        %v1018 = vpop.f32.mrf.mxu0
        %v1019 = vadd.f32 0.0, %v1018
        %1020 = vmatmul.f32.gmra.mxu0 %v984
        %v1021 = vpop.f32.mrf.mxu0
        %v1022 = vadd.f32 0.0, %v1021
        %1023 = vmatmul.f32.gmra.mxu0 %v985
        %v1024 = vpop.f32.mrf.mxu0
        %v1025 = vadd.f32 0.0, %v1024
        %1026 = vmatmul.f32.gmra.mxu0 %v986
        %v1027 = vpop.f32.mrf.mxu0
        %v1028 = vadd.f32 0.0, %v1027
        %1029 = vmatmul.f32.gmra.mxu0 %v987
        %v1030 = vpop.f32.mrf.mxu0
        %v1031 = vadd.f32 0.0, %v1030
        %1032 = vmatmul.f32.gmra.mxu0 %v988
        %v1033 = vpop.f32.mrf.mxu0
        %v1034 = vadd.f32 0.0, %v1033
        %1035 = vmatmul.f32.gmra.mxu0 %v989
        %v1036 = vpop.f32.mrf.mxu0
        %v1037 = vadd.f32 0.0, %v1036
        %1038 = vmatmul.f32.gmra.mxu0 %v990
        %v1039 = vpop.f32.mrf.mxu0
        %v1040 = vadd.f32 0.0, %v1039
        %1041 = vmatmul.f32.gmra.mxu0 %v991
        %v1042 = vpop.f32.mrf.mxu0
        %v1043 = vadd.f32 0.0, %v1042
        %1044 = vmatmul.f32.gmra.mxu0 %v992
        %v1045 = vpop.f32.mrf.mxu0
        %v1046 = vadd.f32 0.0, %v1045
        %1047 = vmatmul.f32.gmra.mxu0 %v993
        %v1048 = vpop.f32.mrf.mxu0
        %v1049 = vadd.f32 0.0, %v1048
        %1050 = vmatmul.f32.gmra.mxu0 %v994
        %v1051 = vpop.f32.mrf.mxu0
        %v1052 = vadd.f32 0.0, %v1051
        %1053 = vmatmul.f32.gmra.mxu0 %v995
        %v1054 = vpop.f32.mrf.mxu0
        %v1055 = vadd.f32 0.0, %v1054
        %1056 = vmatmul.f32.gmra.mxu0 %v996
        %v1057 = vpop.f32.mrf.mxu0
        %v1058 = vadd.f32 0.0, %v1057
        %1059 = vmatmul.f32.gmra.mxu0 %v997
        %v1060 = vpop.f32.mrf.mxu0
        %v1061 = vadd.f32 0.0, %v1060
        %1062 = vdwg.mxu0
        %vm1063 = vcmask 130048
        %v1064 = vsel %vm1063, %v1016, -inf
        %1065 = vmax.xlane.f32.xlu0 %v1064
        %v1066 = vpop.xlane.xlu0 %1065
        %v1067 = vsel %vm1063, %v1019, -inf
        %1068 = vmax.xlane.f32.xlu0 %v1067
        %v1069 = vpop.xlane.xlu0 %1068
        %v1070 = vsel %vm1063, %v1022, -inf
        %1071 = vmax.xlane.f32.xlu0 %v1070
        %v1072 = vpop.xlane.xlu0 %1071
        %v1073 = vsel %vm1063, %v1025, -inf
        %1074 = vmax.xlane.f32.xlu0 %v1073
        %v1075 = vpop.xlane.xlu0 %1074
        %v1076 = vsel %vm1063, %v1028, -inf
        %1077 = vmax.xlane.f32.xlu0 %v1076
        %v1078 = vpop.xlane.xlu0 %1077
        %v1079 = vsel %vm1063, %v1031, -inf
        %1080 = vmax.xlane.f32.xlu0 %v1079
        %v1081 = vpop.xlane.xlu0 %1080
        %v1082 = vsel %vm1063, %v1034, -inf
        %1083 = vmax.xlane.f32.xlu0 %v1082
        %v1084 = vpop.xlane.xlu0 %1083
        %v1085 = vsel %vm1063, %v1037, -inf
        %1086 = vmax.xlane.f32.xlu0 %v1085
        %v1087 = vpop.xlane.xlu0 %1086
        %v1088 = vsel %vm1063, %v1040, -inf
        %1089 = vmax.xlane.f32.xlu0 %v1088
        %v1090 = vpop.xlane.xlu0 %1089
        %v1091 = vsel %vm1063, %v1043, -inf
        %1092 = vmax.xlane.f32.xlu0 %v1091
        %v1093 = vpop.xlane.xlu0 %1092
        %v1094 = vsel %vm1063, %v1046, -inf
        %1095 = vmax.xlane.f32.xlu0 %v1094
        %v1096 = vpop.xlane.xlu0 %1095
        %v1097 = vsel %vm1063, %v1049, -inf
        %1098 = vmax.xlane.f32.xlu0 %v1097
        %v1099 = vpop.xlane.xlu0 %1098
        %v1100 = vsel %vm1063, %v1052, -inf
        %1101 = vmax.xlane.f32.xlu0 %v1100
        %v1102 = vpop.xlane.xlu0 %1101
        %v1103 = vsel %vm1063, %v1055, -inf
        %1104 = vmax.xlane.f32.xlu0 %v1103
        %v1105 = vpop.xlane.xlu0 %1104
        %v1106 = vsel %vm1063, %v1058, -inf
        %1107 = vmax.xlane.f32.xlu0 %v1106
        %v1108 = vpop.xlane.xlu0 %1107
        %v1109 = vsel %vm1063, %v1061, -inf
        %1110 = vmax.xlane.f32.xlu0 %v1109
        %v1111 = vpop.xlane.xlu0 %1110
        %v1112 = vsub.f32 %v1016, %v1066
        %v1113 = vsub.f32 %v1019, %v1069
        %v1114 = vsub.f32 %v1022, %v1072
        %v1115 = vsub.f32 %v1025, %v1075
        %v1116 = vsub.f32 %v1028, %v1078
        %v1117 = vsub.f32 %v1031, %v1081
        %v1118 = vsub.f32 %v1034, %v1084
        %v1119 = vsub.f32 %v1037, %v1087
        %v1120 = vsub.f32 %v1040, %v1090
        %v1121 = vsub.f32 %v1043, %v1093
        %v1122 = vsub.f32 %v1046, %v1096
        %v1123 = vsub.f32 %v1049, %v1099
        %v1124 = vsub.f32 %v1052, %v1102
        %v1125 = vsub.f32 %v1055, %v1105
        %v1126 = vsub.f32 %v1058, %v1108
        %v1127 = vsub.f32 %v1061, %v1111
        %v1128 = vmul.f32 %v1112, 1.442695
        %v1129 = vpow.pop %v1128
        %v1130 = vmul.f32 %v1113, 1.442695
        %v1131 = vpow.pop %v1130
        %v1132 = vmul.f32 %v1114, 1.442695
        %v1133 = vpow.pop %v1132
        %v1134 = vmul.f32 %v1115, 1.442695
        %v1135 = vpow.pop %v1134
        %v1136 = vmul.f32 %v1116, 1.442695
        %v1137 = vpow.pop %v1136
        %v1138 = vmul.f32 %v1117, 1.442695
        %v1139 = vpow.pop %v1138
        %v1140 = vmul.f32 %v1118, 1.442695
        %v1141 = vpow.pop %v1140
        %v1142 = vmul.f32 %v1119, 1.442695
        %v1143 = vpow.pop %v1142
        %v1144 = vmul.f32 %v1120, 1.442695
        %v1145 = vpow.pop %v1144
        %v1146 = vmul.f32 %v1121, 1.442695
        %v1147 = vpow.pop %v1146
        %v1148 = vmul.f32 %v1122, 1.442695
        %v1149 = vpow.pop %v1148
        %v1150 = vmul.f32 %v1123, 1.442695
        %v1151 = vpow.pop %v1150
        %v1152 = vmul.f32 %v1124, 1.442695
        %v1153 = vpow.pop %v1152
        %v1154 = vmul.f32 %v1125, 1.442695
        %v1155 = vpow.pop %v1154
        %v1156 = vmul.f32 %v1126, 1.442695
        %v1157 = vpow.pop %v1156
        %v1158 = vmul.f32 %v1127, 1.442695
        %v1159 = vpow.pop %v1158
        %v1160 = vsel %vm1063, %v1129, 0.0
        %1161 = vadd.xlane.f32.xlu0 %v1160
        %v1162 = vpop.xlane.xlu0 %1161
        %v1163 = vsel %vm1063, %v1131, 0.0
        %1164 = vadd.xlane.f32.xlu0 %v1163
        %v1165 = vpop.xlane.xlu0 %1164
        %v1166 = vsel %vm1063, %v1133, 0.0
        %1167 = vadd.xlane.f32.xlu0 %v1166
        %v1168 = vpop.xlane.xlu0 %1167
        %v1169 = vsel %vm1063, %v1135, 0.0
        %1170 = vadd.xlane.f32.xlu0 %v1169
        %v1171 = vpop.xlane.xlu0 %1170
        %v1172 = vsel %vm1063, %v1137, 0.0
        %1173 = vadd.xlane.f32.xlu0 %v1172
        %v1174 = vpop.xlane.xlu0 %1173
        %v1175 = vsel %vm1063, %v1139, 0.0
        %1176 = vadd.xlane.f32.xlu0 %v1175
        %v1177 = vpop.xlane.xlu0 %1176
        %v1178 = vsel %vm1063, %v1141, 0.0
        %1179 = vadd.xlane.f32.xlu0 %v1178
        %v1180 = vpop.xlane.xlu0 %1179
        %v1181 = vsel %vm1063, %v1143, 0.0
        %1182 = vadd.xlane.f32.xlu0 %v1181
        %v1183 = vpop.xlane.xlu0 %1182
        %v1184 = vsel %vm1063, %v1145, 0.0
        %1185 = vadd.xlane.f32.xlu0 %v1184
        %v1186 = vpop.xlane.xlu0 %1185
        %v1187 = vsel %vm1063, %v1147, 0.0
        %1188 = vadd.xlane.f32.xlu0 %v1187
        %v1189 = vpop.xlane.xlu0 %1188
        %v1190 = vsel %vm1063, %v1149, 0.0
        %1191 = vadd.xlane.f32.xlu0 %v1190
        %v1192 = vpop.xlane.xlu0 %1191
        %v1193 = vsel %vm1063, %v1151, 0.0
        %1194 = vadd.xlane.f32.xlu0 %v1193
        %v1195 = vpop.xlane.xlu0 %1194
        %v1196 = vsel %vm1063, %v1153, 0.0
        %1197 = vadd.xlane.f32.xlu0 %v1196
        %v1198 = vpop.xlane.xlu0 %1197
        %v1199 = vsel %vm1063, %v1155, 0.0
        %1200 = vadd.xlane.f32.xlu0 %v1199
        %v1201 = vpop.xlane.xlu0 %1200
        %v1202 = vsel %vm1063, %v1157, 0.0
        %1203 = vadd.xlane.f32.xlu0 %v1202
        %v1204 = vpop.xlane.xlu0 %1203
        %v1205 = vsel %vm1063, %v1159, 0.0
        %1206 = vadd.xlane.f32.xlu0 %v1205
        %v1207 = vpop.xlane.xlu0 %1206
        %v1208 = vrcp.pop %v1162
        %v1209 = vmul.f32 %v1162, %v1208
        %v1210 = vsub.f32 1.0, %v1209
        %v1211 = vmul.f32 %v1208, %v1210
        %v1212 = vadd.f32 %v1208, %v1211
        %vm1213 = vweird.f32 %v1162
        %vm1214 = vweird.f32 %v1208
        %vm1215 = vmor %vm1213, %vm1214
        %v1216 = vsel %vm1215, %v1208, %v1212
        %v1217 = vand.u32 2147483647, %v1162
        %vm1218 = vcmp.eq.f32.partialorder %v1217, 8.507059e+37
        %v1219 = vand.u32 %v1162, 2147483648
        %v1220 = vor.u32 1.1754944e-38, %v1219
        %v1221 = vsel %vm1218, %v1220, %v1216
        %v1222 = vmul.f32 %v1129, %v1221
        %v1223 = vrcp.pop %v1165
        %v1224 = vmul.f32 %v1165, %v1223
        %v1225 = vsub.f32 1.0, %v1224
        %v1226 = vmul.f32 %v1223, %v1225
        %v1227 = vadd.f32 %v1223, %v1226
        %vm1228 = vweird.f32 %v1165
        %vm1229 = vweird.f32 %v1223
        %vm1230 = vmor %vm1228, %vm1229
        %v1231 = vsel %vm1230, %v1223, %v1227
        %v1232 = vand.u32 2147483647, %v1165
        %vm1233 = vcmp.eq.f32.partialorder %v1232, 8.507059e+37
        %v1234 = vand.u32 %v1165, 2147483648
        %v1235 = vor.u32 1.1754944e-38, %v1234
        %v1236 = vsel %vm1233, %v1235, %v1231
        %v1237 = vmul.f32 %v1131, %v1236
        %v1238 = vrcp.pop %v1168
        %v1239 = vmul.f32 %v1168, %v1238
        %v1240 = vsub.f32 1.0, %v1239
        %v1241 = vmul.f32 %v1238, %v1240
        %v1242 = vadd.f32 %v1238, %v1241
        %vm1243 = vweird.f32 %v1168
        %vm1244 = vweird.f32 %v1238
        %vm1245 = vmor %vm1243, %vm1244
        %v1246 = vsel %vm1245, %v1238, %v1242
        %v1247 = vand.u32 2147483647, %v1168
        %vm1248 = vcmp.eq.f32.partialorder %v1247, 8.507059e+37
        %v1249 = vand.u32 %v1168, 2147483648
        %v1250 = vor.u32 1.1754944e-38, %v1249
        %v1251 = vsel %vm1248, %v1250, %v1246
        %v1252 = vmul.f32 %v1133, %v1251
        %v1253 = vrcp.pop %v1171
        %v1254 = vmul.f32 %v1171, %v1253
        %v1255 = vsub.f32 1.0, %v1254
        %v1256 = vmul.f32 %v1253, %v1255
        %v1257 = vadd.f32 %v1253, %v1256
        %vm1258 = vweird.f32 %v1171
        %vm1259 = vweird.f32 %v1253
        %vm1260 = vmor %vm1258, %vm1259
        %v1261 = vsel %vm1260, %v1253, %v1257
        %v1262 = vand.u32 2147483647, %v1171
        %vm1263 = vcmp.eq.f32.partialorder %v1262, 8.507059e+37
        %v1264 = vand.u32 %v1171, 2147483648
        %v1265 = vor.u32 1.1754944e-38, %v1264
        %v1266 = vsel %vm1263, %v1265, %v1261
        %v1267 = vmul.f32 %v1135, %v1266
        %v1268 = vrcp.pop %v1174
        %v1269 = vmul.f32 %v1174, %v1268
        %v1270 = vsub.f32 1.0, %v1269
        %v1271 = vmul.f32 %v1268, %v1270
        %v1272 = vadd.f32 %v1268, %v1271
        %vm1273 = vweird.f32 %v1174
        %vm1274 = vweird.f32 %v1268
        %vm1275 = vmor %vm1273, %vm1274
        %v1276 = vsel %vm1275, %v1268, %v1272
        %v1277 = vand.u32 2147483647, %v1174
        %vm1278 = vcmp.eq.f32.partialorder %v1277, 8.507059e+37
        %v1279 = vand.u32 %v1174, 2147483648
        %v1280 = vor.u32 1.1754944e-38, %v1279
        %v1281 = vsel %vm1278, %v1280, %v1276
        %v1282 = vmul.f32 %v1137, %v1281
        %v1283 = vrcp.pop %v1177
        %v1284 = vmul.f32 %v1177, %v1283
        %v1285 = vsub.f32 1.0, %v1284
        %v1286 = vmul.f32 %v1283, %v1285
        %v1287 = vadd.f32 %v1283, %v1286
        %vm1288 = vweird.f32 %v1177
        %vm1289 = vweird.f32 %v1283
        %vm1290 = vmor %vm1288, %vm1289
        %v1291 = vsel %vm1290, %v1283, %v1287
        %v1292 = vand.u32 2147483647, %v1177
        %vm1293 = vcmp.eq.f32.partialorder %v1292, 8.507059e+37
        %v1294 = vand.u32 %v1177, 2147483648
        %v1295 = vor.u32 1.1754944e-38, %v1294
        %v1296 = vsel %vm1293, %v1295, %v1291
        %v1297 = vmul.f32 %v1139, %v1296
        %v1298 = vrcp.pop %v1180
        %v1299 = vmul.f32 %v1180, %v1298
        %v1300 = vsub.f32 1.0, %v1299
        %v1301 = vmul.f32 %v1298, %v1300
        %v1302 = vadd.f32 %v1298, %v1301
        %vm1303 = vweird.f32 %v1180
        %vm1304 = vweird.f32 %v1298
        %vm1305 = vmor %vm1303, %vm1304
        %v1306 = vsel %vm1305, %v1298, %v1302
        %v1307 = vand.u32 2147483647, %v1180
        %vm1308 = vcmp.eq.f32.partialorder %v1307, 8.507059e+37
        %v1309 = vand.u32 %v1180, 2147483648
        %v1310 = vor.u32 1.1754944e-38, %v1309
        %v1311 = vsel %vm1308, %v1310, %v1306
        %v1312 = vmul.f32 %v1141, %v1311
        %v1313 = vrcp.pop %v1183
        %v1314 = vmul.f32 %v1183, %v1313
        %v1315 = vsub.f32 1.0, %v1314
        %v1316 = vmul.f32 %v1313, %v1315
        %v1317 = vadd.f32 %v1313, %v1316
        %vm1318 = vweird.f32 %v1183
        %vm1319 = vweird.f32 %v1313
        %vm1320 = vmor %vm1318, %vm1319
        %v1321 = vsel %vm1320, %v1313, %v1317
        %v1322 = vand.u32 2147483647, %v1183
        %vm1323 = vcmp.eq.f32.partialorder %v1322, 8.507059e+37
        %v1324 = vand.u32 %v1183, 2147483648
        %v1325 = vor.u32 1.1754944e-38, %v1324
        %v1326 = vsel %vm1323, %v1325, %v1321
        %v1327 = vmul.f32 %v1143, %v1326
        %v1328 = vrcp.pop %v1186
        %v1329 = vmul.f32 %v1186, %v1328
        %v1330 = vsub.f32 1.0, %v1329
        %v1331 = vmul.f32 %v1328, %v1330
        %v1332 = vadd.f32 %v1328, %v1331
        %vm1333 = vweird.f32 %v1186
        %vm1334 = vweird.f32 %v1328
        %vm1335 = vmor %vm1333, %vm1334
        %v1336 = vsel %vm1335, %v1328, %v1332
        %v1337 = vand.u32 2147483647, %v1186
        %vm1338 = vcmp.eq.f32.partialorder %v1337, 8.507059e+37
        %v1339 = vand.u32 %v1186, 2147483648
        %v1340 = vor.u32 1.1754944e-38, %v1339
        %v1341 = vsel %vm1338, %v1340, %v1336
        %v1342 = vmul.f32 %v1145, %v1341
        %v1343 = vrcp.pop %v1189
        %v1344 = vmul.f32 %v1189, %v1343
        %v1345 = vsub.f32 1.0, %v1344
        %v1346 = vmul.f32 %v1343, %v1345
        %v1347 = vadd.f32 %v1343, %v1346
        %vm1348 = vweird.f32 %v1189
        %vm1349 = vweird.f32 %v1343
        %vm1350 = vmor %vm1348, %vm1349
        %v1351 = vsel %vm1350, %v1343, %v1347
        %v1352 = vand.u32 2147483647, %v1189
        %vm1353 = vcmp.eq.f32.partialorder %v1352, 8.507059e+37
        %v1354 = vand.u32 %v1189, 2147483648
        %v1355 = vor.u32 1.1754944e-38, %v1354
        %v1356 = vsel %vm1353, %v1355, %v1351
        %v1357 = vmul.f32 %v1147, %v1356
        %v1358 = vrcp.pop %v1192
        %v1359 = vmul.f32 %v1192, %v1358
        %v1360 = vsub.f32 1.0, %v1359
        %v1361 = vmul.f32 %v1358, %v1360
        %v1362 = vadd.f32 %v1358, %v1361
        %vm1363 = vweird.f32 %v1192
        %vm1364 = vweird.f32 %v1358
        %vm1365 = vmor %vm1363, %vm1364
        %v1366 = vsel %vm1365, %v1358, %v1362
        %v1367 = vand.u32 2147483647, %v1192
        %vm1368 = vcmp.eq.f32.partialorder %v1367, 8.507059e+37
        %v1369 = vand.u32 %v1192, 2147483648
        %v1370 = vor.u32 1.1754944e-38, %v1369
        %v1371 = vsel %vm1368, %v1370, %v1366
        %v1372 = vmul.f32 %v1149, %v1371
        %v1373 = vrcp.pop %v1195
        %v1374 = vmul.f32 %v1195, %v1373
        %v1375 = vsub.f32 1.0, %v1374
        %v1376 = vmul.f32 %v1373, %v1375
        %v1377 = vadd.f32 %v1373, %v1376
        %vm1378 = vweird.f32 %v1195
        %vm1379 = vweird.f32 %v1373
        %vm1380 = vmor %vm1378, %vm1379
        %v1381 = vsel %vm1380, %v1373, %v1377
        %v1382 = vand.u32 2147483647, %v1195
        %vm1383 = vcmp.eq.f32.partialorder %v1382, 8.507059e+37
        %v1384 = vand.u32 %v1195, 2147483648
        %v1385 = vor.u32 1.1754944e-38, %v1384
        %v1386 = vsel %vm1383, %v1385, %v1381
        %v1387 = vmul.f32 %v1151, %v1386
        %v1388 = vrcp.pop %v1198
        %v1389 = vmul.f32 %v1198, %v1388
        %v1390 = vsub.f32 1.0, %v1389
        %v1391 = vmul.f32 %v1388, %v1390
        %v1392 = vadd.f32 %v1388, %v1391
        %vm1393 = vweird.f32 %v1198
        %vm1394 = vweird.f32 %v1388
        %vm1395 = vmor %vm1393, %vm1394
        %v1396 = vsel %vm1395, %v1388, %v1392
        %v1397 = vand.u32 2147483647, %v1198
        %vm1398 = vcmp.eq.f32.partialorder %v1397, 8.507059e+37
        %v1399 = vand.u32 %v1198, 2147483648
        %v1400 = vor.u32 1.1754944e-38, %v1399
        %v1401 = vsel %vm1398, %v1400, %v1396
        %v1402 = vmul.f32 %v1153, %v1401
        %v1403 = vrcp.pop %v1201
        %v1404 = vmul.f32 %v1201, %v1403
        %v1405 = vsub.f32 1.0, %v1404
        %v1406 = vmul.f32 %v1403, %v1405
        %v1407 = vadd.f32 %v1403, %v1406
        %vm1408 = vweird.f32 %v1201
        %vm1409 = vweird.f32 %v1403
        %vm1410 = vmor %vm1408, %vm1409
        %v1411 = vsel %vm1410, %v1403, %v1407
        %v1412 = vand.u32 2147483647, %v1201
        %vm1413 = vcmp.eq.f32.partialorder %v1412, 8.507059e+37
        %v1414 = vand.u32 %v1201, 2147483648
        %v1415 = vor.u32 1.1754944e-38, %v1414
        %v1416 = vsel %vm1413, %v1415, %v1411
        %v1417 = vmul.f32 %v1155, %v1416
        %v1418 = vrcp.pop %v1204
        %v1419 = vmul.f32 %v1204, %v1418
        %v1420 = vsub.f32 1.0, %v1419
        %v1421 = vmul.f32 %v1418, %v1420
        %v1422 = vadd.f32 %v1418, %v1421
        %vm1423 = vweird.f32 %v1204
        %vm1424 = vweird.f32 %v1418
        %vm1425 = vmor %vm1423, %vm1424
        %v1426 = vsel %vm1425, %v1418, %v1422
        %v1427 = vand.u32 2147483647, %v1204
        %vm1428 = vcmp.eq.f32.partialorder %v1427, 8.507059e+37
        %v1429 = vand.u32 %v1204, 2147483648
        %v1430 = vor.u32 1.1754944e-38, %v1429
        %v1431 = vsel %vm1428, %v1430, %v1426
        %v1432 = vmul.f32 %v1157, %v1431
        %v1433 = vrcp.pop %v1207
        %v1434 = vmul.f32 %v1207, %v1433
        %v1435 = vsub.f32 1.0, %v1434
        %v1436 = vmul.f32 %v1433, %v1435
        %v1437 = vadd.f32 %v1433, %v1436
        %vm1438 = vweird.f32 %v1207
        %vm1439 = vweird.f32 %v1433
        %vm1440 = vmor %vm1438, %vm1439
        %v1441 = vsel %vm1440, %v1433, %v1437
        %v1442 = vand.u32 2147483647, %v1207
        %vm1443 = vcmp.eq.f32.partialorder %v1442, 8.507059e+37
        %v1444 = vand.u32 %v1207, 2147483648
        %v1445 = vor.u32 1.1754944e-38, %v1444
        %v1446 = vsel %vm1443, %v1445, %v1441
        %v1447 = vmul.f32 %v1159, %v1446
        %v1449 = vsel %vm1063, %v1222, 0
        %v1452 = vsel %vm1063, %v1237, 0
        %v1455 = vsel %vm1063, %v1252, 0
        %v1458 = vsel %vm1063, %v1267, 0
        %v1461 = vsel %vm1063, %v1282, 0
        %v1464 = vsel %vm1063, %v1297, 0
        %v1467 = vsel %vm1063, %v1312, 0
        %v1470 = vsel %vm1063, %v1327, 0
        %v1473 = vsel %vm1063, %v1342, 0
        %v1476 = vsel %vm1063, %v1357, 0
        %v1479 = vsel %vm1063, %v1372, 0
        %v1482 = vsel %vm1063, %v1387, 0
        %v1485 = vsel %vm1063, %v1402, 0
        %v1488 = vsel %vm1063, %v1417, 0
        %v1491 = vsel %vm1063, %v1432, 0
        %v1494 = vsel %vm1063, %v1447, 0
        %1496 = vmatpush.msra.mxu0 0.0
        %1497 = vmatpush.msra.mxu0 0.0
        %1498 = vmatpush.msra.mxu0 0.0
        %1499 = vmatpush.msra.mxu0 0.0
        %1500 = vmatpush.msra.mxu0 0.0
        %1501 = vmatpush.msra.mxu0 0.0
        %1502 = vmatpush.msra.mxu0 0.0
        %1503 = vmatpush.msra.mxu0 0.0
        %1504 = vmatpush.msra.mxu0 0.0
        %1505 = vmatpush.msra.mxu0 0.0
        %1506 = vmatpush.msra.mxu0 0.0
        %1507 = vmatpush.msra.mxu0 0.0
        %1508 = vmatpush.msra.mxu0 0.0
        %1509 = vmatpush.msra.mxu0 0.0
        %1510 = vmatpush.msra.mxu0 %v946
        %1511 = vmatpush.msra.mxu0 %v943
        %1512 = vmatmul.f32.gmra.mxu0 %v1449
        %v1513 = vpop.f32.mrf.mxu0
        %v1514 = vadd.f32 0.0, %v1513
        %1515 = vmatmul.f32.gmra.mxu0 %v1452
        %v1516 = vpop.f32.mrf.mxu0
        %v1517 = vadd.f32 0.0, %v1516
        %1518 = vmatmul.f32.gmra.mxu0 %v1455
        %v1519 = vpop.f32.mrf.mxu0
        %v1520 = vadd.f32 0.0, %v1519
        %1521 = vmatmul.f32.gmra.mxu0 %v1458
        %v1522 = vpop.f32.mrf.mxu0
        %v1523 = vadd.f32 0.0, %v1522
        %1524 = vmatmul.f32.gmra.mxu0 %v1461
        %v1525 = vpop.f32.mrf.mxu0
        %v1526 = vadd.f32 0.0, %v1525
        %1527 = vmatmul.f32.gmra.mxu0 %v1464
        %v1528 = vpop.f32.mrf.mxu0
        %v1529 = vadd.f32 0.0, %v1528
        %1530 = vmatmul.f32.gmra.mxu0 %v1467
        %v1531 = vpop.f32.mrf.mxu0
        %v1532 = vadd.f32 0.0, %v1531
        %1533 = vmatmul.f32.gmra.mxu0 %v1470
        %v1534 = vpop.f32.mrf.mxu0
        %v1535 = vadd.f32 0.0, %v1534
        %1536 = vmatmul.f32.gmra.mxu0 %v1473
        %v1537 = vpop.f32.mrf.mxu0
        %v1538 = vadd.f32 0.0, %v1537
        %1539 = vmatmul.f32.gmra.mxu0 %v1476
        %v1540 = vpop.f32.mrf.mxu0
        %v1541 = vadd.f32 0.0, %v1540
        %1542 = vmatmul.f32.gmra.mxu0 %v1479
        %v1543 = vpop.f32.mrf.mxu0
        %v1544 = vadd.f32 0.0, %v1543
        %1545 = vmatmul.f32.gmra.mxu0 %v1482
        %v1546 = vpop.f32.mrf.mxu0
        %v1547 = vadd.f32 0.0, %v1546
        %1548 = vmatmul.f32.gmra.mxu0 %v1485
        %v1549 = vpop.f32.mrf.mxu0
        %v1550 = vadd.f32 0.0, %v1549
        %1551 = vmatmul.f32.gmra.mxu0 %v1488
        %v1552 = vpop.f32.mrf.mxu0
        %v1553 = vadd.f32 0.0, %v1552
        %1554 = vmatmul.f32.gmra.mxu0 %v1491
        %v1555 = vpop.f32.mrf.mxu0
        %v1556 = vadd.f32 0.0, %v1555
        %1557 = vmatmul.f32.gmra.mxu0 %v1494
        %v1558 = vpop.f32.mrf.mxu0
        %v1559 = vadd.f32 0.0, %v1558
        %1560 = vdwg.mxu0
        %v1561 = vmul.f32 %v1514, %v966
        %v1562 = vmul.f32 %v1517, %v967
        %v1563 = vmul.f32 %v1520, %v968
        %v1564 = vmul.f32 %v1523, %v969
        %v1565 = vmul.f32 %v1526, %v970
        %v1566 = vmul.f32 %v1529, %v971
        %v1567 = vmul.f32 %v1532, %v972
        %v1568 = vmul.f32 %v1535, %v973
        %v1569 = vmul.f32 %v1538, %v974
        %v1570 = vmul.f32 %v1541, %v975
        %v1571 = vmul.f32 %v1544, %v976
        %v1572 = vmul.f32 %v1547, %v977
        %v1573 = vmul.f32 %v1550, %v978
        %v1574 = vmul.f32 %v1553, %v979
        %v1575 = vmul.f32 %v1556, %v980
        %v1576 = vmul.f32 %v1559, %v981
        %v1577 = vadd.f32 %v1561, %v1563
        %v1578 = vadd.f32 %v1562, %v1564
        %v1579 = vadd.f32 %v1577, %v1565
        %v1580 = vadd.f32 %v1578, %v1566
        %v1581 = vadd.f32 %v1579, %v1567
        %v1582 = vadd.f32 %v1580, %v1568
        %v1583 = vadd.f32 %v1581, %v1569
        %v1584 = vadd.f32 %v1582, %v1570
        %v1585 = vadd.f32 %v1583, %v1571
        %v1586 = vadd.f32 %v1584, %v1572
        %v1587 = vadd.f32 %v1585, %v1573
        %v1588 = vadd.f32 %v1586, %v1574
        %v1589 = vadd.f32 %v1587, %v1575
        %v1590 = vadd.f32 %v1588, %v1576
        %v1591 = vmul.f32 %v867, %v966
        %v1592 = vmul.f32 %v870, %v967
        %v1593 = vmul.f32 %v867, %v968
        %v1594 = vmul.f32 %v870, %v969
        %v1595 = vmul.f32 %v867, %v970
        %v1596 = vmul.f32 %v870, %v971
        %v1597 = vmul.f32 %v867, %v972
        %v1598 = vmul.f32 %v870, %v973
        %v1599 = vmul.f32 %v867, %v974
        %v1600 = vmul.f32 %v870, %v975
        %v1601 = vmul.f32 %v867, %v976
        %v1602 = vmul.f32 %v870, %v977
        %v1603 = vmul.f32 %v867, %v978
        %v1604 = vmul.f32 %v870, %v979
        %v1605 = vmul.f32 %v867, %v980
        %v1606 = vmul.f32 %v870, %v981
        %1607 = vmatpush.xpose.msra.mxu0 0.0
        %1608 = vmatpush.xpose.msra.mxu0 0.0
        %1609 = vmatpush.xpose.msra.mxu0 0.0
        %1610 = vmatpush.xpose.msra.mxu0 0.0
        %1611 = vmatpush.xpose.msra.mxu0 0.0
        %1612 = vmatpush.xpose.msra.mxu0 0.0
        %1613 = vmatpush.xpose.msra.mxu0 0.0
        %1614 = vmatpush.xpose.msra.mxu0 0.0
        %1615 = vmatpush.xpose.msra.mxu0 0.0
        %1616 = vmatpush.xpose.msra.mxu0 0.0
        %1617 = vmatpush.xpose.msra.mxu0 0.0
        %1618 = vmatpush.xpose.msra.mxu0 0.0
        %1619 = vmatpush.xpose.msra.mxu0 0.0
        %1620 = vmatpush.xpose.msra.mxu0 0.0
        %1621 = vmatpush.xpose.msra.mxu0 %v911
        %1622 = vmatpush.xpose.msra.mxu0 %v908
        %1623 = vmatmul.f32.gmra.mxu0 %v1591
        %v1624 = vpop.f32.mrf.mxu0
        %v1625 = vadd.f32 0.0, %v1624
        %1626 = vmatmul.f32.gmra.mxu0 %v1592
        %v1627 = vpop.f32.mrf.mxu0
        %v1628 = vadd.f32 0.0, %v1627
        %1629 = vmatmul.f32.gmra.mxu0 %v1593
        %v1630 = vpop.f32.mrf.mxu0
        %v1631 = vadd.f32 0.0, %v1630
        %1632 = vmatmul.f32.gmra.mxu0 %v1594
        %v1633 = vpop.f32.mrf.mxu0
        %v1634 = vadd.f32 0.0, %v1633
        %1635 = vmatmul.f32.gmra.mxu0 %v1595
        %v1636 = vpop.f32.mrf.mxu0
        %v1637 = vadd.f32 0.0, %v1636
        %1638 = vmatmul.f32.gmra.mxu0 %v1596
        %v1639 = vpop.f32.mrf.mxu0
        %v1640 = vadd.f32 0.0, %v1639
        %1641 = vmatmul.f32.gmra.mxu0 %v1597
        %v1642 = vpop.f32.mrf.mxu0
        %v1643 = vadd.f32 0.0, %v1642
        %1644 = vmatmul.f32.gmra.mxu0 %v1598
        %v1645 = vpop.f32.mrf.mxu0
        %v1646 = vadd.f32 0.0, %v1645
        %1647 = vmatmul.f32.gmra.mxu0 %v1599
        %v1648 = vpop.f32.mrf.mxu0
        %v1649 = vadd.f32 0.0, %v1648
        %1650 = vmatmul.f32.gmra.mxu0 %v1600
        %v1651 = vpop.f32.mrf.mxu0
        %v1652 = vadd.f32 0.0, %v1651
        %1653 = vmatmul.f32.gmra.mxu0 %v1601
        %v1654 = vpop.f32.mrf.mxu0
        %v1655 = vadd.f32 0.0, %v1654
        %1656 = vmatmul.f32.gmra.mxu0 %v1602
        %v1657 = vpop.f32.mrf.mxu0
        %v1658 = vadd.f32 0.0, %v1657
        %1659 = vmatmul.f32.gmra.mxu0 %v1603
        %v1660 = vpop.f32.mrf.mxu0
        %v1661 = vadd.f32 0.0, %v1660
        %1662 = vmatmul.f32.gmra.mxu0 %v1604
        %v1663 = vpop.f32.mrf.mxu0
        %v1664 = vadd.f32 0.0, %v1663
        %1665 = vmatmul.f32.gmra.mxu0 %v1605
        %v1666 = vpop.f32.mrf.mxu0
        %v1667 = vadd.f32 0.0, %v1666
        %1668 = vmatmul.f32.gmra.mxu0 %v1606
        %v1669 = vpop.f32.mrf.mxu0
        %v1670 = vadd.f32 0.0, %v1669
        %1671 = vdwg.mxu0
        %v1672 = vsel %vm1063, %v1625, -inf
        %1673 = vmax.xlane.f32.xlu0 %v1672
        %v1674 = vpop.xlane.xlu0 %1673
        %v1675 = vsel %vm1063, %v1628, -inf
        %1676 = vmax.xlane.f32.xlu0 %v1675
        %v1677 = vpop.xlane.xlu0 %1676
        %v1678 = vsel %vm1063, %v1631, -inf
        %1679 = vmax.xlane.f32.xlu0 %v1678
        %v1680 = vpop.xlane.xlu0 %1679
        %v1681 = vsel %vm1063, %v1634, -inf
        %1682 = vmax.xlane.f32.xlu0 %v1681
        %v1683 = vpop.xlane.xlu0 %1682
        %v1684 = vsel %vm1063, %v1637, -inf
        %1685 = vmax.xlane.f32.xlu0 %v1684
        %v1686 = vpop.xlane.xlu0 %1685
        %v1687 = vsel %vm1063, %v1640, -inf
        %1688 = vmax.xlane.f32.xlu0 %v1687
        %v1689 = vpop.xlane.xlu0 %1688
        %v1690 = vsel %vm1063, %v1643, -inf
        %1691 = vmax.xlane.f32.xlu0 %v1690
        %v1692 = vpop.xlane.xlu0 %1691
        %v1693 = vsel %vm1063, %v1646, -inf
        %1694 = vmax.xlane.f32.xlu0 %v1693
        %v1695 = vpop.xlane.xlu0 %1694
        %v1696 = vsel %vm1063, %v1649, -inf
        %1697 = vmax.xlane.f32.xlu0 %v1696
        %v1698 = vpop.xlane.xlu0 %1697
        %v1699 = vsel %vm1063, %v1652, -inf
        %1700 = vmax.xlane.f32.xlu0 %v1699
        %v1701 = vpop.xlane.xlu0 %1700
        %v1702 = vsel %vm1063, %v1655, -inf
        %1703 = vmax.xlane.f32.xlu0 %v1702
        %v1704 = vpop.xlane.xlu0 %1703
        %v1705 = vsel %vm1063, %v1658, -inf
        %1706 = vmax.xlane.f32.xlu0 %v1705
        %v1707 = vpop.xlane.xlu0 %1706
        %v1708 = vsel %vm1063, %v1661, -inf
        %1709 = vmax.xlane.f32.xlu0 %v1708
        %v1710 = vpop.xlane.xlu0 %1709
        %v1711 = vsel %vm1063, %v1664, -inf
        %1712 = vmax.xlane.f32.xlu0 %v1711
        %v1713 = vpop.xlane.xlu0 %1712
        %v1714 = vsel %vm1063, %v1667, -inf
        %1715 = vmax.xlane.f32.xlu0 %v1714
        %v1716 = vpop.xlane.xlu0 %1715
        %v1717 = vsel %vm1063, %v1670, -inf
        %1718 = vmax.xlane.f32.xlu0 %v1717
        %v1719 = vpop.xlane.xlu0 %1718
        %v1720 = vsub.f32 %v1625, %v1674
        %v1721 = vsub.f32 %v1628, %v1677
        %v1722 = vsub.f32 %v1631, %v1680
        %v1723 = vsub.f32 %v1634, %v1683
        %v1724 = vsub.f32 %v1637, %v1686
        %v1725 = vsub.f32 %v1640, %v1689
        %v1726 = vsub.f32 %v1643, %v1692
        %v1727 = vsub.f32 %v1646, %v1695
        %v1728 = vsub.f32 %v1649, %v1698
        %v1729 = vsub.f32 %v1652, %v1701
        %v1730 = vsub.f32 %v1655, %v1704
        %v1731 = vsub.f32 %v1658, %v1707
        %v1732 = vsub.f32 %v1661, %v1710
        %v1733 = vsub.f32 %v1664, %v1713
        %v1734 = vsub.f32 %v1667, %v1716
        %v1735 = vsub.f32 %v1670, %v1719
        %v1736 = vmul.f32 %v1720, 1.442695
        %v1737 = vpow.pop %v1736
        %v1738 = vmul.f32 %v1721, 1.442695
        %v1739 = vpow.pop %v1738
        %v1740 = vmul.f32 %v1722, 1.442695
        %v1741 = vpow.pop %v1740
        %v1742 = vmul.f32 %v1723, 1.442695
        %v1743 = vpow.pop %v1742
        %v1744 = vmul.f32 %v1724, 1.442695
        %v1745 = vpow.pop %v1744
        %v1746 = vmul.f32 %v1725, 1.442695
        %v1747 = vpow.pop %v1746
        %v1748 = vmul.f32 %v1726, 1.442695
        %v1749 = vpow.pop %v1748
        %v1750 = vmul.f32 %v1727, 1.442695
        %v1751 = vpow.pop %v1750
        %v1752 = vmul.f32 %v1728, 1.442695
        %v1753 = vpow.pop %v1752
        %v1754 = vmul.f32 %v1729, 1.442695
        %v1755 = vpow.pop %v1754
        %v1756 = vmul.f32 %v1730, 1.442695
        %v1757 = vpow.pop %v1756
        %v1758 = vmul.f32 %v1731, 1.442695
        %v1759 = vpow.pop %v1758
        %v1760 = vmul.f32 %v1732, 1.442695
        %v1761 = vpow.pop %v1760
        %v1762 = vmul.f32 %v1733, 1.442695
        %v1763 = vpow.pop %v1762
        %v1764 = vmul.f32 %v1734, 1.442695
        %v1765 = vpow.pop %v1764
        %v1766 = vmul.f32 %v1735, 1.442695
        %v1767 = vpow.pop %v1766
        %v1768 = vsel %vm1063, %v1737, 0.0
        %1769 = vadd.xlane.f32.xlu0 %v1768
        %v1770 = vpop.xlane.xlu0 %1769
        %v1771 = vsel %vm1063, %v1739, 0.0
        %1772 = vadd.xlane.f32.xlu0 %v1771
        %v1773 = vpop.xlane.xlu0 %1772
        %v1774 = vsel %vm1063, %v1741, 0.0
        %1775 = vadd.xlane.f32.xlu0 %v1774
        %v1776 = vpop.xlane.xlu0 %1775
        %v1777 = vsel %vm1063, %v1743, 0.0
        %1778 = vadd.xlane.f32.xlu0 %v1777
        %v1779 = vpop.xlane.xlu0 %1778
        %v1780 = vsel %vm1063, %v1745, 0.0
        %1781 = vadd.xlane.f32.xlu0 %v1780
        %v1782 = vpop.xlane.xlu0 %1781
        %v1783 = vsel %vm1063, %v1747, 0.0
        %1784 = vadd.xlane.f32.xlu0 %v1783
        %v1785 = vpop.xlane.xlu0 %1784
        %v1786 = vsel %vm1063, %v1749, 0.0
        %1787 = vadd.xlane.f32.xlu0 %v1786
        %v1788 = vpop.xlane.xlu0 %1787
        %v1789 = vsel %vm1063, %v1751, 0.0
        %1790 = vadd.xlane.f32.xlu0 %v1789
        %v1791 = vpop.xlane.xlu0 %1790
        %v1792 = vsel %vm1063, %v1753, 0.0
        %1793 = vadd.xlane.f32.xlu0 %v1792
        %v1794 = vpop.xlane.xlu0 %1793
        %v1795 = vsel %vm1063, %v1755, 0.0
        %1796 = vadd.xlane.f32.xlu0 %v1795
        %v1797 = vpop.xlane.xlu0 %1796
        %v1798 = vsel %vm1063, %v1757, 0.0
        %1799 = vadd.xlane.f32.xlu0 %v1798
        %v1800 = vpop.xlane.xlu0 %1799
        %v1801 = vsel %vm1063, %v1759, 0.0
        %1802 = vadd.xlane.f32.xlu0 %v1801
        %v1803 = vpop.xlane.xlu0 %1802
        %v1804 = vsel %vm1063, %v1761, 0.0
        %1805 = vadd.xlane.f32.xlu0 %v1804
        %v1806 = vpop.xlane.xlu0 %1805
        %v1807 = vsel %vm1063, %v1763, 0.0
        %1808 = vadd.xlane.f32.xlu0 %v1807
        %v1809 = vpop.xlane.xlu0 %1808
        %v1810 = vsel %vm1063, %v1765, 0.0
        %1811 = vadd.xlane.f32.xlu0 %v1810
        %v1812 = vpop.xlane.xlu0 %1811
        %v1813 = vsel %vm1063, %v1767, 0.0
        %1814 = vadd.xlane.f32.xlu0 %v1813
        %v1815 = vpop.xlane.xlu0 %1814
        %v1816 = vrcp.pop %v1770
        %v1817 = vmul.f32 %v1770, %v1816
        %v1818 = vsub.f32 1.0, %v1817
        %v1819 = vmul.f32 %v1816, %v1818
        %v1820 = vadd.f32 %v1816, %v1819
        %vm1821 = vweird.f32 %v1770
        %vm1822 = vweird.f32 %v1816
        %vm1823 = vmor %vm1821, %vm1822
        %v1824 = vsel %vm1823, %v1816, %v1820
        %v1825 = vand.u32 2147483647, %v1770
        %vm1826 = vcmp.eq.f32.partialorder %v1825, 8.507059e+37
        %v1827 = vand.u32 %v1770, 2147483648
        %v1828 = vor.u32 1.1754944e-38, %v1827
        %v1829 = vsel %vm1826, %v1828, %v1824
        %v1830 = vmul.f32 %v1737, %v1829
        %v1831 = vrcp.pop %v1773
        %v1832 = vmul.f32 %v1773, %v1831
        %v1833 = vsub.f32 1.0, %v1832
        %v1834 = vmul.f32 %v1831, %v1833
        %v1835 = vadd.f32 %v1831, %v1834
        %vm1836 = vweird.f32 %v1773
        %vm1837 = vweird.f32 %v1831
        %vm1838 = vmor %vm1836, %vm1837
        %v1839 = vsel %vm1838, %v1831, %v1835
        %v1840 = vand.u32 2147483647, %v1773
        %vm1841 = vcmp.eq.f32.partialorder %v1840, 8.507059e+37
        %v1842 = vand.u32 %v1773, 2147483648
        %v1843 = vor.u32 1.1754944e-38, %v1842
        %v1844 = vsel %vm1841, %v1843, %v1839
        %v1845 = vmul.f32 %v1739, %v1844
        %v1846 = vrcp.pop %v1776
        %v1847 = vmul.f32 %v1776, %v1846
        %v1848 = vsub.f32 1.0, %v1847
        %v1849 = vmul.f32 %v1846, %v1848
        %v1850 = vadd.f32 %v1846, %v1849
        %vm1851 = vweird.f32 %v1776
        %vm1852 = vweird.f32 %v1846
        %vm1853 = vmor %vm1851, %vm1852
        %v1854 = vsel %vm1853, %v1846, %v1850
        %v1855 = vand.u32 2147483647, %v1776
        %vm1856 = vcmp.eq.f32.partialorder %v1855, 8.507059e+37
        %v1857 = vand.u32 %v1776, 2147483648
        %v1858 = vor.u32 1.1754944e-38, %v1857
        %v1859 = vsel %vm1856, %v1858, %v1854
        %v1860 = vmul.f32 %v1741, %v1859
        %v1861 = vrcp.pop %v1779
        %v1862 = vmul.f32 %v1779, %v1861
        %v1863 = vsub.f32 1.0, %v1862
        %v1864 = vmul.f32 %v1861, %v1863
        %v1865 = vadd.f32 %v1861, %v1864
        %vm1866 = vweird.f32 %v1779
        %vm1867 = vweird.f32 %v1861
        %vm1868 = vmor %vm1866, %vm1867
        %v1869 = vsel %vm1868, %v1861, %v1865
        %v1870 = vand.u32 2147483647, %v1779
        %vm1871 = vcmp.eq.f32.partialorder %v1870, 8.507059e+37
        %v1872 = vand.u32 %v1779, 2147483648
        %v1873 = vor.u32 1.1754944e-38, %v1872
        %v1874 = vsel %vm1871, %v1873, %v1869
        %v1875 = vmul.f32 %v1743, %v1874
        %v1876 = vrcp.pop %v1782
        %v1877 = vmul.f32 %v1782, %v1876
        %v1878 = vsub.f32 1.0, %v1877
        %v1879 = vmul.f32 %v1876, %v1878
        %v1880 = vadd.f32 %v1876, %v1879
        %vm1881 = vweird.f32 %v1782
        %vm1882 = vweird.f32 %v1876
        %vm1883 = vmor %vm1881, %vm1882
        %v1884 = vsel %vm1883, %v1876, %v1880
        %v1885 = vand.u32 2147483647, %v1782
        %vm1886 = vcmp.eq.f32.partialorder %v1885, 8.507059e+37
        %v1887 = vand.u32 %v1782, 2147483648
        %v1888 = vor.u32 1.1754944e-38, %v1887
        %v1889 = vsel %vm1886, %v1888, %v1884
        %v1890 = vmul.f32 %v1745, %v1889
        %v1891 = vrcp.pop %v1785
        %v1892 = vmul.f32 %v1785, %v1891
        %v1893 = vsub.f32 1.0, %v1892
        %v1894 = vmul.f32 %v1891, %v1893
        %v1895 = vadd.f32 %v1891, %v1894
        %vm1896 = vweird.f32 %v1785
        %vm1897 = vweird.f32 %v1891
        %vm1898 = vmor %vm1896, %vm1897
        %v1899 = vsel %vm1898, %v1891, %v1895
        %v1900 = vand.u32 2147483647, %v1785
        %vm1901 = vcmp.eq.f32.partialorder %v1900, 8.507059e+37
        %v1902 = vand.u32 %v1785, 2147483648
        %v1903 = vor.u32 1.1754944e-38, %v1902
        %v1904 = vsel %vm1901, %v1903, %v1899
        %v1905 = vmul.f32 %v1747, %v1904
        %v1906 = vrcp.pop %v1788
        %v1907 = vmul.f32 %v1788, %v1906
        %v1908 = vsub.f32 1.0, %v1907
        %v1909 = vmul.f32 %v1906, %v1908
        %v1910 = vadd.f32 %v1906, %v1909
        %vm1911 = vweird.f32 %v1788
        %vm1912 = vweird.f32 %v1906
        %vm1913 = vmor %vm1911, %vm1912
        %v1914 = vsel %vm1913, %v1906, %v1910
        %v1915 = vand.u32 2147483647, %v1788
        %vm1916 = vcmp.eq.f32.partialorder %v1915, 8.507059e+37
        %v1917 = vand.u32 %v1788, 2147483648
        %v1918 = vor.u32 1.1754944e-38, %v1917
        %v1919 = vsel %vm1916, %v1918, %v1914
        %v1920 = vmul.f32 %v1749, %v1919
        %v1921 = vrcp.pop %v1791
        %v1922 = vmul.f32 %v1791, %v1921
        %v1923 = vsub.f32 1.0, %v1922
        %v1924 = vmul.f32 %v1921, %v1923
        %v1925 = vadd.f32 %v1921, %v1924
        %vm1926 = vweird.f32 %v1791
        %vm1927 = vweird.f32 %v1921
        %vm1928 = vmor %vm1926, %vm1927
        %v1929 = vsel %vm1928, %v1921, %v1925
        %v1930 = vand.u32 2147483647, %v1791
        %vm1931 = vcmp.eq.f32.partialorder %v1930, 8.507059e+37
        %v1932 = vand.u32 %v1791, 2147483648
        %v1933 = vor.u32 1.1754944e-38, %v1932
        %v1934 = vsel %vm1931, %v1933, %v1929
        %v1935 = vmul.f32 %v1751, %v1934
        %v1936 = vrcp.pop %v1794
        %v1937 = vmul.f32 %v1794, %v1936
        %v1938 = vsub.f32 1.0, %v1937
        %v1939 = vmul.f32 %v1936, %v1938
        %v1940 = vadd.f32 %v1936, %v1939
        %vm1941 = vweird.f32 %v1794
        %vm1942 = vweird.f32 %v1936
        %vm1943 = vmor %vm1941, %vm1942
        %v1944 = vsel %vm1943, %v1936, %v1940
        %v1945 = vand.u32 2147483647, %v1794
        %vm1946 = vcmp.eq.f32.partialorder %v1945, 8.507059e+37
        %v1947 = vand.u32 %v1794, 2147483648
        %v1948 = vor.u32 1.1754944e-38, %v1947
        %v1949 = vsel %vm1946, %v1948, %v1944
        %v1950 = vmul.f32 %v1753, %v1949
        %v1951 = vrcp.pop %v1797
        %v1952 = vmul.f32 %v1797, %v1951
        %v1953 = vsub.f32 1.0, %v1952
        %v1954 = vmul.f32 %v1951, %v1953
        %v1955 = vadd.f32 %v1951, %v1954
        %vm1956 = vweird.f32 %v1797
        %vm1957 = vweird.f32 %v1951
        %vm1958 = vmor %vm1956, %vm1957
        %v1959 = vsel %vm1958, %v1951, %v1955
        %v1960 = vand.u32 2147483647, %v1797
        %vm1961 = vcmp.eq.f32.partialorder %v1960, 8.507059e+37
        %v1962 = vand.u32 %v1797, 2147483648
        %v1963 = vor.u32 1.1754944e-38, %v1962
        %v1964 = vsel %vm1961, %v1963, %v1959
        %v1965 = vmul.f32 %v1755, %v1964
        %v1966 = vrcp.pop %v1800
        %v1967 = vmul.f32 %v1800, %v1966
        %v1968 = vsub.f32 1.0, %v1967
        %v1969 = vmul.f32 %v1966, %v1968
        %v1970 = vadd.f32 %v1966, %v1969
        %vm1971 = vweird.f32 %v1800
        %vm1972 = vweird.f32 %v1966
        %vm1973 = vmor %vm1971, %vm1972
        %v1974 = vsel %vm1973, %v1966, %v1970
        %v1975 = vand.u32 2147483647, %v1800
        %vm1976 = vcmp.eq.f32.partialorder %v1975, 8.507059e+37
        %v1977 = vand.u32 %v1800, 2147483648
        %v1978 = vor.u32 1.1754944e-38, %v1977
        %v1979 = vsel %vm1976, %v1978, %v1974
        %v1980 = vmul.f32 %v1757, %v1979
        %v1981 = vrcp.pop %v1803
        %v1982 = vmul.f32 %v1803, %v1981
        %v1983 = vsub.f32 1.0, %v1982
        %v1984 = vmul.f32 %v1981, %v1983
        %v1985 = vadd.f32 %v1981, %v1984
        %vm1986 = vweird.f32 %v1803
        %vm1987 = vweird.f32 %v1981
        %vm1988 = vmor %vm1986, %vm1987
        %v1989 = vsel %vm1988, %v1981, %v1985
        %v1990 = vand.u32 2147483647, %v1803
        %vm1991 = vcmp.eq.f32.partialorder %v1990, 8.507059e+37
        %v1992 = vand.u32 %v1803, 2147483648
        %v1993 = vor.u32 1.1754944e-38, %v1992
        %v1994 = vsel %vm1991, %v1993, %v1989
        %v1995 = vmul.f32 %v1759, %v1994
        %v1996 = vrcp.pop %v1806
        %v1997 = vmul.f32 %v1806, %v1996
        %v1998 = vsub.f32 1.0, %v1997
        %v1999 = vmul.f32 %v1996, %v1998
        %v2000 = vadd.f32 %v1996, %v1999
        %vm2001 = vweird.f32 %v1806
        %vm2002 = vweird.f32 %v1996
        %vm2003 = vmor %vm2001, %vm2002
        %v2004 = vsel %vm2003, %v1996, %v2000
        %v2005 = vand.u32 2147483647, %v1806
        %vm2006 = vcmp.eq.f32.partialorder %v2005, 8.507059e+37
        %v2007 = vand.u32 %v1806, 2147483648
        %v2008 = vor.u32 1.1754944e-38, %v2007
        %v2009 = vsel %vm2006, %v2008, %v2004
        %v2010 = vmul.f32 %v1761, %v2009
        %v2011 = vrcp.pop %v1809
        %v2012 = vmul.f32 %v1809, %v2011
        %v2013 = vsub.f32 1.0, %v2012
        %v2014 = vmul.f32 %v2011, %v2013
        %v2015 = vadd.f32 %v2011, %v2014
        %vm2016 = vweird.f32 %v1809
        %vm2017 = vweird.f32 %v2011
        %vm2018 = vmor %vm2016, %vm2017
        %v2019 = vsel %vm2018, %v2011, %v2015
        %v2020 = vand.u32 2147483647, %v1809
        %vm2021 = vcmp.eq.f32.partialorder %v2020, 8.507059e+37
        %v2022 = vand.u32 %v1809, 2147483648
        %v2023 = vor.u32 1.1754944e-38, %v2022
        %v2024 = vsel %vm2021, %v2023, %v2019
        %v2025 = vmul.f32 %v1763, %v2024
        %v2026 = vrcp.pop %v1812
        %v2027 = vmul.f32 %v1812, %v2026
        %v2028 = vsub.f32 1.0, %v2027
        %v2029 = vmul.f32 %v2026, %v2028
        %v2030 = vadd.f32 %v2026, %v2029
        %vm2031 = vweird.f32 %v1812
        %vm2032 = vweird.f32 %v2026
        %vm2033 = vmor %vm2031, %vm2032
        %v2034 = vsel %vm2033, %v2026, %v2030
        %v2035 = vand.u32 2147483647, %v1812
        %vm2036 = vcmp.eq.f32.partialorder %v2035, 8.507059e+37
        %v2037 = vand.u32 %v1812, 2147483648
        %v2038 = vor.u32 1.1754944e-38, %v2037
        %v2039 = vsel %vm2036, %v2038, %v2034
        %v2040 = vmul.f32 %v1765, %v2039
        %v2041 = vrcp.pop %v1815
        %v2042 = vmul.f32 %v1815, %v2041
        %v2043 = vsub.f32 1.0, %v2042
        %v2044 = vmul.f32 %v2041, %v2043
        %v2045 = vadd.f32 %v2041, %v2044
        %vm2046 = vweird.f32 %v1815
        %vm2047 = vweird.f32 %v2041
        %vm2048 = vmor %vm2046, %vm2047
        %v2049 = vsel %vm2048, %v2041, %v2045
        %v2050 = vand.u32 2147483647, %v1815
        %vm2051 = vcmp.eq.f32.partialorder %v2050, 8.507059e+37
        %v2052 = vand.u32 %v1815, 2147483648
        %v2053 = vor.u32 1.1754944e-38, %v2052
        %v2054 = vsel %vm2051, %v2053, %v2049
        %v2055 = vmul.f32 %v1767, %v2054
        %v2057 = vsel %vm1063, %v1830, 0
        %v2060 = vsel %vm1063, %v1845, 0
        %v2063 = vsel %vm1063, %v1860, 0
        %v2066 = vsel %vm1063, %v1875, 0
        %v2069 = vsel %vm1063, %v1890, 0
        %v2072 = vsel %vm1063, %v1905, 0
        %v2075 = vsel %vm1063, %v1920, 0
        %v2078 = vsel %vm1063, %v1935, 0
        %v2081 = vsel %vm1063, %v1950, 0
        %v2084 = vsel %vm1063, %v1965, 0
        %v2087 = vsel %vm1063, %v1980, 0
        %v2090 = vsel %vm1063, %v1995, 0
        %v2093 = vsel %vm1063, %v2010, 0
        %v2096 = vsel %vm1063, %v2025, 0
        %v2099 = vsel %vm1063, %v2040, 0
        %v2102 = vsel %vm1063, %v2055, 0
        %2104 = vmatpush.msra.mxu0 0.0
        %2105 = vmatpush.msra.mxu0 0.0
        %2106 = vmatpush.msra.mxu0 0.0
        %2107 = vmatpush.msra.mxu0 0.0
        %2108 = vmatpush.msra.mxu0 0.0
        %2109 = vmatpush.msra.mxu0 0.0
        %2110 = vmatpush.msra.mxu0 0.0
        %2111 = vmatpush.msra.mxu0 0.0
        %2112 = vmatpush.msra.mxu0 0.0
        %2113 = vmatpush.msra.mxu0 0.0
        %2114 = vmatpush.msra.mxu0 0.0
        %2115 = vmatpush.msra.mxu0 0.0
        %2116 = vmatpush.msra.mxu0 0.0
        %2117 = vmatpush.msra.mxu0 0.0
        %2118 = vmatpush.msra.mxu0 %v952
        %2119 = vmatpush.msra.mxu0 %v949
        %2120 = vmatmul.f32.gmra.mxu0 %v2057
        %v2121 = vpop.f32.mrf.mxu0
        %v2122 = vadd.f32 0.0, %v2121
        %2123 = vmatmul.f32.gmra.mxu0 %v2060
        %v2124 = vpop.f32.mrf.mxu0
        %v2125 = vadd.f32 0.0, %v2124
        %2126 = vmatmul.f32.gmra.mxu0 %v2063
        %v2127 = vpop.f32.mrf.mxu0
        %v2128 = vadd.f32 0.0, %v2127
        %2129 = vmatmul.f32.gmra.mxu0 %v2066
        %v2130 = vpop.f32.mrf.mxu0
        %v2131 = vadd.f32 0.0, %v2130
        %2132 = vmatmul.f32.gmra.mxu0 %v2069
        %v2133 = vpop.f32.mrf.mxu0
        %v2134 = vadd.f32 0.0, %v2133
        %2135 = vmatmul.f32.gmra.mxu0 %v2072
        %v2136 = vpop.f32.mrf.mxu0
        %v2137 = vadd.f32 0.0, %v2136
        %2138 = vmatmul.f32.gmra.mxu0 %v2075
        %v2139 = vpop.f32.mrf.mxu0
        %v2140 = vadd.f32 0.0, %v2139
        %2141 = vmatmul.f32.gmra.mxu0 %v2078
        %v2142 = vpop.f32.mrf.mxu0
        %v2143 = vadd.f32 0.0, %v2142
        %2144 = vmatmul.f32.gmra.mxu0 %v2081
        %v2145 = vpop.f32.mrf.mxu0
        %v2146 = vadd.f32 0.0, %v2145
        %2147 = vmatmul.f32.gmra.mxu0 %v2084
        %v2148 = vpop.f32.mrf.mxu0
        %v2149 = vadd.f32 0.0, %v2148
        %2150 = vmatmul.f32.gmra.mxu0 %v2087
        %v2151 = vpop.f32.mrf.mxu0
        %v2152 = vadd.f32 0.0, %v2151
        %2153 = vmatmul.f32.gmra.mxu0 %v2090
        %v2154 = vpop.f32.mrf.mxu0
        %v2155 = vadd.f32 0.0, %v2154
        %2156 = vmatmul.f32.gmra.mxu0 %v2093
        %v2157 = vpop.f32.mrf.mxu0
        %v2158 = vadd.f32 0.0, %v2157
        %2159 = vmatmul.f32.gmra.mxu0 %v2096
        %v2160 = vpop.f32.mrf.mxu0
        %v2161 = vadd.f32 0.0, %v2160
        %2162 = vmatmul.f32.gmra.mxu0 %v2099
        %v2163 = vpop.f32.mrf.mxu0
        %v2164 = vadd.f32 0.0, %v2163
        %2165 = vmatmul.f32.gmra.mxu0 %v2102
        %v2166 = vpop.f32.mrf.mxu0
        %v2167 = vadd.f32 0.0, %v2166
        %2168 = vdwg.mxu0
        %v2169 = vmul.f32 %v2122, %v966
        %v2170 = vmul.f32 %v2125, %v967
        %v2171 = vmul.f32 %v2128, %v968
        %v2172 = vmul.f32 %v2131, %v969
        %v2173 = vmul.f32 %v2134, %v970
        %v2174 = vmul.f32 %v2137, %v971
        %v2175 = vmul.f32 %v2140, %v972
        %v2176 = vmul.f32 %v2143, %v973
        %v2177 = vmul.f32 %v2146, %v974
        %v2178 = vmul.f32 %v2149, %v975
        %v2179 = vmul.f32 %v2152, %v976
        %v2180 = vmul.f32 %v2155, %v977
        %v2181 = vmul.f32 %v2158, %v978
        %v2182 = vmul.f32 %v2161, %v979
        %v2183 = vmul.f32 %v2164, %v980
        %v2184 = vmul.f32 %v2167, %v981
        %v2185 = vadd.f32 %v2169, %v2171
        %v2186 = vadd.f32 %v2170, %v2172
        %v2187 = vadd.f32 %v2185, %v2173
        %v2188 = vadd.f32 %v2186, %v2174
        %v2189 = vadd.f32 %v2187, %v2175
        %v2190 = vadd.f32 %v2188, %v2176
        %v2191 = vadd.f32 %v2189, %v2177
        %v2192 = vadd.f32 %v2190, %v2178
        %v2193 = vadd.f32 %v2191, %v2179
        %v2194 = vadd.f32 %v2192, %v2180
        %v2195 = vadd.f32 %v2193, %v2181
        %v2196 = vadd.f32 %v2194, %v2182
        %v2197 = vadd.f32 %v2195, %v2183
        %v2198 = vadd.f32 %v2196, %v2184
        %v2199 = vmul.f32 %v873, %v966
        %v2200 = vmul.f32 %v876, %v967
        %v2201 = vmul.f32 %v873, %v968
        %v2202 = vmul.f32 %v876, %v969
        %v2203 = vmul.f32 %v873, %v970
        %v2204 = vmul.f32 %v876, %v971
        %v2205 = vmul.f32 %v873, %v972
        %v2206 = vmul.f32 %v876, %v973
        %v2207 = vmul.f32 %v873, %v974
        %v2208 = vmul.f32 %v876, %v975
        %v2209 = vmul.f32 %v873, %v976
        %v2210 = vmul.f32 %v876, %v977
        %v2211 = vmul.f32 %v873, %v978
        %v2212 = vmul.f32 %v876, %v979
        %v2213 = vmul.f32 %v873, %v980
        %v2214 = vmul.f32 %v876, %v981
        %2215 = vmatpush.xpose.msra.mxu0 0.0
        %2216 = vmatpush.xpose.msra.mxu0 0.0
        %2217 = vmatpush.xpose.msra.mxu0 0.0
        %2218 = vmatpush.xpose.msra.mxu0 0.0
        %2219 = vmatpush.xpose.msra.mxu0 0.0
        %2220 = vmatpush.xpose.msra.mxu0 0.0
        %2221 = vmatpush.xpose.msra.mxu0 0.0
        %2222 = vmatpush.xpose.msra.mxu0 0.0
        %2223 = vmatpush.xpose.msra.mxu0 0.0
        %2224 = vmatpush.xpose.msra.mxu0 0.0
        %2225 = vmatpush.xpose.msra.mxu0 0.0
        %2226 = vmatpush.xpose.msra.mxu0 0.0
        %2227 = vmatpush.xpose.msra.mxu0 0.0
        %2228 = vmatpush.xpose.msra.mxu0 0.0
        %2229 = vmatpush.xpose.msra.mxu0 %v917
        %2230 = vmatpush.xpose.msra.mxu0 %v914
        %2231 = vmatmul.f32.gmra.mxu0 %v2199
        %v2232 = vpop.f32.mrf.mxu0
        %v2233 = vadd.f32 0.0, %v2232
        %2234 = vmatmul.f32.gmra.mxu0 %v2200
        %v2235 = vpop.f32.mrf.mxu0
        %v2236 = vadd.f32 0.0, %v2235
        %2237 = vmatmul.f32.gmra.mxu0 %v2201
        %v2238 = vpop.f32.mrf.mxu0
        %v2239 = vadd.f32 0.0, %v2238
        %2240 = vmatmul.f32.gmra.mxu0 %v2202
        %v2241 = vpop.f32.mrf.mxu0
        %v2242 = vadd.f32 0.0, %v2241
        %2243 = vmatmul.f32.gmra.mxu0 %v2203
        %v2244 = vpop.f32.mrf.mxu0
        %v2245 = vadd.f32 0.0, %v2244
        %2246 = vmatmul.f32.gmra.mxu0 %v2204
        %v2247 = vpop.f32.mrf.mxu0
        %v2248 = vadd.f32 0.0, %v2247
        %2249 = vmatmul.f32.gmra.mxu0 %v2205
        %v2250 = vpop.f32.mrf.mxu0
        %v2251 = vadd.f32 0.0, %v2250
        %2252 = vmatmul.f32.gmra.mxu0 %v2206
        %v2253 = vpop.f32.mrf.mxu0
        %v2254 = vadd.f32 0.0, %v2253
        %2255 = vmatmul.f32.gmra.mxu0 %v2207
        %v2256 = vpop.f32.mrf.mxu0
        %v2257 = vadd.f32 0.0, %v2256
        %2258 = vmatmul.f32.gmra.mxu0 %v2208
        %v2259 = vpop.f32.mrf.mxu0
        %v2260 = vadd.f32 0.0, %v2259
        %2261 = vmatmul.f32.gmra.mxu0 %v2209
        %v2262 = vpop.f32.mrf.mxu0
        %v2263 = vadd.f32 0.0, %v2262
        %2264 = vmatmul.f32.gmra.mxu0 %v2210
        %v2265 = vpop.f32.mrf.mxu0
        %v2266 = vadd.f32 0.0, %v2265
        %2267 = vmatmul.f32.gmra.mxu0 %v2211
        %v2268 = vpop.f32.mrf.mxu0
        %v2269 = vadd.f32 0.0, %v2268
        %2270 = vmatmul.f32.gmra.mxu0 %v2212
        %v2271 = vpop.f32.mrf.mxu0
        %v2272 = vadd.f32 0.0, %v2271
        %2273 = vmatmul.f32.gmra.mxu0 %v2213
        %v2274 = vpop.f32.mrf.mxu0
        %v2275 = vadd.f32 0.0, %v2274
        %2276 = vmatmul.f32.gmra.mxu0 %v2214
        %v2277 = vpop.f32.mrf.mxu0
        %v2278 = vadd.f32 0.0, %v2277
        %2279 = vdwg.mxu0
        %v2280 = vsel %vm1063, %v2233, -inf
        %2281 = vmax.xlane.f32.xlu0 %v2280
        %v2282 = vpop.xlane.xlu0 %2281
        %v2283 = vsel %vm1063, %v2236, -inf
        %2284 = vmax.xlane.f32.xlu0 %v2283
        %v2285 = vpop.xlane.xlu0 %2284
        %v2286 = vsel %vm1063, %v2239, -inf
        %2287 = vmax.xlane.f32.xlu0 %v2286
        %v2288 = vpop.xlane.xlu0 %2287
        %v2289 = vsel %vm1063, %v2242, -inf
        %2290 = vmax.xlane.f32.xlu0 %v2289
        %v2291 = vpop.xlane.xlu0 %2290
        %v2292 = vsel %vm1063, %v2245, -inf
        %2293 = vmax.xlane.f32.xlu0 %v2292
        %v2294 = vpop.xlane.xlu0 %2293
        %v2295 = vsel %vm1063, %v2248, -inf
        %2296 = vmax.xlane.f32.xlu0 %v2295
        %v2297 = vpop.xlane.xlu0 %2296
        %v2298 = vsel %vm1063, %v2251, -inf
        %2299 = vmax.xlane.f32.xlu0 %v2298
        %v2300 = vpop.xlane.xlu0 %2299
        %v2301 = vsel %vm1063, %v2254, -inf
        %2302 = vmax.xlane.f32.xlu0 %v2301
        %v2303 = vpop.xlane.xlu0 %2302
        %v2304 = vsel %vm1063, %v2257, -inf
        %2305 = vmax.xlane.f32.xlu0 %v2304
        %v2306 = vpop.xlane.xlu0 %2305
        %v2307 = vsel %vm1063, %v2260, -inf
        %2308 = vmax.xlane.f32.xlu0 %v2307
        %v2309 = vpop.xlane.xlu0 %2308
        %v2310 = vsel %vm1063, %v2263, -inf
        %2311 = vmax.xlane.f32.xlu0 %v2310
        %v2312 = vpop.xlane.xlu0 %2311
        %v2313 = vsel %vm1063, %v2266, -inf
        %2314 = vmax.xlane.f32.xlu0 %v2313
        %v2315 = vpop.xlane.xlu0 %2314
        %v2316 = vsel %vm1063, %v2269, -inf
        %2317 = vmax.xlane.f32.xlu0 %v2316
        %v2318 = vpop.xlane.xlu0 %2317
        %v2319 = vsel %vm1063, %v2272, -inf
        %2320 = vmax.xlane.f32.xlu0 %v2319
        %v2321 = vpop.xlane.xlu0 %2320
        %v2322 = vsel %vm1063, %v2275, -inf
        %2323 = vmax.xlane.f32.xlu0 %v2322
        %v2324 = vpop.xlane.xlu0 %2323
        %v2325 = vsel %vm1063, %v2278, -inf
        %2326 = vmax.xlane.f32.xlu0 %v2325
        %v2327 = vpop.xlane.xlu0 %2326
        %v2328 = vsub.f32 %v2233, %v2282
        %v2329 = vsub.f32 %v2236, %v2285
        %v2330 = vsub.f32 %v2239, %v2288
        %v2331 = vsub.f32 %v2242, %v2291
        %v2332 = vsub.f32 %v2245, %v2294
        %v2333 = vsub.f32 %v2248, %v2297
        %v2334 = vsub.f32 %v2251, %v2300
        %v2335 = vsub.f32 %v2254, %v2303
        %v2336 = vsub.f32 %v2257, %v2306
        %v2337 = vsub.f32 %v2260, %v2309
        %v2338 = vsub.f32 %v2263, %v2312
        %v2339 = vsub.f32 %v2266, %v2315
        %v2340 = vsub.f32 %v2269, %v2318
        %v2341 = vsub.f32 %v2272, %v2321
        %v2342 = vsub.f32 %v2275, %v2324
        %v2343 = vsub.f32 %v2278, %v2327
        %v2344 = vmul.f32 %v2328, 1.442695
        %v2345 = vpow.pop %v2344
        %v2346 = vmul.f32 %v2329, 1.442695
        %v2347 = vpow.pop %v2346
        %v2348 = vmul.f32 %v2330, 1.442695
        %v2349 = vpow.pop %v2348
        %v2350 = vmul.f32 %v2331, 1.442695
        %v2351 = vpow.pop %v2350
        %v2352 = vmul.f32 %v2332, 1.442695
        %v2353 = vpow.pop %v2352
        %v2354 = vmul.f32 %v2333, 1.442695
        %v2355 = vpow.pop %v2354
        %v2356 = vmul.f32 %v2334, 1.442695
        %v2357 = vpow.pop %v2356
        %v2358 = vmul.f32 %v2335, 1.442695
        %v2359 = vpow.pop %v2358
        %v2360 = vmul.f32 %v2336, 1.442695
        %v2361 = vpow.pop %v2360
        %v2362 = vmul.f32 %v2337, 1.442695
        %v2363 = vpow.pop %v2362
        %v2364 = vmul.f32 %v2338, 1.442695
        %v2365 = vpow.pop %v2364
        %v2366 = vmul.f32 %v2339, 1.442695
        %v2367 = vpow.pop %v2366
        %v2368 = vmul.f32 %v2340, 1.442695
        %v2369 = vpow.pop %v2368
        %v2370 = vmul.f32 %v2341, 1.442695
        %v2371 = vpow.pop %v2370
        %v2372 = vmul.f32 %v2342, 1.442695
        %v2373 = vpow.pop %v2372
        %v2374 = vmul.f32 %v2343, 1.442695
        %v2375 = vpow.pop %v2374
        %v2376 = vsel %vm1063, %v2345, 0.0
        %2377 = vadd.xlane.f32.xlu0 %v2376
        %v2378 = vpop.xlane.xlu0 %2377
        %v2379 = vsel %vm1063, %v2347, 0.0
        %2380 = vadd.xlane.f32.xlu0 %v2379
        %v2381 = vpop.xlane.xlu0 %2380
        %v2382 = vsel %vm1063, %v2349, 0.0
        %2383 = vadd.xlane.f32.xlu0 %v2382
        %v2384 = vpop.xlane.xlu0 %2383
        %v2385 = vsel %vm1063, %v2351, 0.0
        %2386 = vadd.xlane.f32.xlu0 %v2385
        %v2387 = vpop.xlane.xlu0 %2386
        %v2388 = vsel %vm1063, %v2353, 0.0
        %2389 = vadd.xlane.f32.xlu0 %v2388
        %v2390 = vpop.xlane.xlu0 %2389
        %v2391 = vsel %vm1063, %v2355, 0.0
        %2392 = vadd.xlane.f32.xlu0 %v2391
        %v2393 = vpop.xlane.xlu0 %2392
        %v2394 = vsel %vm1063, %v2357, 0.0
        %2395 = vadd.xlane.f32.xlu0 %v2394
        %v2396 = vpop.xlane.xlu0 %2395
        %v2397 = vsel %vm1063, %v2359, 0.0
        %2398 = vadd.xlane.f32.xlu0 %v2397
        %v2399 = vpop.xlane.xlu0 %2398
        %v2400 = vsel %vm1063, %v2361, 0.0
        %2401 = vadd.xlane.f32.xlu0 %v2400
        %v2402 = vpop.xlane.xlu0 %2401
        %v2403 = vsel %vm1063, %v2363, 0.0
        %2404 = vadd.xlane.f32.xlu0 %v2403
        %v2405 = vpop.xlane.xlu0 %2404
        %v2406 = vsel %vm1063, %v2365, 0.0
        %2407 = vadd.xlane.f32.xlu0 %v2406
        %v2408 = vpop.xlane.xlu0 %2407
        %v2409 = vsel %vm1063, %v2367, 0.0
        %2410 = vadd.xlane.f32.xlu0 %v2409
        %v2411 = vpop.xlane.xlu0 %2410
        %v2412 = vsel %vm1063, %v2369, 0.0
        %2413 = vadd.xlane.f32.xlu0 %v2412
        %v2414 = vpop.xlane.xlu0 %2413
        %v2415 = vsel %vm1063, %v2371, 0.0
        %2416 = vadd.xlane.f32.xlu0 %v2415
        %v2417 = vpop.xlane.xlu0 %2416
        %v2418 = vsel %vm1063, %v2373, 0.0
        %2419 = vadd.xlane.f32.xlu0 %v2418
        %v2420 = vpop.xlane.xlu0 %2419
        %v2421 = vsel %vm1063, %v2375, 0.0
        %2422 = vadd.xlane.f32.xlu0 %v2421
        %v2423 = vpop.xlane.xlu0 %2422
        %v2424 = vrcp.pop %v2378
        %v2425 = vmul.f32 %v2378, %v2424
        %v2426 = vsub.f32 1.0, %v2425
        %v2427 = vmul.f32 %v2424, %v2426
        %v2428 = vadd.f32 %v2424, %v2427
        %vm2429 = vweird.f32 %v2378
        %vm2430 = vweird.f32 %v2424
        %vm2431 = vmor %vm2429, %vm2430
        %v2432 = vsel %vm2431, %v2424, %v2428
        %v2433 = vand.u32 2147483647, %v2378
        %vm2434 = vcmp.eq.f32.partialorder %v2433, 8.507059e+37
        %v2435 = vand.u32 %v2378, 2147483648
        %v2436 = vor.u32 1.1754944e-38, %v2435
        %v2437 = vsel %vm2434, %v2436, %v2432
        %v2438 = vmul.f32 %v2345, %v2437
        %v2439 = vrcp.pop %v2381
        %v2440 = vmul.f32 %v2381, %v2439
        %v2441 = vsub.f32 1.0, %v2440
        %v2442 = vmul.f32 %v2439, %v2441
        %v2443 = vadd.f32 %v2439, %v2442
        %vm2444 = vweird.f32 %v2381
        %vm2445 = vweird.f32 %v2439
        %vm2446 = vmor %vm2444, %vm2445
        %v2447 = vsel %vm2446, %v2439, %v2443
        %v2448 = vand.u32 2147483647, %v2381
        %vm2449 = vcmp.eq.f32.partialorder %v2448, 8.507059e+37
        %v2450 = vand.u32 %v2381, 2147483648
        %v2451 = vor.u32 1.1754944e-38, %v2450
        %v2452 = vsel %vm2449, %v2451, %v2447
        %v2453 = vmul.f32 %v2347, %v2452
        %v2454 = vrcp.pop %v2384
        %v2455 = vmul.f32 %v2384, %v2454
        %v2456 = vsub.f32 1.0, %v2455
        %v2457 = vmul.f32 %v2454, %v2456
        %v2458 = vadd.f32 %v2454, %v2457
        %vm2459 = vweird.f32 %v2384
        %vm2460 = vweird.f32 %v2454
        %vm2461 = vmor %vm2459, %vm2460
        %v2462 = vsel %vm2461, %v2454, %v2458
        %v2463 = vand.u32 2147483647, %v2384
        %vm2464 = vcmp.eq.f32.partialorder %v2463, 8.507059e+37
        %v2465 = vand.u32 %v2384, 2147483648
        %v2466 = vor.u32 1.1754944e-38, %v2465
        %v2467 = vsel %vm2464, %v2466, %v2462
        %v2468 = vmul.f32 %v2349, %v2467
        %v2469 = vrcp.pop %v2387
        %v2470 = vmul.f32 %v2387, %v2469
        %v2471 = vsub.f32 1.0, %v2470
        %v2472 = vmul.f32 %v2469, %v2471
        %v2473 = vadd.f32 %v2469, %v2472
        %vm2474 = vweird.f32 %v2387
        %vm2475 = vweird.f32 %v2469
        %vm2476 = vmor %vm2474, %vm2475
        %v2477 = vsel %vm2476, %v2469, %v2473
        %v2478 = vand.u32 2147483647, %v2387
        %vm2479 = vcmp.eq.f32.partialorder %v2478, 8.507059e+37
        %v2480 = vand.u32 %v2387, 2147483648
        %v2481 = vor.u32 1.1754944e-38, %v2480
        %v2482 = vsel %vm2479, %v2481, %v2477
        %v2483 = vmul.f32 %v2351, %v2482
        %v2484 = vrcp.pop %v2390
        %v2485 = vmul.f32 %v2390, %v2484
        %v2486 = vsub.f32 1.0, %v2485
        %v2487 = vmul.f32 %v2484, %v2486
        %v2488 = vadd.f32 %v2484, %v2487
        %vm2489 = vweird.f32 %v2390
        %vm2490 = vweird.f32 %v2484
        %vm2491 = vmor %vm2489, %vm2490
        %v2492 = vsel %vm2491, %v2484, %v2488
        %v2493 = vand.u32 2147483647, %v2390
        %vm2494 = vcmp.eq.f32.partialorder %v2493, 8.507059e+37
        %v2495 = vand.u32 %v2390, 2147483648
        %v2496 = vor.u32 1.1754944e-38, %v2495
        %v2497 = vsel %vm2494, %v2496, %v2492
        %v2498 = vmul.f32 %v2353, %v2497
        %v2499 = vrcp.pop %v2393
        %v2500 = vmul.f32 %v2393, %v2499
        %v2501 = vsub.f32 1.0, %v2500
        %v2502 = vmul.f32 %v2499, %v2501
        %v2503 = vadd.f32 %v2499, %v2502
        %vm2504 = vweird.f32 %v2393
        %vm2505 = vweird.f32 %v2499
        %vm2506 = vmor %vm2504, %vm2505
        %v2507 = vsel %vm2506, %v2499, %v2503
        %v2508 = vand.u32 2147483647, %v2393
        %vm2509 = vcmp.eq.f32.partialorder %v2508, 8.507059e+37
        %v2510 = vand.u32 %v2393, 2147483648
        %v2511 = vor.u32 1.1754944e-38, %v2510
        %v2512 = vsel %vm2509, %v2511, %v2507
        %v2513 = vmul.f32 %v2355, %v2512
        %v2514 = vrcp.pop %v2396
        %v2515 = vmul.f32 %v2396, %v2514
        %v2516 = vsub.f32 1.0, %v2515
        %v2517 = vmul.f32 %v2514, %v2516
        %v2518 = vadd.f32 %v2514, %v2517
        %vm2519 = vweird.f32 %v2396
        %vm2520 = vweird.f32 %v2514
        %vm2521 = vmor %vm2519, %vm2520
        %v2522 = vsel %vm2521, %v2514, %v2518
        %v2523 = vand.u32 2147483647, %v2396
        %vm2524 = vcmp.eq.f32.partialorder %v2523, 8.507059e+37
        %v2525 = vand.u32 %v2396, 2147483648
        %v2526 = vor.u32 1.1754944e-38, %v2525
        %v2527 = vsel %vm2524, %v2526, %v2522
        %v2528 = vmul.f32 %v2357, %v2527
        %v2529 = vrcp.pop %v2399
        %v2530 = vmul.f32 %v2399, %v2529
        %v2531 = vsub.f32 1.0, %v2530
        %v2532 = vmul.f32 %v2529, %v2531
        %v2533 = vadd.f32 %v2529, %v2532
        %vm2534 = vweird.f32 %v2399
        %vm2535 = vweird.f32 %v2529
        %vm2536 = vmor %vm2534, %vm2535
        %v2537 = vsel %vm2536, %v2529, %v2533
        %v2538 = vand.u32 2147483647, %v2399
        %vm2539 = vcmp.eq.f32.partialorder %v2538, 8.507059e+37
        %v2540 = vand.u32 %v2399, 2147483648
        %v2541 = vor.u32 1.1754944e-38, %v2540
        %v2542 = vsel %vm2539, %v2541, %v2537
        %v2543 = vmul.f32 %v2359, %v2542
        %v2544 = vrcp.pop %v2402
        %v2545 = vmul.f32 %v2402, %v2544
        %v2546 = vsub.f32 1.0, %v2545
        %v2547 = vmul.f32 %v2544, %v2546
        %v2548 = vadd.f32 %v2544, %v2547
        %vm2549 = vweird.f32 %v2402
        %vm2550 = vweird.f32 %v2544
        %vm2551 = vmor %vm2549, %vm2550
        %v2552 = vsel %vm2551, %v2544, %v2548
        %v2553 = vand.u32 2147483647, %v2402
        %vm2554 = vcmp.eq.f32.partialorder %v2553, 8.507059e+37
        %v2555 = vand.u32 %v2402, 2147483648
        %v2556 = vor.u32 1.1754944e-38, %v2555
        %v2557 = vsel %vm2554, %v2556, %v2552
        %v2558 = vmul.f32 %v2361, %v2557
        %v2559 = vrcp.pop %v2405
        %v2560 = vmul.f32 %v2405, %v2559
        %v2561 = vsub.f32 1.0, %v2560
        %v2562 = vmul.f32 %v2559, %v2561
        %v2563 = vadd.f32 %v2559, %v2562
        %vm2564 = vweird.f32 %v2405
        %vm2565 = vweird.f32 %v2559
        %vm2566 = vmor %vm2564, %vm2565
        %v2567 = vsel %vm2566, %v2559, %v2563
        %v2568 = vand.u32 2147483647, %v2405
        %vm2569 = vcmp.eq.f32.partialorder %v2568, 8.507059e+37
        %v2570 = vand.u32 %v2405, 2147483648
        %v2571 = vor.u32 1.1754944e-38, %v2570
        %v2572 = vsel %vm2569, %v2571, %v2567
        %v2573 = vmul.f32 %v2363, %v2572
        %v2574 = vrcp.pop %v2408
        %v2575 = vmul.f32 %v2408, %v2574
        %v2576 = vsub.f32 1.0, %v2575
        %v2577 = vmul.f32 %v2574, %v2576
        %v2578 = vadd.f32 %v2574, %v2577
        %vm2579 = vweird.f32 %v2408
        %vm2580 = vweird.f32 %v2574
        %vm2581 = vmor %vm2579, %vm2580
        %v2582 = vsel %vm2581, %v2574, %v2578
        %v2583 = vand.u32 2147483647, %v2408
        %vm2584 = vcmp.eq.f32.partialorder %v2583, 8.507059e+37
        %v2585 = vand.u32 %v2408, 2147483648
        %v2586 = vor.u32 1.1754944e-38, %v2585
        %v2587 = vsel %vm2584, %v2586, %v2582
        %v2588 = vmul.f32 %v2365, %v2587
        %v2589 = vrcp.pop %v2411
        %v2590 = vmul.f32 %v2411, %v2589
        %v2591 = vsub.f32 1.0, %v2590
        %v2592 = vmul.f32 %v2589, %v2591
        %v2593 = vadd.f32 %v2589, %v2592
        %vm2594 = vweird.f32 %v2411
        %vm2595 = vweird.f32 %v2589
        %vm2596 = vmor %vm2594, %vm2595
        %v2597 = vsel %vm2596, %v2589, %v2593
        %v2598 = vand.u32 2147483647, %v2411
        %vm2599 = vcmp.eq.f32.partialorder %v2598, 8.507059e+37
        %v2600 = vand.u32 %v2411, 2147483648
        %v2601 = vor.u32 1.1754944e-38, %v2600
        %v2602 = vsel %vm2599, %v2601, %v2597
        %v2603 = vmul.f32 %v2367, %v2602
        %v2604 = vrcp.pop %v2414
        %v2605 = vmul.f32 %v2414, %v2604
        %v2606 = vsub.f32 1.0, %v2605
        %v2607 = vmul.f32 %v2604, %v2606
        %v2608 = vadd.f32 %v2604, %v2607
        %vm2609 = vweird.f32 %v2414
        %vm2610 = vweird.f32 %v2604
        %vm2611 = vmor %vm2609, %vm2610
        %v2612 = vsel %vm2611, %v2604, %v2608
        %v2613 = vand.u32 2147483647, %v2414
        %vm2614 = vcmp.eq.f32.partialorder %v2613, 8.507059e+37
        %v2615 = vand.u32 %v2414, 2147483648
        %v2616 = vor.u32 1.1754944e-38, %v2615
        %v2617 = vsel %vm2614, %v2616, %v2612
        %v2618 = vmul.f32 %v2369, %v2617
        %v2619 = vrcp.pop %v2417
        %v2620 = vmul.f32 %v2417, %v2619
        %v2621 = vsub.f32 1.0, %v2620
        %v2622 = vmul.f32 %v2619, %v2621
        %v2623 = vadd.f32 %v2619, %v2622
        %vm2624 = vweird.f32 %v2417
        %vm2625 = vweird.f32 %v2619
        %vm2626 = vmor %vm2624, %vm2625
        %v2627 = vsel %vm2626, %v2619, %v2623
        %v2628 = vand.u32 2147483647, %v2417
        %vm2629 = vcmp.eq.f32.partialorder %v2628, 8.507059e+37
        %v2630 = vand.u32 %v2417, 2147483648
        %v2631 = vor.u32 1.1754944e-38, %v2630
        %v2632 = vsel %vm2629, %v2631, %v2627
        %v2633 = vmul.f32 %v2371, %v2632
        %v2634 = vrcp.pop %v2420
        %v2635 = vmul.f32 %v2420, %v2634
        %v2636 = vsub.f32 1.0, %v2635
        %v2637 = vmul.f32 %v2634, %v2636
        %v2638 = vadd.f32 %v2634, %v2637
        %vm2639 = vweird.f32 %v2420
        %vm2640 = vweird.f32 %v2634
        %vm2641 = vmor %vm2639, %vm2640
        %v2642 = vsel %vm2641, %v2634, %v2638
        %v2643 = vand.u32 2147483647, %v2420
        %vm2644 = vcmp.eq.f32.partialorder %v2643, 8.507059e+37
        %v2645 = vand.u32 %v2420, 2147483648
        %v2646 = vor.u32 1.1754944e-38, %v2645
        %v2647 = vsel %vm2644, %v2646, %v2642
        %v2648 = vmul.f32 %v2373, %v2647
        %v2649 = vrcp.pop %v2423
        %v2650 = vmul.f32 %v2423, %v2649
        %v2651 = vsub.f32 1.0, %v2650
        %v2652 = vmul.f32 %v2649, %v2651
        %v2653 = vadd.f32 %v2649, %v2652
        %vm2654 = vweird.f32 %v2423
        %vm2655 = vweird.f32 %v2649
        %vm2656 = vmor %vm2654, %vm2655
        %v2657 = vsel %vm2656, %v2649, %v2653
        %v2658 = vand.u32 2147483647, %v2423
        %vm2659 = vcmp.eq.f32.partialorder %v2658, 8.507059e+37
        %v2660 = vand.u32 %v2423, 2147483648
        %v2661 = vor.u32 1.1754944e-38, %v2660
        %v2662 = vsel %vm2659, %v2661, %v2657
        %v2663 = vmul.f32 %v2375, %v2662
        %v2665 = vsel %vm1063, %v2438, 0
        %v2668 = vsel %vm1063, %v2453, 0
        %v2671 = vsel %vm1063, %v2468, 0
        %v2674 = vsel %vm1063, %v2483, 0
        %v2677 = vsel %vm1063, %v2498, 0
        %v2680 = vsel %vm1063, %v2513, 0
        %v2683 = vsel %vm1063, %v2528, 0
        %v2686 = vsel %vm1063, %v2543, 0
        %v2689 = vsel %vm1063, %v2558, 0
        %v2692 = vsel %vm1063, %v2573, 0
        %v2695 = vsel %vm1063, %v2588, 0
        %v2698 = vsel %vm1063, %v2603, 0
        %v2701 = vsel %vm1063, %v2618, 0
        %v2704 = vsel %vm1063, %v2633, 0
        %v2707 = vsel %vm1063, %v2648, 0
        %v2710 = vsel %vm1063, %v2663, 0
        %2712 = vmatpush.msra.mxu0 0.0
        %2713 = vmatpush.msra.mxu0 0.0
        %2714 = vmatpush.msra.mxu0 0.0
        %2715 = vmatpush.msra.mxu0 0.0
        %2716 = vmatpush.msra.mxu0 0.0
        %2717 = vmatpush.msra.mxu0 0.0
        %2718 = vmatpush.msra.mxu0 0.0
        %2719 = vmatpush.msra.mxu0 0.0
        %2720 = vmatpush.msra.mxu0 0.0
        %2721 = vmatpush.msra.mxu0 0.0
        %2722 = vmatpush.msra.mxu0 0.0
        %2723 = vmatpush.msra.mxu0 0.0
        %2724 = vmatpush.msra.mxu0 0.0
        %2725 = vmatpush.msra.mxu0 0.0
        %2726 = vmatpush.msra.mxu0 %v958
        %2727 = vmatpush.msra.mxu0 %v955
        %2728 = vmatmul.f32.gmra.mxu0 %v2665
        %v2729 = vpop.f32.mrf.mxu0
        %v2730 = vadd.f32 0.0, %v2729
        %2731 = vmatmul.f32.gmra.mxu0 %v2668
        %v2732 = vpop.f32.mrf.mxu0
        %v2733 = vadd.f32 0.0, %v2732
        %2734 = vmatmul.f32.gmra.mxu0 %v2671
        %v2735 = vpop.f32.mrf.mxu0
        %v2736 = vadd.f32 0.0, %v2735
        %2737 = vmatmul.f32.gmra.mxu0 %v2674
        %v2738 = vpop.f32.mrf.mxu0
        %v2739 = vadd.f32 0.0, %v2738
        %2740 = vmatmul.f32.gmra.mxu0 %v2677
        %v2741 = vpop.f32.mrf.mxu0
        %v2742 = vadd.f32 0.0, %v2741
        %2743 = vmatmul.f32.gmra.mxu0 %v2680
        %v2744 = vpop.f32.mrf.mxu0
        %v2745 = vadd.f32 0.0, %v2744
        %2746 = vmatmul.f32.gmra.mxu0 %v2683
        %v2747 = vpop.f32.mrf.mxu0
        %v2748 = vadd.f32 0.0, %v2747
        %2749 = vmatmul.f32.gmra.mxu0 %v2686
        %v2750 = vpop.f32.mrf.mxu0
        %v2751 = vadd.f32 0.0, %v2750
        %2752 = vmatmul.f32.gmra.mxu0 %v2689
        %v2753 = vpop.f32.mrf.mxu0
        %v2754 = vadd.f32 0.0, %v2753
        %2755 = vmatmul.f32.gmra.mxu0 %v2692
        %v2756 = vpop.f32.mrf.mxu0
        %v2757 = vadd.f32 0.0, %v2756
        %2758 = vmatmul.f32.gmra.mxu0 %v2695
        %v2759 = vpop.f32.mrf.mxu0
        %v2760 = vadd.f32 0.0, %v2759
        %2761 = vmatmul.f32.gmra.mxu0 %v2698
        %v2762 = vpop.f32.mrf.mxu0
        %v2763 = vadd.f32 0.0, %v2762
        %2764 = vmatmul.f32.gmra.mxu0 %v2701
        %v2765 = vpop.f32.mrf.mxu0
        %v2766 = vadd.f32 0.0, %v2765
        %2767 = vmatmul.f32.gmra.mxu0 %v2704
        %v2768 = vpop.f32.mrf.mxu0
        %v2769 = vadd.f32 0.0, %v2768
        %2770 = vmatmul.f32.gmra.mxu0 %v2707
        %v2771 = vpop.f32.mrf.mxu0
        %v2772 = vadd.f32 0.0, %v2771
        %2773 = vmatmul.f32.gmra.mxu0 %v2710
        %v2774 = vpop.f32.mrf.mxu0
        %v2775 = vadd.f32 0.0, %v2774
        %2776 = vdwg.mxu0
        %v2777 = vmul.f32 %v2730, %v966
        %v2778 = vmul.f32 %v2733, %v967
        %v2779 = vmul.f32 %v2736, %v968
        %v2780 = vmul.f32 %v2739, %v969
        %v2781 = vmul.f32 %v2742, %v970
        %v2782 = vmul.f32 %v2745, %v971
        %v2783 = vmul.f32 %v2748, %v972
        %v2784 = vmul.f32 %v2751, %v973
        %v2785 = vmul.f32 %v2754, %v974
        %v2786 = vmul.f32 %v2757, %v975
        %v2787 = vmul.f32 %v2760, %v976
        %v2788 = vmul.f32 %v2763, %v977
        %v2789 = vmul.f32 %v2766, %v978
        %v2790 = vmul.f32 %v2769, %v979
        %v2791 = vmul.f32 %v2772, %v980
        %v2792 = vmul.f32 %v2775, %v981
        %v2793 = vadd.f32 %v2777, %v2779
        %v2794 = vadd.f32 %v2778, %v2780
        %v2795 = vadd.f32 %v2793, %v2781
        %v2796 = vadd.f32 %v2794, %v2782
        %v2797 = vadd.f32 %v2795, %v2783
        %v2798 = vadd.f32 %v2796, %v2784
        %v2799 = vadd.f32 %v2797, %v2785
        %v2800 = vadd.f32 %v2798, %v2786
        %v2801 = vadd.f32 %v2799, %v2787
        %v2802 = vadd.f32 %v2800, %v2788
        %v2803 = vadd.f32 %v2801, %v2789
        %v2804 = vadd.f32 %v2802, %v2790
        %v2805 = vadd.f32 %v2803, %v2791
        %v2806 = vadd.f32 %v2804, %v2792
        %v2807 = vmul.f32 %v879, %v966
        %v2808 = vmul.f32 %v882, %v967
        %v2809 = vmul.f32 %v879, %v968
        %v2810 = vmul.f32 %v882, %v969
        %v2811 = vmul.f32 %v879, %v970
        %v2812 = vmul.f32 %v882, %v971
        %v2813 = vmul.f32 %v879, %v972
        %v2814 = vmul.f32 %v882, %v973
        %v2815 = vmul.f32 %v879, %v974
        %v2816 = vmul.f32 %v882, %v975
        %v2817 = vmul.f32 %v879, %v976
        %v2818 = vmul.f32 %v882, %v977
        %v2819 = vmul.f32 %v879, %v978
        %v2820 = vmul.f32 %v882, %v979
        %v2821 = vmul.f32 %v879, %v980
        %v2822 = vmul.f32 %v882, %v981
        %2823 = vmatpush.xpose.msra.mxu0 0.0
        %2824 = vmatpush.xpose.msra.mxu0 0.0
        %2825 = vmatpush.xpose.msra.mxu0 0.0
        %2826 = vmatpush.xpose.msra.mxu0 0.0
        %2827 = vmatpush.xpose.msra.mxu0 0.0
        %2828 = vmatpush.xpose.msra.mxu0 0.0
        %2829 = vmatpush.xpose.msra.mxu0 0.0
        %2830 = vmatpush.xpose.msra.mxu0 0.0
        %2831 = vmatpush.xpose.msra.mxu0 0.0
        %2832 = vmatpush.xpose.msra.mxu0 0.0
        %2833 = vmatpush.xpose.msra.mxu0 0.0
        %2834 = vmatpush.xpose.msra.mxu0 0.0
        %2835 = vmatpush.xpose.msra.mxu0 0.0
        %2836 = vmatpush.xpose.msra.mxu0 0.0
        %2837 = vmatpush.xpose.msra.mxu0 %v923
        %2838 = vmatpush.xpose.msra.mxu0 %v920
        %2839 = vmatmul.f32.gmra.mxu0 %v2807
        %v2840 = vpop.f32.mrf.mxu0
        %v2841 = vadd.f32 0.0, %v2840
        %2842 = vmatmul.f32.gmra.mxu0 %v2808
        %v2843 = vpop.f32.mrf.mxu0
        %v2844 = vadd.f32 0.0, %v2843
        %2845 = vmatmul.f32.gmra.mxu0 %v2809
        %v2846 = vpop.f32.mrf.mxu0
        %v2847 = vadd.f32 0.0, %v2846
        %2848 = vmatmul.f32.gmra.mxu0 %v2810
        %v2849 = vpop.f32.mrf.mxu0
        %v2850 = vadd.f32 0.0, %v2849
        %2851 = vmatmul.f32.gmra.mxu0 %v2811
        %v2852 = vpop.f32.mrf.mxu0
        %v2853 = vadd.f32 0.0, %v2852
        %2854 = vmatmul.f32.gmra.mxu0 %v2812
        %v2855 = vpop.f32.mrf.mxu0
        %v2856 = vadd.f32 0.0, %v2855
        %2857 = vmatmul.f32.gmra.mxu0 %v2813
        %v2858 = vpop.f32.mrf.mxu0
        %v2859 = vadd.f32 0.0, %v2858
        %2860 = vmatmul.f32.gmra.mxu0 %v2814
        %v2861 = vpop.f32.mrf.mxu0
        %v2862 = vadd.f32 0.0, %v2861
        %2863 = vmatmul.f32.gmra.mxu0 %v2815
        %v2864 = vpop.f32.mrf.mxu0
        %v2865 = vadd.f32 0.0, %v2864
        %2866 = vmatmul.f32.gmra.mxu0 %v2816
        %v2867 = vpop.f32.mrf.mxu0
        %v2868 = vadd.f32 0.0, %v2867
        %2869 = vmatmul.f32.gmra.mxu0 %v2817
        %v2870 = vpop.f32.mrf.mxu0
        %v2871 = vadd.f32 0.0, %v2870
        %2872 = vmatmul.f32.gmra.mxu0 %v2818
        %v2873 = vpop.f32.mrf.mxu0
        %v2874 = vadd.f32 0.0, %v2873
        %2875 = vmatmul.f32.gmra.mxu0 %v2819
        %v2876 = vpop.f32.mrf.mxu0
        %v2877 = vadd.f32 0.0, %v2876
        %2878 = vmatmul.f32.gmra.mxu0 %v2820
        %v2879 = vpop.f32.mrf.mxu0
        %v2880 = vadd.f32 0.0, %v2879
        %2881 = vmatmul.f32.gmra.mxu0 %v2821
        %v2882 = vpop.f32.mrf.mxu0
        %v2883 = vadd.f32 0.0, %v2882
        %2884 = vmatmul.f32.gmra.mxu0 %v2822
        %v2885 = vpop.f32.mrf.mxu0
        %v2886 = vadd.f32 0.0, %v2885
        %2887 = vdwg.mxu0
        %v2888 = vsel %vm1063, %v2841, -inf
        %2889 = vmax.xlane.f32.xlu0 %v2888
        %v2890 = vpop.xlane.xlu0 %2889
        %v2891 = vsel %vm1063, %v2844, -inf
        %2892 = vmax.xlane.f32.xlu0 %v2891
        %v2893 = vpop.xlane.xlu0 %2892
        %v2894 = vsel %vm1063, %v2847, -inf
        %2895 = vmax.xlane.f32.xlu0 %v2894
        %v2896 = vpop.xlane.xlu0 %2895
        %v2897 = vsel %vm1063, %v2850, -inf
        %2898 = vmax.xlane.f32.xlu0 %v2897
        %v2899 = vpop.xlane.xlu0 %2898
        %v2900 = vsel %vm1063, %v2853, -inf
        %2901 = vmax.xlane.f32.xlu0 %v2900
        %v2902 = vpop.xlane.xlu0 %2901
        %v2903 = vsel %vm1063, %v2856, -inf
        %2904 = vmax.xlane.f32.xlu0 %v2903
        %v2905 = vpop.xlane.xlu0 %2904
        %v2906 = vsel %vm1063, %v2859, -inf
        %2907 = vmax.xlane.f32.xlu0 %v2906
        %v2908 = vpop.xlane.xlu0 %2907
        %v2909 = vsel %vm1063, %v2862, -inf
        %2910 = vmax.xlane.f32.xlu0 %v2909
        %v2911 = vpop.xlane.xlu0 %2910
        %v2912 = vsel %vm1063, %v2865, -inf
        %2913 = vmax.xlane.f32.xlu0 %v2912
        %v2914 = vpop.xlane.xlu0 %2913
        %v2915 = vsel %vm1063, %v2868, -inf
        %2916 = vmax.xlane.f32.xlu0 %v2915
        %v2917 = vpop.xlane.xlu0 %2916
        %v2918 = vsel %vm1063, %v2871, -inf
        %2919 = vmax.xlane.f32.xlu0 %v2918
        %v2920 = vpop.xlane.xlu0 %2919
        %v2921 = vsel %vm1063, %v2874, -inf
        %2922 = vmax.xlane.f32.xlu0 %v2921
        %v2923 = vpop.xlane.xlu0 %2922
        %v2924 = vsel %vm1063, %v2877, -inf
        %2925 = vmax.xlane.f32.xlu0 %v2924
        %v2926 = vpop.xlane.xlu0 %2925
        %v2927 = vsel %vm1063, %v2880, -inf
        %2928 = vmax.xlane.f32.xlu0 %v2927
        %v2929 = vpop.xlane.xlu0 %2928
        %v2930 = vsel %vm1063, %v2883, -inf
        %2931 = vmax.xlane.f32.xlu0 %v2930
        %v2932 = vpop.xlane.xlu0 %2931
        %v2933 = vsel %vm1063, %v2886, -inf
        %2934 = vmax.xlane.f32.xlu0 %v2933
        %v2935 = vpop.xlane.xlu0 %2934
        %v2936 = vsub.f32 %v2841, %v2890
        %v2937 = vsub.f32 %v2844, %v2893
        %v2938 = vsub.f32 %v2847, %v2896
        %v2939 = vsub.f32 %v2850, %v2899
        %v2940 = vsub.f32 %v2853, %v2902
        %v2941 = vsub.f32 %v2856, %v2905
        %v2942 = vsub.f32 %v2859, %v2908
        %v2943 = vsub.f32 %v2862, %v2911
        %v2944 = vsub.f32 %v2865, %v2914
        %v2945 = vsub.f32 %v2868, %v2917
        %v2946 = vsub.f32 %v2871, %v2920
        %v2947 = vsub.f32 %v2874, %v2923
        %v2948 = vsub.f32 %v2877, %v2926
        %v2949 = vsub.f32 %v2880, %v2929
        %v2950 = vsub.f32 %v2883, %v2932
        %v2951 = vsub.f32 %v2886, %v2935
        %v2952 = vmul.f32 %v2936, 1.442695
        %v2953 = vpow.pop %v2952
        %v2954 = vmul.f32 %v2937, 1.442695
        %v2955 = vpow.pop %v2954
        %v2956 = vmul.f32 %v2938, 1.442695
        %v2957 = vpow.pop %v2956
        %v2958 = vmul.f32 %v2939, 1.442695
        %v2959 = vpow.pop %v2958
        %v2960 = vmul.f32 %v2940, 1.442695
        %v2961 = vpow.pop %v2960
        %v2962 = vmul.f32 %v2941, 1.442695
        %v2963 = vpow.pop %v2962
        %v2964 = vmul.f32 %v2942, 1.442695
        %v2965 = vpow.pop %v2964
        %v2966 = vmul.f32 %v2943, 1.442695
        %v2967 = vpow.pop %v2966
        %v2968 = vmul.f32 %v2944, 1.442695
        %v2969 = vpow.pop %v2968
        %v2970 = vmul.f32 %v2945, 1.442695
        %v2971 = vpow.pop %v2970
        %v2972 = vmul.f32 %v2946, 1.442695
        %v2973 = vpow.pop %v2972
        %v2974 = vmul.f32 %v2947, 1.442695
        %v2975 = vpow.pop %v2974
        %v2976 = vmul.f32 %v2948, 1.442695
        %v2977 = vpow.pop %v2976
        %v2978 = vmul.f32 %v2949, 1.442695
        %v2979 = vpow.pop %v2978
        %v2980 = vmul.f32 %v2950, 1.442695
        %v2981 = vpow.pop %v2980
        %v2982 = vmul.f32 %v2951, 1.442695
        %v2983 = vpow.pop %v2982
        %v2984 = vsel %vm1063, %v2953, 0.0
        %2985 = vadd.xlane.f32.xlu0 %v2984
        %v2986 = vpop.xlane.xlu0 %2985
        %v2987 = vsel %vm1063, %v2955, 0.0
        %2988 = vadd.xlane.f32.xlu0 %v2987
        %v2989 = vpop.xlane.xlu0 %2988
        %v2990 = vsel %vm1063, %v2957, 0.0
        %2991 = vadd.xlane.f32.xlu0 %v2990
        %v2992 = vpop.xlane.xlu0 %2991
        %v2993 = vsel %vm1063, %v2959, 0.0
        %2994 = vadd.xlane.f32.xlu0 %v2993
        %v2995 = vpop.xlane.xlu0 %2994
        %v2996 = vsel %vm1063, %v2961, 0.0
        %2997 = vadd.xlane.f32.xlu0 %v2996
        %v2998 = vpop.xlane.xlu0 %2997
        %v2999 = vsel %vm1063, %v2963, 0.0
        %3000 = vadd.xlane.f32.xlu0 %v2999
        %v3001 = vpop.xlane.xlu0 %3000
        %v3002 = vsel %vm1063, %v2965, 0.0
        %3003 = vadd.xlane.f32.xlu0 %v3002
        %v3004 = vpop.xlane.xlu0 %3003
        %v3005 = vsel %vm1063, %v2967, 0.0
        %3006 = vadd.xlane.f32.xlu0 %v3005
        %v3007 = vpop.xlane.xlu0 %3006
        %v3008 = vsel %vm1063, %v2969, 0.0
        %3009 = vadd.xlane.f32.xlu0 %v3008
        %v3010 = vpop.xlane.xlu0 %3009
        %v3011 = vsel %vm1063, %v2971, 0.0
        %3012 = vadd.xlane.f32.xlu0 %v3011
        %v3013 = vpop.xlane.xlu0 %3012
        %v3014 = vsel %vm1063, %v2973, 0.0
        %3015 = vadd.xlane.f32.xlu0 %v3014
        %v3016 = vpop.xlane.xlu0 %3015
        %v3017 = vsel %vm1063, %v2975, 0.0
        %3018 = vadd.xlane.f32.xlu0 %v3017
        %v3019 = vpop.xlane.xlu0 %3018
        %v3020 = vsel %vm1063, %v2977, 0.0
        %3021 = vadd.xlane.f32.xlu0 %v3020
        %v3022 = vpop.xlane.xlu0 %3021
        %v3023 = vsel %vm1063, %v2979, 0.0
        %3024 = vadd.xlane.f32.xlu0 %v3023
        %v3025 = vpop.xlane.xlu0 %3024
        %v3026 = vsel %vm1063, %v2981, 0.0
        %3027 = vadd.xlane.f32.xlu0 %v3026
        %v3028 = vpop.xlane.xlu0 %3027
        %v3029 = vsel %vm1063, %v2983, 0.0
        %3030 = vadd.xlane.f32.xlu0 %v3029
        %v3031 = vpop.xlane.xlu0 %3030
        %v3032 = vrcp.pop %v2986
        %v3033 = vmul.f32 %v2986, %v3032
        %v3034 = vsub.f32 1.0, %v3033
        %v3035 = vmul.f32 %v3032, %v3034
        %v3036 = vadd.f32 %v3032, %v3035
        %vm3037 = vweird.f32 %v2986
        %vm3038 = vweird.f32 %v3032
        %vm3039 = vmor %vm3037, %vm3038
        %v3040 = vsel %vm3039, %v3032, %v3036
        %v3041 = vand.u32 2147483647, %v2986
        %vm3042 = vcmp.eq.f32.partialorder %v3041, 8.507059e+37
        %v3043 = vand.u32 %v2986, 2147483648
        %v3044 = vor.u32 1.1754944e-38, %v3043
        %v3045 = vsel %vm3042, %v3044, %v3040
        %v3046 = vmul.f32 %v2953, %v3045
        %v3047 = vrcp.pop %v2989
        %v3048 = vmul.f32 %v2989, %v3047
        %v3049 = vsub.f32 1.0, %v3048
        %v3050 = vmul.f32 %v3047, %v3049
        %v3051 = vadd.f32 %v3047, %v3050
        %vm3052 = vweird.f32 %v2989
        %vm3053 = vweird.f32 %v3047
        %vm3054 = vmor %vm3052, %vm3053
        %v3055 = vsel %vm3054, %v3047, %v3051
        %v3056 = vand.u32 2147483647, %v2989
        %vm3057 = vcmp.eq.f32.partialorder %v3056, 8.507059e+37
        %v3058 = vand.u32 %v2989, 2147483648
        %v3059 = vor.u32 1.1754944e-38, %v3058
        %v3060 = vsel %vm3057, %v3059, %v3055
        %v3061 = vmul.f32 %v2955, %v3060
        %v3062 = vrcp.pop %v2992
        %v3063 = vmul.f32 %v2992, %v3062
        %v3064 = vsub.f32 1.0, %v3063
        %v3065 = vmul.f32 %v3062, %v3064
        %v3066 = vadd.f32 %v3062, %v3065
        %vm3067 = vweird.f32 %v2992
        %vm3068 = vweird.f32 %v3062
        %vm3069 = vmor %vm3067, %vm3068
        %v3070 = vsel %vm3069, %v3062, %v3066
        %v3071 = vand.u32 2147483647, %v2992
        %vm3072 = vcmp.eq.f32.partialorder %v3071, 8.507059e+37
        %v3073 = vand.u32 %v2992, 2147483648
        %v3074 = vor.u32 1.1754944e-38, %v3073
        %v3075 = vsel %vm3072, %v3074, %v3070
        %v3076 = vmul.f32 %v2957, %v3075
        %v3077 = vrcp.pop %v2995
        %v3078 = vmul.f32 %v2995, %v3077
        %v3079 = vsub.f32 1.0, %v3078
        %v3080 = vmul.f32 %v3077, %v3079
        %v3081 = vadd.f32 %v3077, %v3080
        %vm3082 = vweird.f32 %v2995
        %vm3083 = vweird.f32 %v3077
        %vm3084 = vmor %vm3082, %vm3083
        %v3085 = vsel %vm3084, %v3077, %v3081
        %v3086 = vand.u32 2147483647, %v2995
        %vm3087 = vcmp.eq.f32.partialorder %v3086, 8.507059e+37
        %v3088 = vand.u32 %v2995, 2147483648
        %v3089 = vor.u32 1.1754944e-38, %v3088
        %v3090 = vsel %vm3087, %v3089, %v3085
        %v3091 = vmul.f32 %v2959, %v3090
        %v3092 = vrcp.pop %v2998
        %v3093 = vmul.f32 %v2998, %v3092
        %v3094 = vsub.f32 1.0, %v3093
        %v3095 = vmul.f32 %v3092, %v3094
        %v3096 = vadd.f32 %v3092, %v3095
        %vm3097 = vweird.f32 %v2998
        %vm3098 = vweird.f32 %v3092
        %vm3099 = vmor %vm3097, %vm3098
        %v3100 = vsel %vm3099, %v3092, %v3096
        %v3101 = vand.u32 2147483647, %v2998
        %vm3102 = vcmp.eq.f32.partialorder %v3101, 8.507059e+37
        %v3103 = vand.u32 %v2998, 2147483648
        %v3104 = vor.u32 1.1754944e-38, %v3103
        %v3105 = vsel %vm3102, %v3104, %v3100
        %v3106 = vmul.f32 %v2961, %v3105
        %v3107 = vrcp.pop %v3001
        %v3108 = vmul.f32 %v3001, %v3107
        %v3109 = vsub.f32 1.0, %v3108
        %v3110 = vmul.f32 %v3107, %v3109
        %v3111 = vadd.f32 %v3107, %v3110
        %vm3112 = vweird.f32 %v3001
        %vm3113 = vweird.f32 %v3107
        %vm3114 = vmor %vm3112, %vm3113
        %v3115 = vsel %vm3114, %v3107, %v3111
        %v3116 = vand.u32 2147483647, %v3001
        %vm3117 = vcmp.eq.f32.partialorder %v3116, 8.507059e+37
        %v3118 = vand.u32 %v3001, 2147483648
        %v3119 = vor.u32 1.1754944e-38, %v3118
        %v3120 = vsel %vm3117, %v3119, %v3115
        %v3121 = vmul.f32 %v2963, %v3120
        %v3122 = vrcp.pop %v3004
        %v3123 = vmul.f32 %v3004, %v3122
        %v3124 = vsub.f32 1.0, %v3123
        %v3125 = vmul.f32 %v3122, %v3124
        %v3126 = vadd.f32 %v3122, %v3125
        %vm3127 = vweird.f32 %v3004
        %vm3128 = vweird.f32 %v3122
        %vm3129 = vmor %vm3127, %vm3128
        %v3130 = vsel %vm3129, %v3122, %v3126
        %v3131 = vand.u32 2147483647, %v3004
        %vm3132 = vcmp.eq.f32.partialorder %v3131, 8.507059e+37
        %v3133 = vand.u32 %v3004, 2147483648
        %v3134 = vor.u32 1.1754944e-38, %v3133
        %v3135 = vsel %vm3132, %v3134, %v3130
        %v3136 = vmul.f32 %v2965, %v3135
        %v3137 = vrcp.pop %v3007
        %v3138 = vmul.f32 %v3007, %v3137
        %v3139 = vsub.f32 1.0, %v3138
        %v3140 = vmul.f32 %v3137, %v3139
        %v3141 = vadd.f32 %v3137, %v3140
        %vm3142 = vweird.f32 %v3007
        %vm3143 = vweird.f32 %v3137
        %vm3144 = vmor %vm3142, %vm3143
        %v3145 = vsel %vm3144, %v3137, %v3141
        %v3146 = vand.u32 2147483647, %v3007
        %vm3147 = vcmp.eq.f32.partialorder %v3146, 8.507059e+37
        %v3148 = vand.u32 %v3007, 2147483648
        %v3149 = vor.u32 1.1754944e-38, %v3148
        %v3150 = vsel %vm3147, %v3149, %v3145
        %v3151 = vmul.f32 %v2967, %v3150
        %v3152 = vrcp.pop %v3010
        %v3153 = vmul.f32 %v3010, %v3152
        %v3154 = vsub.f32 1.0, %v3153
        %v3155 = vmul.f32 %v3152, %v3154
        %v3156 = vadd.f32 %v3152, %v3155
        %vm3157 = vweird.f32 %v3010
        %vm3158 = vweird.f32 %v3152
        %vm3159 = vmor %vm3157, %vm3158
        %v3160 = vsel %vm3159, %v3152, %v3156
        %v3161 = vand.u32 2147483647, %v3010
        %vm3162 = vcmp.eq.f32.partialorder %v3161, 8.507059e+37
        %v3163 = vand.u32 %v3010, 2147483648
        %v3164 = vor.u32 1.1754944e-38, %v3163
        %v3165 = vsel %vm3162, %v3164, %v3160
        %v3166 = vmul.f32 %v2969, %v3165
        %v3167 = vrcp.pop %v3013
        %v3168 = vmul.f32 %v3013, %v3167
        %v3169 = vsub.f32 1.0, %v3168
        %v3170 = vmul.f32 %v3167, %v3169
        %v3171 = vadd.f32 %v3167, %v3170
        %vm3172 = vweird.f32 %v3013
        %vm3173 = vweird.f32 %v3167
        %vm3174 = vmor %vm3172, %vm3173
        %v3175 = vsel %vm3174, %v3167, %v3171
        %v3176 = vand.u32 2147483647, %v3013
        %vm3177 = vcmp.eq.f32.partialorder %v3176, 8.507059e+37
        %v3178 = vand.u32 %v3013, 2147483648
        %v3179 = vor.u32 1.1754944e-38, %v3178
        %v3180 = vsel %vm3177, %v3179, %v3175
        %v3181 = vmul.f32 %v2971, %v3180
        %v3182 = vrcp.pop %v3016
        %v3183 = vmul.f32 %v3016, %v3182
        %v3184 = vsub.f32 1.0, %v3183
        %v3185 = vmul.f32 %v3182, %v3184
        %v3186 = vadd.f32 %v3182, %v3185
        %vm3187 = vweird.f32 %v3016
        %vm3188 = vweird.f32 %v3182
        %vm3189 = vmor %vm3187, %vm3188
        %v3190 = vsel %vm3189, %v3182, %v3186
        %v3191 = vand.u32 2147483647, %v3016
        %vm3192 = vcmp.eq.f32.partialorder %v3191, 8.507059e+37
        %v3193 = vand.u32 %v3016, 2147483648
        %v3194 = vor.u32 1.1754944e-38, %v3193
        %v3195 = vsel %vm3192, %v3194, %v3190
        %v3196 = vmul.f32 %v2973, %v3195
        %v3197 = vrcp.pop %v3019
        %v3198 = vmul.f32 %v3019, %v3197
        %v3199 = vsub.f32 1.0, %v3198
        %v3200 = vmul.f32 %v3197, %v3199
        %v3201 = vadd.f32 %v3197, %v3200
        %vm3202 = vweird.f32 %v3019
        %vm3203 = vweird.f32 %v3197
        %vm3204 = vmor %vm3202, %vm3203
        %v3205 = vsel %vm3204, %v3197, %v3201
        %v3206 = vand.u32 2147483647, %v3019
        %vm3207 = vcmp.eq.f32.partialorder %v3206, 8.507059e+37
        %v3208 = vand.u32 %v3019, 2147483648
        %v3209 = vor.u32 1.1754944e-38, %v3208
        %v3210 = vsel %vm3207, %v3209, %v3205
        %v3211 = vmul.f32 %v2975, %v3210
        %v3212 = vrcp.pop %v3022
        %v3213 = vmul.f32 %v3022, %v3212
        %v3214 = vsub.f32 1.0, %v3213
        %v3215 = vmul.f32 %v3212, %v3214
        %v3216 = vadd.f32 %v3212, %v3215
        %vm3217 = vweird.f32 %v3022
        %vm3218 = vweird.f32 %v3212
        %vm3219 = vmor %vm3217, %vm3218
        %v3220 = vsel %vm3219, %v3212, %v3216
        %v3221 = vand.u32 2147483647, %v3022
        %vm3222 = vcmp.eq.f32.partialorder %v3221, 8.507059e+37
        %v3223 = vand.u32 %v3022, 2147483648
        %v3224 = vor.u32 1.1754944e-38, %v3223
        %v3225 = vsel %vm3222, %v3224, %v3220
        %v3226 = vmul.f32 %v2977, %v3225
        %v3227 = vrcp.pop %v3025
        %v3228 = vmul.f32 %v3025, %v3227
        %v3229 = vsub.f32 1.0, %v3228
        %v3230 = vmul.f32 %v3227, %v3229
        %v3231 = vadd.f32 %v3227, %v3230
        %vm3232 = vweird.f32 %v3025
        %vm3233 = vweird.f32 %v3227
        %vm3234 = vmor %vm3232, %vm3233
        %v3235 = vsel %vm3234, %v3227, %v3231
        %v3236 = vand.u32 2147483647, %v3025
        %vm3237 = vcmp.eq.f32.partialorder %v3236, 8.507059e+37
        %v3238 = vand.u32 %v3025, 2147483648
        %v3239 = vor.u32 1.1754944e-38, %v3238
        %v3240 = vsel %vm3237, %v3239, %v3235
        %v3241 = vmul.f32 %v2979, %v3240
        %v3242 = vrcp.pop %v3028
        %v3243 = vmul.f32 %v3028, %v3242
        %v3244 = vsub.f32 1.0, %v3243
        %v3245 = vmul.f32 %v3242, %v3244
        %v3246 = vadd.f32 %v3242, %v3245
        %vm3247 = vweird.f32 %v3028
        %vm3248 = vweird.f32 %v3242
        %vm3249 = vmor %vm3247, %vm3248
        %v3250 = vsel %vm3249, %v3242, %v3246
        %v3251 = vand.u32 2147483647, %v3028
        %vm3252 = vcmp.eq.f32.partialorder %v3251, 8.507059e+37
        %v3253 = vand.u32 %v3028, 2147483648
        %v3254 = vor.u32 1.1754944e-38, %v3253
        %v3255 = vsel %vm3252, %v3254, %v3250
        %v3256 = vmul.f32 %v2981, %v3255
        %v3257 = vrcp.pop %v3031
        %v3258 = vmul.f32 %v3031, %v3257
        %v3259 = vsub.f32 1.0, %v3258
        %v3260 = vmul.f32 %v3257, %v3259
        %v3261 = vadd.f32 %v3257, %v3260
        %vm3262 = vweird.f32 %v3031
        %vm3263 = vweird.f32 %v3257
        %vm3264 = vmor %vm3262, %vm3263
        %v3265 = vsel %vm3264, %v3257, %v3261
        %v3266 = vand.u32 2147483647, %v3031
        %vm3267 = vcmp.eq.f32.partialorder %v3266, 8.507059e+37
        %v3268 = vand.u32 %v3031, 2147483648
        %v3269 = vor.u32 1.1754944e-38, %v3268
        %v3270 = vsel %vm3267, %v3269, %v3265
        %v3271 = vmul.f32 %v2983, %v3270
        %v3273 = vsel %vm1063, %v3046, 0
        %v3276 = vsel %vm1063, %v3061, 0
        %v3279 = vsel %vm1063, %v3076, 0
        %v3282 = vsel %vm1063, %v3091, 0
        %v3285 = vsel %vm1063, %v3106, 0
        %v3288 = vsel %vm1063, %v3121, 0
        %v3291 = vsel %vm1063, %v3136, 0
        %v3294 = vsel %vm1063, %v3151, 0
        %v3297 = vsel %vm1063, %v3166, 0
        %v3300 = vsel %vm1063, %v3181, 0
        %v3303 = vsel %vm1063, %v3196, 0
        %v3306 = vsel %vm1063, %v3211, 0
        %v3309 = vsel %vm1063, %v3226, 0
        %v3312 = vsel %vm1063, %v3241, 0
        %v3315 = vsel %vm1063, %v3256, 0
        %v3318 = vsel %vm1063, %v3271, 0
        %3320 = vmatpush.msra.mxu0 0.0
        %3321 = vmatpush.msra.mxu0 0.0
        %3322 = vmatpush.msra.mxu0 0.0
        %3323 = vmatpush.msra.mxu0 0.0
        %3324 = vmatpush.msra.mxu0 0.0
        %3325 = vmatpush.msra.mxu0 0.0
        %3326 = vmatpush.msra.mxu0 0.0
        %3327 = vmatpush.msra.mxu0 0.0
        %3328 = vmatpush.msra.mxu0 0.0
        %3329 = vmatpush.msra.mxu0 0.0
        %3330 = vmatpush.msra.mxu0 0.0
        %3331 = vmatpush.msra.mxu0 0.0
        %3332 = vmatpush.msra.mxu0 0.0
        %3333 = vmatpush.msra.mxu0 0.0
        %3334 = vmatpush.msra.mxu0 %v964
        %3335 = vmatpush.msra.mxu0 %v961
        %3336 = vmatmul.f32.gmra.mxu0 %v3273
        %v3337 = vpop.f32.mrf.mxu0
        %v3338 = vadd.f32 0.0, %v3337
        %3339 = vmatmul.f32.gmra.mxu0 %v3276
        %v3340 = vpop.f32.mrf.mxu0
        %v3341 = vadd.f32 0.0, %v3340
        %3342 = vmatmul.f32.gmra.mxu0 %v3279
        %v3343 = vpop.f32.mrf.mxu0
        %v3344 = vadd.f32 0.0, %v3343
        %3345 = vmatmul.f32.gmra.mxu0 %v3282
        %v3346 = vpop.f32.mrf.mxu0
        %v3347 = vadd.f32 0.0, %v3346
        %3348 = vmatmul.f32.gmra.mxu0 %v3285
        %v3349 = vpop.f32.mrf.mxu0
        %v3350 = vadd.f32 0.0, %v3349
        %3351 = vmatmul.f32.gmra.mxu0 %v3288
        %v3352 = vpop.f32.mrf.mxu0
        %v3353 = vadd.f32 0.0, %v3352
        %3354 = vmatmul.f32.gmra.mxu0 %v3291
        %v3355 = vpop.f32.mrf.mxu0
        %v3356 = vadd.f32 0.0, %v3355
        %3357 = vmatmul.f32.gmra.mxu0 %v3294
        %v3358 = vpop.f32.mrf.mxu0
        %v3359 = vadd.f32 0.0, %v3358
        %3360 = vmatmul.f32.gmra.mxu0 %v3297
        %v3361 = vpop.f32.mrf.mxu0
        %v3362 = vadd.f32 0.0, %v3361
        %3363 = vmatmul.f32.gmra.mxu0 %v3300
        %v3364 = vpop.f32.mrf.mxu0
        %v3365 = vadd.f32 0.0, %v3364
        %3366 = vmatmul.f32.gmra.mxu0 %v3303
        %v3367 = vpop.f32.mrf.mxu0
        %v3368 = vadd.f32 0.0, %v3367
        %3369 = vmatmul.f32.gmra.mxu0 %v3306
        %v3370 = vpop.f32.mrf.mxu0
        %v3371 = vadd.f32 0.0, %v3370
        %3372 = vmatmul.f32.gmra.mxu0 %v3309
        %v3373 = vpop.f32.mrf.mxu0
        %v3374 = vadd.f32 0.0, %v3373
        %3375 = vmatmul.f32.gmra.mxu0 %v3312
        %v3376 = vpop.f32.mrf.mxu0
        %v3377 = vadd.f32 0.0, %v3376
        %3378 = vmatmul.f32.gmra.mxu0 %v3315
        %v3379 = vpop.f32.mrf.mxu0
        %v3380 = vadd.f32 0.0, %v3379
        %3381 = vmatmul.f32.gmra.mxu0 %v3318
        %v3382 = vpop.f32.mrf.mxu0
        %v3383 = vadd.f32 0.0, %v3382
        %3384 = vdwg.mxu0
        %v3385 = vmul.f32 %v3338, %v966
        %v3386 = vmul.f32 %v3341, %v967
        %v3387 = vmul.f32 %v3344, %v968
        %v3388 = vmul.f32 %v3347, %v969
        %v3389 = vmul.f32 %v3350, %v970
        %v3390 = vmul.f32 %v3353, %v971
        %v3391 = vmul.f32 %v3356, %v972
        %v3392 = vmul.f32 %v3359, %v973
        %v3393 = vmul.f32 %v3362, %v974
        %v3394 = vmul.f32 %v3365, %v975
        %v3395 = vmul.f32 %v3368, %v976
        %v3396 = vmul.f32 %v3371, %v977
        %v3397 = vmul.f32 %v3374, %v978
        %v3398 = vmul.f32 %v3377, %v979
        %v3399 = vmul.f32 %v3380, %v980
        %v3400 = vmul.f32 %v3383, %v981
        %v3401 = vadd.f32 %v3385, %v3387
        %v3402 = vadd.f32 %v3386, %v3388
        %v3403 = vadd.f32 %v3401, %v3389
        %v3404 = vadd.f32 %v3402, %v3390
        %v3405 = vadd.f32 %v3403, %v3391
        %v3406 = vadd.f32 %v3404, %v3392
        %v3407 = vadd.f32 %v3405, %v3393
        %v3408 = vadd.f32 %v3406, %v3394
        %v3409 = vadd.f32 %v3407, %v3395
        %v3410 = vadd.f32 %v3408, %v3396
        %v3411 = vadd.f32 %v3409, %v3397
        %v3412 = vadd.f32 %v3410, %v3398
        %v3413 = vadd.f32 %v3411, %v3399
        %v3414 = vadd.f32 %v3412, %v3400
        %v3415 = vld [vmem:[#allocation10] sm:$0xff]
        %v3416 = vld [vmem:[#allocation10 + $0x8] sm:$0xff]
        %v3417 = vld [vmem:[#allocation10 + $0x10] sm:$0xff]
        %v3418 = vld [vmem:[#allocation10 + $0x18] sm:$0xff]
        %v3419 = vld [vmem:[#allocation10 + $0x20] sm:$0xff]
        %v3420 = vld [vmem:[#allocation10 + $0x28] sm:$0xff]
        %v3421 = vld [vmem:[#allocation10 + $0x30] sm:$0xff]
        %v3422 = vld [vmem:[#allocation10 + $0x38] sm:$0xff]
        %v3423 = vld [vmem:[#allocation10 + $0x40] sm:$0xff]
        %v3424 = vld [vmem:[#allocation10 + $0x48] sm:$0xff]
        %v3425 = vld [vmem:[#allocation10 + $0x50] sm:$0xff]
        %v3426 = vld [vmem:[#allocation10 + $0x58] sm:$0xff]
        %v3427 = vld [vmem:[#allocation10 + $0x60] sm:$0xff]
        %v3428 = vld [vmem:[#allocation10 + $0x68] sm:$0xff]
        %v3429 = vld [vmem:[#allocation10 + $0x70] sm:$0xff]
        %v3430 = vld [vmem:[#allocation10 + $0x78] sm:$0xff]
        %v3431 = vld [vmem:[%s7] sm:$0x1]
        %v3433 = vperm.slane %v3431, 0
        %3435 = vmatpush.msra.mxu0 %v3430
        %3436 = vmatpush.msra.mxu0 %v3429
        %3437 = vmatpush.msra.mxu0 %v3428
        %3438 = vmatpush.msra.mxu0 %v3427
        %3439 = vmatpush.msra.mxu0 %v3426
        %3440 = vmatpush.msra.mxu0 %v3425
        %3441 = vmatpush.msra.mxu0 %v3424
        %3442 = vmatpush.msra.mxu0 %v3423
        %3443 = vmatpush.msra.mxu0 %v3422
        %3444 = vmatpush.msra.mxu0 %v3421
        %3445 = vmatpush.msra.mxu0 %v3420
        %3446 = vmatpush.msra.mxu0 %v3419
        %3447 = vmatpush.msra.mxu0 %v3418
        %3448 = vmatpush.msra.mxu0 %v3417
        %3449 = vmatpush.msra.mxu0 %v3416
        %3450 = vmatpush.msra.mxu0 %v3415
        %3451 = vmatmul.f32.gmra.mxu0 %v1589
        %v3452 = vpop.f32.mrf.mxu0
        %v3453 = vadd.f32 %v3433, %v3452
        %3454 = vmatmul.f32.gmra.mxu0 %v1590
        %v3455 = vpop.f32.mrf.mxu0
        %v3456 = vadd.f32 %v3433, %v3455
        %3457 = vmatmul.f32.gmra.mxu0 %v2197
        %v3458 = vpop.f32.mrf.mxu0
        %v3459 = vadd.f32 %v3433, %v3458
        %3460 = vmatmul.f32.gmra.mxu0 %v2198
        %v3461 = vpop.f32.mrf.mxu0
        %v3462 = vadd.f32 %v3433, %v3461
        %3463 = vmatmul.f32.gmra.mxu0 %v2805
        %v3464 = vpop.f32.mrf.mxu0
        %v3465 = vadd.f32 %v3433, %v3464
        %3466 = vmatmul.f32.gmra.mxu0 %v2806
        %v3467 = vpop.f32.mrf.mxu0
        %v3468 = vadd.f32 %v3433, %v3467
        %3469 = vmatmul.f32.gmra.mxu0 %v3413
        %v3470 = vpop.f32.mrf.mxu0
        %v3471 = vadd.f32 %v3433, %v3470
        %3472 = vmatmul.f32.gmra.mxu0 %v3414
        %v3473 = vpop.f32.mrf.mxu0
        %v3474 = vadd.f32 %v3433, %v3473
        %3475 = vdwg.mxu0
        %v3476 = vadd.f32 %v3453, %v588
        %v3477 = vadd.f32 %v3456, %v589
        %v3478 = vadd.f32 %v3459, %v590
        %v3479 = vadd.f32 %v3462, %v591
        %v3480 = vadd.f32 %v3465, %v592
        %v3481 = vadd.f32 %v3468, %v593
        %v3482 = vadd.f32 %v3471, %v594
        %v3483 = vadd.f32 %v3474, %v595
        %3484 = vadd.xlane.f32.xlu0 %v3476
        %v3485 = vpop.xlane.xlu0 %3484
        %3486 = vadd.xlane.f32.xlu0 %v3477
        %v3487 = vpop.xlane.xlu0 %3486
        %3488 = vadd.xlane.f32.xlu0 %v3478
        %v3489 = vpop.xlane.xlu0 %3488
        %3490 = vadd.xlane.f32.xlu0 %v3479
        %v3491 = vpop.xlane.xlu0 %3490
        %3492 = vadd.xlane.f32.xlu0 %v3480
        %v3493 = vpop.xlane.xlu0 %3492
        %3494 = vadd.xlane.f32.xlu0 %v3481
        %v3495 = vpop.xlane.xlu0 %3494
        %3496 = vadd.xlane.f32.xlu0 %v3482
        %v3497 = vpop.xlane.xlu0 %3496
        %3498 = vadd.xlane.f32.xlu0 %v3483
        %v3499 = vpop.xlane.xlu0 %3498
        %v3500 = vmul.f32 %v3485, %v618
        %v3501 = vmul.f32 %v3487, %v618
        %v3502 = vmul.f32 %v3489, %v618
        %v3503 = vmul.f32 %v3491, %v618
        %v3504 = vmul.f32 %v3493, %v618
        %v3505 = vmul.f32 %v3495, %v618
        %v3506 = vmul.f32 %v3497, %v618
        %v3507 = vmul.f32 %v3499, %v618
        %v3508 = vsub.f32 %v3476, %v3500
        %v3509 = vsub.f32 %v3477, %v3501
        %v3510 = vsub.f32 %v3478, %v3502
        %v3511 = vsub.f32 %v3479, %v3503
        %v3512 = vsub.f32 %v3480, %v3504
        %v3513 = vsub.f32 %v3481, %v3505
        %v3514 = vsub.f32 %v3482, %v3506
        %v3515 = vsub.f32 %v3483, %v3507
        %v3516 = vmul.f32 %v3508, %v3508
        %v3517 = vmul.f32 %v3509, %v3509
        %v3518 = vmul.f32 %v3510, %v3510
        %v3519 = vmul.f32 %v3511, %v3511
        %v3520 = vmul.f32 %v3512, %v3512
        %v3521 = vmul.f32 %v3513, %v3513
        %v3522 = vmul.f32 %v3514, %v3514
        %v3523 = vmul.f32 %v3515, %v3515
        %3524 = vadd.xlane.f32.xlu0 %v3516
        %v3525 = vpop.xlane.xlu0 %3524
        %3526 = vadd.xlane.f32.xlu0 %v3517
        %v3527 = vpop.xlane.xlu0 %3526
        %3528 = vadd.xlane.f32.xlu0 %v3518
        %v3529 = vpop.xlane.xlu0 %3528
        %3530 = vadd.xlane.f32.xlu0 %v3519
        %v3531 = vpop.xlane.xlu0 %3530
        %3532 = vadd.xlane.f32.xlu0 %v3520
        %v3533 = vpop.xlane.xlu0 %3532
        %3534 = vadd.xlane.f32.xlu0 %v3521
        %v3535 = vpop.xlane.xlu0 %3534
        %3536 = vadd.xlane.f32.xlu0 %v3522
        %v3537 = vpop.xlane.xlu0 %3536
        %3538 = vadd.xlane.f32.xlu0 %v3523
        %v3539 = vpop.xlane.xlu0 %3538
        %v3540 = vmul.f32 %v3525, %v618
        %v3541 = vmul.f32 %v3527, %v618
        %v3542 = vmul.f32 %v3529, %v618
        %v3543 = vmul.f32 %v3531, %v618
        %v3544 = vmul.f32 %v3533, %v618
        %v3545 = vmul.f32 %v3535, %v618
        %v3546 = vmul.f32 %v3537, %v618
        %v3547 = vmul.f32 %v3539, %v618
        %v3548 = vadd.f32 %v3540, 1e-05
        %v3549 = vadd.f32 %v3541, 1e-05
        %v3550 = vadd.f32 %v3542, 1e-05
        %v3551 = vadd.f32 %v3543, 1e-05
        %v3552 = vadd.f32 %v3544, 1e-05
        %v3553 = vadd.f32 %v3545, 1e-05
        %v3554 = vadd.f32 %v3546, 1e-05
        %v3555 = vadd.f32 %v3547, 1e-05
        %v3556 = vrsqrt.pop %v3548
        %v3557 = vmul.f32 %v3556, %v3548
        %v3558 = vmul.f32 %v3557, %v3556
        %v3559 = vmul.f32 0.5, %v3558
        %v3560 = vsub.f32 1.5, %v3559
        %v3561 = vmul.f32 %v3556, %v3560
        %vm3562 = vweird.f32 %v3548
        %vm3563 = vweird.f32 %v3556
        %vm3564 = vmor %vm3562, %vm3563
        %v3565 = vsel %vm3564, %v3556, %v3561
        %v3566 = vrsqrt.pop %v3549
        %v3567 = vmul.f32 %v3566, %v3549
        %v3568 = vmul.f32 %v3567, %v3566
        %v3569 = vmul.f32 0.5, %v3568
        %v3570 = vsub.f32 1.5, %v3569
        %v3571 = vmul.f32 %v3566, %v3570
        %vm3572 = vweird.f32 %v3549
        %vm3573 = vweird.f32 %v3566
        %vm3574 = vmor %vm3572, %vm3573
        %v3575 = vsel %vm3574, %v3566, %v3571
        %v3576 = vrsqrt.pop %v3550
        %v3577 = vmul.f32 %v3576, %v3550
        %v3578 = vmul.f32 %v3577, %v3576
        %v3579 = vmul.f32 0.5, %v3578
        %v3580 = vsub.f32 1.5, %v3579
        %v3581 = vmul.f32 %v3576, %v3580
        %vm3582 = vweird.f32 %v3550
        %vm3583 = vweird.f32 %v3576
        %vm3584 = vmor %vm3582, %vm3583
        %v3585 = vsel %vm3584, %v3576, %v3581
        %v3586 = vrsqrt.pop %v3551
        %v3587 = vmul.f32 %v3586, %v3551
        %v3588 = vmul.f32 %v3587, %v3586
        %v3589 = vmul.f32 0.5, %v3588
        %v3590 = vsub.f32 1.5, %v3589
        %v3591 = vmul.f32 %v3586, %v3590
        %vm3592 = vweird.f32 %v3551
        %vm3593 = vweird.f32 %v3586
        %vm3594 = vmor %vm3592, %vm3593
        %v3595 = vsel %vm3594, %v3586, %v3591
        %v3596 = vrsqrt.pop %v3552
        %v3597 = vmul.f32 %v3596, %v3552
        %v3598 = vmul.f32 %v3597, %v3596
        %v3599 = vmul.f32 0.5, %v3598
        %v3600 = vsub.f32 1.5, %v3599
        %v3601 = vmul.f32 %v3596, %v3600
        %vm3602 = vweird.f32 %v3552
        %vm3603 = vweird.f32 %v3596
        %vm3604 = vmor %vm3602, %vm3603
        %v3605 = vsel %vm3604, %v3596, %v3601
        %v3606 = vrsqrt.pop %v3553
        %v3607 = vmul.f32 %v3606, %v3553
        %v3608 = vmul.f32 %v3607, %v3606
        %v3609 = vmul.f32 0.5, %v3608
        %v3610 = vsub.f32 1.5, %v3609
        %v3611 = vmul.f32 %v3606, %v3610
        %vm3612 = vweird.f32 %v3553
        %vm3613 = vweird.f32 %v3606
        %vm3614 = vmor %vm3612, %vm3613
        %v3615 = vsel %vm3614, %v3606, %v3611
        %v3616 = vrsqrt.pop %v3554
        %v3617 = vmul.f32 %v3616, %v3554
        %v3618 = vmul.f32 %v3617, %v3616
        %v3619 = vmul.f32 0.5, %v3618
        %v3620 = vsub.f32 1.5, %v3619
        %v3621 = vmul.f32 %v3616, %v3620
        %vm3622 = vweird.f32 %v3554
        %vm3623 = vweird.f32 %v3616
        %vm3624 = vmor %vm3622, %vm3623
        %v3625 = vsel %vm3624, %v3616, %v3621
        %v3626 = vrsqrt.pop %v3555
        %v3627 = vmul.f32 %v3626, %v3555
        %v3628 = vmul.f32 %v3627, %v3626
        %v3629 = vmul.f32 0.5, %v3628
        %v3630 = vsub.f32 1.5, %v3629
        %v3631 = vmul.f32 %v3626, %v3630
        %vm3632 = vweird.f32 %v3555
        %vm3633 = vweird.f32 %v3626
        %vm3634 = vmor %vm3632, %vm3633
        %v3635 = vsel %vm3634, %v3626, %v3631
        %v3636 = vmul.f32 %v3508, %v3565
        %v3637 = vmul.f32 %v3509, %v3575
        %v3638 = vmul.f32 %v3510, %v3585
        %v3639 = vmul.f32 %v3511, %v3595
        %v3640 = vmul.f32 %v3512, %v3605
        %v3641 = vmul.f32 %v3513, %v3615
        %v3642 = vmul.f32 %v3514, %v3625
        %v3643 = vmul.f32 %v3515, %v3635
        %v3644 = vld [vmem:[%s8] sm:$0x1]
        %v3646 = vperm.slane %v3644, 0
        %v3648 = vmul.f32 %v3636, %v3646
        %v3649 = vmul.f32 %v3637, %v3646
        %v3650 = vmul.f32 %v3638, %v3646
        %v3651 = vmul.f32 %v3639, %v3646
        %v3652 = vmul.f32 %v3640, %v3646
        %v3653 = vmul.f32 %v3641, %v3646
        %v3654 = vmul.f32 %v3642, %v3646
        %v3655 = vmul.f32 %v3643, %v3646
        %v3656 = vld [vmem:[%s9] sm:$0x1]
        %v3658 = vperm.slane %v3656, 0
        %v3660 = vadd.f32 %v3648, %v3658
        %v3661 = vadd.f32 %v3649, %v3658
        %v3662 = vadd.f32 %v3650, %v3658
        %v3663 = vadd.f32 %v3651, %v3658
        %v3664 = vadd.f32 %v3652, %v3658
        %v3665 = vadd.f32 %v3653, %v3658
        %v3666 = vadd.f32 %v3654, %v3658
        %v3667 = vadd.f32 %v3655, %v3658
        %v3668 = vld [vmem:[#allocation11] sm:$0xff]
        %v3669 = vld [vmem:[#allocation11 + $0x8] sm:$0xff]
        %v3670 = vld [vmem:[#allocation11 + $0x10] sm:$0xff]
        %v3671 = vld [vmem:[#allocation11 + $0x18] sm:$0xff]
        %v3672 = vld [vmem:[#allocation11 + $0x20] sm:$0xff]
        %v3673 = vld [vmem:[#allocation11 + $0x28] sm:$0xff]
        %v3674 = vld [vmem:[#allocation11 + $0x30] sm:$0xff]
        %v3675 = vld [vmem:[#allocation11 + $0x38] sm:$0xff]
        %v3676 = vld [vmem:[#allocation11 + $0x40] sm:$0xff]
        %v3677 = vld [vmem:[#allocation11 + $0x48] sm:$0xff]
        %v3678 = vld [vmem:[#allocation11 + $0x50] sm:$0xff]
        %v3679 = vld [vmem:[#allocation11 + $0x58] sm:$0xff]
        %v3680 = vld [vmem:[#allocation11 + $0x60] sm:$0xff]
        %v3681 = vld [vmem:[#allocation11 + $0x68] sm:$0xff]
        %v3682 = vld [vmem:[#allocation11 + $0x70] sm:$0xff]
        %v3683 = vld [vmem:[#allocation11 + $0x78] sm:$0xff]
        %v3684 = vld [vmem:[%s11] sm:$0x1]
        %v3686 = vperm.slane %v3684, 0
        %3688 = vmatpush.msra.mxu0 %v3683
        %3689 = vmatpush.msra.mxu0 %v3682
        %3690 = vmatpush.msra.mxu0 %v3681
        %3691 = vmatpush.msra.mxu0 %v3680
        %3692 = vmatpush.msra.mxu0 %v3679
        %3693 = vmatpush.msra.mxu0 %v3678
        %3694 = vmatpush.msra.mxu0 %v3677
        %3695 = vmatpush.msra.mxu0 %v3676
        %3696 = vmatpush.msra.mxu0 %v3675
        %3697 = vmatpush.msra.mxu0 %v3674
        %3698 = vmatpush.msra.mxu0 %v3673
        %3699 = vmatpush.msra.mxu0 %v3672
        %3700 = vmatpush.msra.mxu0 %v3671
        %3701 = vmatpush.msra.mxu0 %v3670
        %3702 = vmatpush.msra.mxu0 %v3669
        %3703 = vmatpush.msra.mxu0 %v3668
        %3704 = vmatmul.f32.gmra.mxu0 %v3660
        %v3705 = vpop.f32.mrf.mxu0
        %v3706 = vadd.f32 %v3686, %v3705
        %3707 = vmatmul.f32.gmra.mxu0 %v3661
        %v3708 = vpop.f32.mrf.mxu0
        %v3709 = vadd.f32 %v3686, %v3708
        %3710 = vmatmul.f32.gmra.mxu0 %v3662
        %v3711 = vpop.f32.mrf.mxu0
        %v3712 = vadd.f32 %v3686, %v3711
        %3713 = vmatmul.f32.gmra.mxu0 %v3663
        %v3714 = vpop.f32.mrf.mxu0
        %v3715 = vadd.f32 %v3686, %v3714
        %3716 = vmatmul.f32.gmra.mxu0 %v3664
        %v3717 = vpop.f32.mrf.mxu0
        %v3718 = vadd.f32 %v3686, %v3717
        %3719 = vmatmul.f32.gmra.mxu0 %v3665
        %v3720 = vpop.f32.mrf.mxu0
        %v3721 = vadd.f32 %v3686, %v3720
        %3722 = vmatmul.f32.gmra.mxu0 %v3666
        %v3723 = vpop.f32.mrf.mxu0
        %v3724 = vadd.f32 %v3686, %v3723
        %3725 = vmatmul.f32.gmra.mxu0 %v3667
        %v3726 = vpop.f32.mrf.mxu0
        %v3727 = vadd.f32 %v3686, %v3726
        %3728 = vdwg.mxu0
        %v3729 = vmul.f32 %v3706, 0.5
        %v3730 = vmul.f32 %v3709, 0.5
        %v3731 = vmul.f32 %v3712, 0.5
        %v3732 = vmul.f32 %v3715, 0.5
        %v3733 = vmul.f32 %v3718, 0.5
        %v3734 = vmul.f32 %v3721, 0.5
        %v3735 = vmul.f32 %v3724, 0.5
        %v3736 = vmul.f32 %v3727, 0.5
        %v3737 = vmul.f32 %v3706, 0.044715
        %v3738 = vmul.f32 %v3709, 0.044715
        %v3739 = vmul.f32 %v3712, 0.044715
        %v3740 = vmul.f32 %v3715, 0.044715
        %v3741 = vmul.f32 %v3718, 0.044715
        %v3742 = vmul.f32 %v3721, 0.044715
        %v3743 = vmul.f32 %v3724, 0.044715
        %v3744 = vmul.f32 %v3727, 0.044715
        %v3745 = vmul.f32 %v3737, %v3706
        %v3746 = vmul.f32 %v3738, %v3709
        %v3747 = vmul.f32 %v3739, %v3712
        %v3748 = vmul.f32 %v3740, %v3715
        %v3749 = vmul.f32 %v3741, %v3718
        %v3750 = vmul.f32 %v3742, %v3721
        %v3751 = vmul.f32 %v3743, %v3724
        %v3752 = vmul.f32 %v3744, %v3727
        %v3753 = vmul.f32 %v3745, %v3706
        %v3754 = vmul.f32 %v3746, %v3709
        %v3755 = vmul.f32 %v3747, %v3712
        %v3756 = vmul.f32 %v3748, %v3715
        %v3757 = vmul.f32 %v3749, %v3718
        %v3758 = vmul.f32 %v3750, %v3721
        %v3759 = vmul.f32 %v3751, %v3724
        %v3760 = vmul.f32 %v3752, %v3727
        %v3761 = vadd.f32 %v3706, %v3753
        %v3762 = vadd.f32 %v3709, %v3754
        %v3763 = vadd.f32 %v3712, %v3755
        %v3764 = vadd.f32 %v3715, %v3756
        %v3765 = vadd.f32 %v3718, %v3757
        %v3766 = vadd.f32 %v3721, %v3758
        %v3767 = vadd.f32 %v3724, %v3759
        %v3768 = vadd.f32 %v3727, %v3760
        %v3769 = vmul.f32 %v3761, 0.7978846
        %v3770 = vmul.f32 %v3762, 0.7978846
        %v3771 = vmul.f32 %v3763, 0.7978846
        %v3772 = vmul.f32 %v3764, 0.7978846
        %v3773 = vmul.f32 %v3765, 0.7978846
        %v3774 = vmul.f32 %v3766, 0.7978846
        %v3775 = vmul.f32 %v3767, 0.7978846
        %v3776 = vmul.f32 %v3768, 0.7978846
        %v3777 = vtanh.pop %v3769
        %v3778 = vtanh.pop %v3770
        %v3779 = vtanh.pop %v3771
        %v3780 = vtanh.pop %v3772
        %v3781 = vtanh.pop %v3773
        %v3782 = vtanh.pop %v3774
        %v3783 = vtanh.pop %v3775
        %v3784 = vtanh.pop %v3776
        %v3785 = vadd.f32 %v3777, 1.0
        %v3786 = vadd.f32 %v3778, 1.0
        %v3787 = vadd.f32 %v3779, 1.0
        %v3788 = vadd.f32 %v3780, 1.0
        %v3789 = vadd.f32 %v3781, 1.0
        %v3790 = vadd.f32 %v3782, 1.0
        %v3791 = vadd.f32 %v3783, 1.0
        %v3792 = vadd.f32 %v3784, 1.0
        %v3793 = vmul.f32 %v3729, %v3785
        %v3794 = vmul.f32 %v3730, %v3786
        %v3795 = vmul.f32 %v3731, %v3787
        %v3796 = vmul.f32 %v3732, %v3788
        %v3797 = vmul.f32 %v3733, %v3789
        %v3798 = vmul.f32 %v3734, %v3790
        %v3799 = vmul.f32 %v3735, %v3791
        %v3800 = vmul.f32 %v3736, %v3792
        %v3801 = vld [vmem:[#allocation13] sm:$0xff]
        %v3802 = vld [vmem:[#allocation13 + $0x8] sm:$0xff]
        %v3803 = vld [vmem:[#allocation13 + $0x10] sm:$0xff]
        %v3804 = vld [vmem:[#allocation13 + $0x18] sm:$0xff]
        %v3805 = vld [vmem:[#allocation13 + $0x20] sm:$0xff]
        %v3806 = vld [vmem:[#allocation13 + $0x28] sm:$0xff]
        %v3807 = vld [vmem:[#allocation13 + $0x30] sm:$0xff]
        %v3808 = vld [vmem:[#allocation13 + $0x38] sm:$0xff]
        %v3809 = vld [vmem:[#allocation13 + $0x40] sm:$0xff]
        %v3810 = vld [vmem:[#allocation13 + $0x48] sm:$0xff]
        %v3811 = vld [vmem:[#allocation13 + $0x50] sm:$0xff]
        %v3812 = vld [vmem:[#allocation13 + $0x58] sm:$0xff]
        %v3813 = vld [vmem:[#allocation13 + $0x60] sm:$0xff]
        %v3814 = vld [vmem:[#allocation13 + $0x68] sm:$0xff]
        %v3815 = vld [vmem:[#allocation13 + $0x70] sm:$0xff]
        %v3816 = vld [vmem:[#allocation13 + $0x78] sm:$0xff]
        %v3817 = vld [vmem:[%s13] sm:$0x1]
        %v3819 = vperm.slane %v3817, 0
        %3821 = vmatpush.msra.mxu0 %v3816
        %3822 = vmatpush.msra.mxu0 %v3815
        %3823 = vmatpush.msra.mxu0 %v3814
        %3824 = vmatpush.msra.mxu0 %v3813
        %3825 = vmatpush.msra.mxu0 %v3812
        %3826 = vmatpush.msra.mxu0 %v3811
        %3827 = vmatpush.msra.mxu0 %v3810
        %3828 = vmatpush.msra.mxu0 %v3809
        %3829 = vmatpush.msra.mxu0 %v3808
        %3830 = vmatpush.msra.mxu0 %v3807
        %3831 = vmatpush.msra.mxu0 %v3806
        %3832 = vmatpush.msra.mxu0 %v3805
        %3833 = vmatpush.msra.mxu0 %v3804
        %3834 = vmatpush.msra.mxu0 %v3803
        %3835 = vmatpush.msra.mxu0 %v3802
        %3836 = vmatpush.msra.mxu0 %v3801
        %3837 = vmatmul.f32.gmra.mxu0 %v3793
        %v3838 = vpop.f32.mrf.mxu0
        %v3839 = vadd.f32 %v3819, %v3838
        %3840 = vmatmul.f32.gmra.mxu0 %v3794
        %v3841 = vpop.f32.mrf.mxu0
        %v3842 = vadd.f32 %v3819, %v3841
        %3843 = vmatmul.f32.gmra.mxu0 %v3795
        %v3844 = vpop.f32.mrf.mxu0
        %v3845 = vadd.f32 %v3819, %v3844
        %3846 = vmatmul.f32.gmra.mxu0 %v3796
        %v3847 = vpop.f32.mrf.mxu0
        %v3848 = vadd.f32 %v3819, %v3847
        %3849 = vmatmul.f32.gmra.mxu0 %v3797
        %v3850 = vpop.f32.mrf.mxu0
        %v3851 = vadd.f32 %v3819, %v3850
        %3852 = vmatmul.f32.gmra.mxu0 %v3798
        %v3853 = vpop.f32.mrf.mxu0
        %v3854 = vadd.f32 %v3819, %v3853
        %3855 = vmatmul.f32.gmra.mxu0 %v3799
        %v3856 = vpop.f32.mrf.mxu0
        %v3857 = vadd.f32 %v3819, %v3856
        %3858 = vmatmul.f32.gmra.mxu0 %v3800
        %v3859 = vpop.f32.mrf.mxu0
        %v3860 = vadd.f32 %v3819, %v3859
        %3861 = vdwg.mxu0
        %v3862 = vadd.f32 %v3839, %v3476
        %v3863 = vadd.f32 %v3842, %v3477
        %v3864 = vadd.f32 %v3845, %v3478
        %v3865 = vadd.f32 %v3848, %v3479
        %v3866 = vadd.f32 %v3851, %v3480
        %v3867 = vadd.f32 %v3854, %v3481
        %v3868 = vadd.f32 %v3857, %v3482
        %v3869 = vadd.f32 %v3860, %v3483
        %3870 = vst [vmem:[%s585] sm:$0xff] %v3862
        %3871 = vst [vmem:[%s585 + $0x8] sm:$0xff] %v3863
        %3872 = vst [vmem:[%s585 + $0x10] sm:$0xff] %v3864
        %3873 = vst [vmem:[%s585 + $0x18] sm:$0xff] %v3865
        %3874 = vst [vmem:[%s585 + $0x20] sm:$0xff] %v3866
        %3875 = vst [vmem:[%s585 + $0x28] sm:$0xff] %v3867
        %3876 = vst [vmem:[%s585 + $0x30] sm:$0xff] %v3868
        %3877 = vst [vmem:[%s585 + $0x38] sm:$0xff] %v3869
        %s3878 = sand.u32 %s341, 1
        %s3879 = scalar_lea.sflag [#allocation4], %s3878
        %s3880 = sand.u32 %s341, 1
        %s3881 = smul.addr %s3880, 64
        %s3882 = scalar_lea.vmem [#allocation14], %s3881
        // Predicated region
        $region105: #{tpu_custom_call.1} parent=75 // pred_check
          %p3883 = pneg %p351
        $region106: #{tpu_custom_call.1} parent=75 // pred_check_branch
          %3885 = sbr.rel (%p3883) target = $region108
        $region107: #{tpu_custom_call.1} parent=75 // pred_region
          %s3886 = smul.u32 4, %s34
          %3888 = vsyncadd %s3879, 0
          %s3889 = smul.addr %s3886, 2
          %s3890 = smul.addr %s3889, 8
          %s3891 = scalar_lea.hbm %s14, %s3890
          %s3892 = sshll.u32 %s3882, 4
          %s3893 = int_to_ptr.vmem [resolvable:$true] %s3892
          %s3894 = sshll.u32 %s3891, 4
          %s3895 = int_to_ptr.hbm [resolvable:$true] %s3894
          %3900 = dma.vmem_to_hbm [thread:$0]  %s3893, 1024, %s3895, %s3879, 128, 128, 8
        $region108: #{tpu_custom_call.1} parent=75 // pred_fallthru
          _
      $region76: #{tpu_custom_call.1} parent=5 // pred_fallthru
        _
      %p3901 = scmp.le.s32.totalorder 2, %s29
      // Predicated region
      $region109: #{tpu_custom_call.1} parent=5 // pred_check
        %p3902 = pneg %p3901
      $region110: #{tpu_custom_call.1} parent=5 // pred_check_branch
        %3904 = sbr.rel (%p3902) target = $region112
      $region111: #{tpu_custom_call.1} parent=5 // pred_region
        %s3905 = ssub.s32 %s29, 2
        // Predicated region
        $region113: #{tpu_custom_call.1} parent=111 // pred_check
          %p3906 = pneg %p357
        $region114: #{tpu_custom_call.1} parent=111 // pred_check_branch
          %3908 = sbr.rel (%p3906) target = $region116
        $region115: #{tpu_custom_call.1} parent=111 // pred_region
          %s3909 = sand.u32 %s342, 1
          %s3910 = scalar_lea.sflag [#allocation4], %s3909
          %s3911 = sand.u32 %s342, 1
          %s3912 = smul.addr %s3911, 64
          %s3913 = scalar_lea.vmem [#allocation14], %s3912
          %3915 = dma.done %s3910, 1024
        $region116: #{tpu_custom_call.1} parent=111 // pred_fallthru
          _
      $region112: #{tpu_custom_call.1} parent=5 // pred_fallthru
        _
    $region6: #{tpu_custom_call.1} parent=1 // loop_footer
      %s33 = sadd.s32 1, %s29
    $region7: #{tpu_custom_call.1} parent=1 // loop_footer_branch
      %28 = sbr.rel target = $region3
    $region8: #{tpu_custom_call.1} parent=1 // loop_exit
      _
    %3916 = vsyncpa [#allocation3], 1
    %s3917 = scalar_lea.sflag [#allocation3], 1
    %3918 = vsyncpa %s3917, 1
    %3919 = vsyncpa [#allocation6], 1
    %3920 = vsyncpa [#allocation9], 1
    %3921 = vsyncpa [#allocation12], 1
    %3922 = vsyncpa [#allocation4], 1
    %s3923 = scalar_lea.sflag [#allocation4], 1
    %3924 = vsyncpa %s3923, 1

</llo_original>
